<compile_context>
chip_gen: v7x
topology: tpu7x:2x2x1
jax: 0.10.0
libtpu: 0.0.40
codegen_flags: <defaults>
</compile_context>

<pallas_src>
import functools

import jax
import jax.numpy as jnp
from jax.experimental import pallas as pl
from jax.experimental.pallas import tpu as pltpu


# ----------------------------------------------------------------------------
# Fused kernel: LSTM recurrence (1 or 2 layers) over a time chunk + head on the
# final hidden state.  Gate order follows PyTorch: i, f, g, o (fused along the
# 4H axis of the weights).
# ----------------------------------------------------------------------------
def _fused_lstm_kernel(two_layers, *refs):
    if two_layers:
        (gx1_ref, whh1_ref, wih2_ref, whh2_ref, b2_ref, w3_ref, b3_ref,
         out_ref, y1_ref, y2_ref, h1_sc, c1_sc, h2_sc, c2_sc) = refs
        state_refs = (h1_sc, c1_sc, h2_sc, c2_sc)
    else:
        (gx1_ref, whh1_ref, w3_ref, b3_ref,
         out_ref, y1_ref, y2_ref, h1_sc, c1_sc) = refs
        state_refs = (h1_sc, c1_sc)

    chunk = pl.program_id(0)
    n_chunks = pl.num_programs(0)
    H = whh1_ref.shape[0]
    t_chunk = gx1_ref.shape[0]

    @pl.when(chunk == 0)
    def _():
        for r in state_refs:
            r[...] = jnp.zeros_like(r)

    # Grid-invariant weights: load once per chunk into values (vreg/VMEM).
    whh1 = whh1_ref[...]
    if two_layers:
        wih2 = wih2_ref[...]
        whh2 = whh2_ref[...]
        b2 = b2_ref[...]

    def cell(gates, c_prev):
        i_g = jax.nn.sigmoid(gates[:, 0 * H:1 * H])
        f_g = jax.nn.sigmoid(gates[:, 1 * H:2 * H])
        g_g = jnp.tanh(gates[:, 2 * H:3 * H])
        o_g = jax.nn.sigmoid(gates[:, 3 * H:4 * H])
        c_t = f_g * c_prev + i_g * g_g
        h_t = o_g * jnp.tanh(c_t)
        return h_t, c_t

    def step(t, carry):
        if two_layers:
            h1, c1, h2, c2 = carry
        else:
            h1, c1 = carry
        # Layer 1: input gates were precomputed; only the recurrent matmul is
        # on the serial critical path.
        g1 = gx1_ref[t] + jnp.dot(h1, whh1, preferred_element_type=jnp.float32)
        h1, c1 = cell(g1, c1)
        if two_layers:
            # Layer 2 consumes layer-1's h_t of the SAME step (valid dependency).
            g2 = (jnp.dot(h1, wih2, preferred_element_type=jnp.float32)
                  + jnp.dot(h2, whh2, preferred_element_type=jnp.float32) + b2)
            h2, c2 = cell(g2, c2)
            out_ref[t] = h2
            return (h1, c1, h2, c2)
        out_ref[t] = h1
        return (h1, c1)

    carry0 = tuple(r[...] for r in state_refs)
    carry = jax.lax.fori_loop(0, t_chunk, step, carry0,
                              unroll=(t_chunk <= 16))
    # Persist h/c across time chunks.
    for r, v in zip(state_refs, carry):
        r[...] = v

    # Fused head on the last time step: y1 = h_last @ W3^T + b3; y2 = log_softmax.
    @pl.when(chunk == n_chunks - 1)
    def _():
        h_last = carry[2] if two_layers else carry[0]
        y1 = jnp.dot(h_last, w3_ref[...],
                     preferred_element_type=jnp.float32) + b3_ref[...]
        y1_ref[...] = y1
        m = jnp.max(y1, axis=1, keepdims=True)
        z = y1 - m
        y2_ref[...] = z - jnp.log(jnp.sum(jnp.exp(z), axis=1, keepdims=True))


def _pick_time_chunk(T):
    # Largest chunk <= 128 that divides T: bounds per-chunk VMEM for long
    # sequences (budgeted conservatively for v7x's 64 MiB VMEM at scaled B/H).
    for c in (128, 64, 32, 16, 8):
        if T >= c and T % c == 0:
            return c
    return T


# ----------------------------------------------------------------------------
# Full model forward (mirrors LSTM.forward(x, layer_num)); layer_num is static.
# ----------------------------------------------------------------------------
def lstm_model_forward(x, params, layer_num):
    """x: (B, T, D) batch_first.  Returns (out (B,T,H), y1 (B,C), y2 (B,C))."""
    B, T, D = x.shape
    H = params["whh1"].shape[0]
    C = params["w3"].shape[-1]
    two_layers = (layer_num == 2)

    # Pad batch to a sublane multiple (8) so (B,4H)/(B,H) tiles fill vregs/MXU rows.
    B_pad = ((B + 7) // 8) * 8
    if B_pad != B:
        x = jnp.pad(x, ((0, B_pad - B), (0, 0), (0, 0)))

    # Hoisted input projection: ONE big (B*T, D) @ (D, 4H) matmul done by XLA;
    # the 'tbg' output layout absorbs the batch_first -> time-major transpose.
    gx1 = jnp.einsum("btd,dg->tbg", x, params["wih1"]) + params["b1"]  # (T, B_pad, 4H)

    t_chunk = _pick_time_chunk(T)
    n_chunks = T // t_chunk

    wspec = lambda c: (0, 0)  # grid-invariant operands
    if two_layers:
        operands = (gx1, params["whh1"], params["wih2"], params["whh2"],
                    params["b2"], params["w3"], params["b3"])
        in_specs = [
            pl.BlockSpec((t_chunk, B_pad, 4 * H), lambda c: (c, 0, 0)),
            # NOTE: at large H, mark these invariant weights single-buffered
            # (pipeline_mode=pl.Buffered(1)) or preload into scratch to save VMEM.
            pl.BlockSpec((H, 4 * H), wspec),
            pl.BlockSpec((H, 4 * H), wspec),
            pl.BlockSpec((H, 4 * H), wspec),
            pl.BlockSpec((1, 4 * H), wspec),
            pl.BlockSpec((H, C), wspec),
            pl.BlockSpec((1, C), wspec),
        ]
        n_state = 4
    else:
        operands = (gx1, params["whh1"], params["w3"], params["b3"])
        in_specs = [
            pl.BlockSpec((t_chunk, B_pad, 4 * H), lambda c: (c, 0, 0)),
            pl.BlockSpec((H, 4 * H), wspec),
            pl.BlockSpec((H, C), wspec),
            pl.BlockSpec((1, C), wspec),
        ]
        n_state = 2

    out_tbh, y1, y2 = pl.pallas_call(
        functools.partial(_fused_lstm_kernel, two_layers),
        out_shape=(
            jax.ShapeDtypeStruct((T, B_pad, H), jnp.float32),
            jax.ShapeDtypeStruct((B_pad, C), jnp.float32),
            jax.ShapeDtypeStruct((B_pad, C), jnp.float32),
        ),
        grid_spec=pltpu.PrefetchScalarGridSpec(
            num_scalar_prefetch=0,
            grid=(n_chunks,),
            in_specs=in_specs,
            out_specs=[
                pl.BlockSpec((t_chunk, B_pad, H), lambda c: (c, 0, 0)),
                pl.BlockSpec((B_pad, C), wspec),
                pl.BlockSpec((B_pad, C), wspec),
            ],
            scratch_shapes=[pltpu.VMEM((B_pad, H), jnp.float32)
                            for _ in range(n_state)],
        ),
        compiler_params=pltpu.CompilerParams(
            # The time-chunk axis is a true recurrence: sequential.
            dimension_semantics=("arbitrary",)),
    )(*operands)

    out = jnp.transpose(out_tbh, (1, 0, 2))[:B]  # back to batch_first (B, T, H)
    return out, y1[:B], y2[:B]


# ----------------------------------------------------------------------------
# Pure-JAX reference (lax.scan) for correctness check (same fused weights).
# ----------------------------------------------------------------------------
def _ref_lstm_layer(x_btd, wih, whh, b):
    B = x_btd.shape[0]
    H = whh.shape[0]

    def step(carry, x_t):
        h, c = carry
        gates = x_t @ wih + h @ whh + b  # (B, 4H), order i,f,g,o
        i_g = jax.nn.sigmoid(gates[:, 0 * H:1 * H])
        f_g = jax.nn.sigmoid(gates[:, 1 * H:2 * H])
        g_g = jnp.tanh(gates[:, 2 * H:3 * H])
        o_g = jax.nn.sigmoid(gates[:, 3 * H:4 * H])
        c = f_g * c + i_g * g_g
        h = o_g * jnp.tanh(c)
        return (h, c), h

    init = (jnp.zeros((B, H), jnp.float32), jnp.zeros((B, H), jnp.float32))
    _, hs = jax.lax.scan(step, init, jnp.transpose(x_btd, (1, 0, 2)))
    return jnp.transpose(hs, (1, 0, 2))


def _ref_forward(x, params, layer_num):
    out = _ref_lstm_layer(x, params["wih1"], params["whh1"], params["b1"])
    if layer_num == 2:
        out = _ref_lstm_layer(out, params["wih2"], params["whh2"], params["b2"])
    y1 = out[:, -1, :] @ params["w3"] + params["b3"]
    y2 = jax.nn.log_softmax(y1, axis=1)
    return out, y1, y2


# ----------------------------------------------------------------------------
# Deterministic synthetic parameter init, gate-fused layout.
# torch weight_ih_l0 (4H, D) -> wih (D, 4H); weight_hh_l0 (4H, H) -> whh (H, 4H);
# b = b_ih + b_hh combined as (1, 4H); Linear (C, H) -> w3 (H, C), b3 (1, C).
# TODO(synk): torch.manual_seed(123) xavier_normal_/orthogonal_ init is not
# bit-reproduced; shapes/semantics are faithful, values are deterministic JAX randoms.
# ----------------------------------------------------------------------------
def init_params(key, data_dim, hidden_dim, n_class):
    ks = jax.random.split(key, 8)
    scale = 0.1

    def w(k, shape):
        return scale * jax.random.normal(k, shape, dtype=jnp.float32)

    return {
        "wih1": w(ks[0], (data_dim, 4 * hidden_dim)),
        "whh1": w(ks[1], (hidden_dim, 4 * hidden_dim)),
        "b1": w(ks[2], (1, 4 * hidden_dim)),
        "wih2": w(ks[3], (hidden_dim, 4 * hidden_dim)),
        "whh2": w(ks[4], (hidden_dim, 4 * hidden_dim)),
        "b2": w(ks[5], (1, 4 * hidden_dim)),
        "w3": w(ks[6], (hidden_dim, n_class)),
        "b3": w(ks[7], (1, n_class)),
    }


if __name__ == "__main__":
    B, T, data_dim, hidden_dim, n_class = 2, 8, 16, 32, 5
    dropout_rate = 0.1  # nn.Dropout is identity at inference -> not applied

    key = jax.random.PRNGKey(0)
    kx, kp = jax.random.split(key)
    x = jax.random.normal(kx, (B, T, data_dim), dtype=jnp.float32)
    params = init_params(kp, data_dim, hidden_dim, n_class)

    # layer_num = 2 path (default / main path)
    fwd2 = jax.jit(functools.partial(lstm_model_forward, layer_num=2))
    out, y1, y2 = fwd2(x, params)
    jax.block_until_ready((out, y1, y2))

    r_out, r_y1, r_y2 = _ref_forward(x, params, layer_num=2)
    assert out.shape == (B, T, hidden_dim)
    assert y1.shape == (B, n_class) and y2.shape == (B, n_class)
    assert jnp.allclose(out, r_out, rtol=1e-4, atol=1e-4)
    assert jnp.allclose(y1, r_y1, rtol=1e-4, atol=1e-4)
    assert jnp.allclose(y2, r_y2, rtol=1e-4, atol=1e-4)

    # layer_num = 1 path (single LSTM layer)
    fwd1 = jax.jit(functools.partial(lstm_model_forward, layer_num=1))
    out1, y1_1, y2_1 = fwd1(x, params)
    jax.block_until_ready((out1, y1_1, y2_1))
    r_out1, r_y1_1, r_y2_1 = _ref_forward(x, params, layer_num=1)
    assert jnp.allclose(out1, r_out1, rtol=1e-4, atol=1e-4)
    assert jnp.allclose(y1_1, r_y1_1, rtol=1e-4, atol=1e-4)
    assert jnp.allclose(y2_1, r_y2_1, rtol=1e-4, atol=1e-4)

    print("KERNEL_OK")
</pallas_src>

<mosaic_0001>
module attributes {stable_mosaic.version = 11 : i64} {
  func.func @_fused_lstm_kernel(%arg0: i32, %arg1: memref<8x8x128xf32, #tpu.memory_space<vmem>>, %arg2: memref<32x128xf32, #tpu.memory_space<vmem>>, %arg3: memref<32x128xf32, #tpu.memory_space<vmem>>, %arg4: memref<32x128xf32, #tpu.memory_space<vmem>>, %arg5: memref<1x128xf32, #tpu.memory_space<vmem>>, %arg6: memref<32x5xf32, #tpu.memory_space<vmem>>, %arg7: memref<1x5xf32, #tpu.memory_space<vmem>>, %arg8: memref<8x8x32xf32, #tpu.memory_space<vmem>>, %arg9: memref<8x5xf32, #tpu.memory_space<vmem>>, %arg10: memref<8x5xf32, #tpu.memory_space<vmem>>, %arg11: memref<8x32xf32, #tpu.memory_space<vmem>>, %arg12: memref<8x32xf32, #tpu.memory_space<vmem>>, %arg13: memref<8x32xf32, #tpu.memory_space<vmem>>, %arg14: memref<8x32xf32, #tpu.memory_space<vmem>>) attributes {dimension_semantics = [#tpu.dimension_semantics<arbitrary>], iteration_bounds = array<i64: 1>, scalar_prefetch = 0 : i64, scratch_operands = 4 : i64, tpu.core_type = #tpu.core_type<tc>, window_params = [{transform_indices = @transform_0, window_bounds = array<i64: 8, 8, 128>}, {pipeline_mode = #tpu.pipeline_mode<synchronous>, transform_indices = @transform_1, window_bounds = array<i64: 32, 128>}, {pipeline_mode = #tpu.pipeline_mode<synchronous>, transform_indices = @transform_2, window_bounds = array<i64: 32, 128>}, {pipeline_mode = #tpu.pipeline_mode<synchronous>, transform_indices = @transform_3, window_bounds = array<i64: 32, 128>}, {pipeline_mode = #tpu.pipeline_mode<synchronous>, transform_indices = @transform_4, window_bounds = array<i64: 1, 128>}, {pipeline_mode = #tpu.pipeline_mode<synchronous>, transform_indices = @transform_5, window_bounds = array<i64: 32, 5>}, {pipeline_mode = #tpu.pipeline_mode<synchronous>, transform_indices = @transform_6, window_bounds = array<i64: 1, 5>}, {transform_indices = @transform_7, window_bounds = array<i64: 8, 8, 32>}, {pipeline_mode = #tpu.pipeline_mode<synchronous>, transform_indices = @transform_8, window_bounds = array<i64: 8, 5>}, {pipeline_mode = #tpu.pipeline_mode<synchronous>, transform_indices = @transform_9, window_bounds = array<i64: 8, 5>}]} {
    %c0_i32 = arith.constant 0 : i32
    %0 = arith.cmpi eq, %arg0, %c0_i32 : i32
    %1 = arith.extui %0 : i1 to i32
    %c0_i32_0 = arith.constant 0 : i32
    %2 = arith.cmpi ne, %1, %c0_i32_0 : i32
    scf.if %2 {
      %cst_130 = arith.constant 0.000000e+00 : f32
      %530 = vector.broadcast %cst_130 : f32 to vector<8x32xf32>
      %c0_131 = arith.constant 0 : index
      %c0_132 = arith.constant 0 : index
      %531 = vector.load %arg11[%c0_131, %c0_132] : memref<8x32xf32, #tpu.memory_space<vmem>>, vector<8x32xf32>
      tpu.vector_store %arg11[%c0_131, %c0_132], %530 {strides = array<i32>} : memref<8x32xf32, #tpu.memory_space<vmem>>, vector<8x32xf32>,
      %cst_133 = arith.constant 0.000000e+00 : f32
      %532 = vector.broadcast %cst_133 : f32 to vector<8x32xf32>
      %c0_134 = arith.constant 0 : index
      %c0_135 = arith.constant 0 : index
      %533 = vector.load %arg12[%c0_134, %c0_135] : memref<8x32xf32, #tpu.memory_space<vmem>>, vector<8x32xf32>
      tpu.vector_store %arg12[%c0_134, %c0_135], %532 {strides = array<i32>} : memref<8x32xf32, #tpu.memory_space<vmem>>, vector<8x32xf32>,
      %cst_136 = arith.constant 0.000000e+00 : f32
      %534 = vector.broadcast %cst_136 : f32 to vector<8x32xf32>
      %c0_137 = arith.constant 0 : index
      %c0_138 = arith.constant 0 : index
      %535 = vector.load %arg13[%c0_137, %c0_138] : memref<8x32xf32, #tpu.memory_space<vmem>>, vector<8x32xf32>
      tpu.vector_store %arg13[%c0_137, %c0_138], %534 {strides = array<i32>} : memref<8x32xf32, #tpu.memory_space<vmem>>, vector<8x32xf32>,
      %cst_139 = arith.constant 0.000000e+00 : f32
      %536 = vector.broadcast %cst_139 : f32 to vector<8x32xf32>
      %c0_140 = arith.constant 0 : index
      %c0_141 = arith.constant 0 : index
      %537 = vector.load %arg14[%c0_140, %c0_141] : memref<8x32xf32, #tpu.memory_space<vmem>>, vector<8x32xf32>
      tpu.vector_store %arg14[%c0_140, %c0_141], %536 {strides = array<i32>} : memref<8x32xf32, #tpu.memory_space<vmem>>, vector<8x32xf32>,
    } else {
    }
    %c0 = arith.constant 0 : index
    %c0_1 = arith.constant 0 : index
    %3 = vector.load %arg2[%c0, %c0_1] : memref<32x128xf32, #tpu.memory_space<vmem>>, vector<32x128xf32>
    %c0_2 = arith.constant 0 : index
    %c0_3 = arith.constant 0 : index
    %4 = vector.load %arg3[%c0_2, %c0_3] : memref<32x128xf32, #tpu.memory_space<vmem>>, vector<32x128xf32>
    %c0_4 = arith.constant 0 : index
    %c0_5 = arith.constant 0 : index
    %5 = vector.load %arg4[%c0_4, %c0_5] : memref<32x128xf32, #tpu.memory_space<vmem>>, vector<32x128xf32>
    %c0_6 = arith.constant 0 : index
    %c0_7 = arith.constant 0 : index
    %6 = vector.load %arg5[%c0_6, %c0_7] : memref<1x128xf32, #tpu.memory_space<vmem>>, vector<1x128xf32>
    %c0_8 = arith.constant 0 : index
    %c0_9 = arith.constant 0 : index
    %7 = vector.load %arg11[%c0_8, %c0_9] : memref<8x32xf32, #tpu.memory_space<vmem>>, vector<8x32xf32>
    %c0_10 = arith.constant 0 : index
    %c0_11 = arith.constant 0 : index
    %8 = vector.load %arg12[%c0_10, %c0_11] : memref<8x32xf32, #tpu.memory_space<vmem>>, vector<8x32xf32>
    %c0_12 = arith.constant 0 : index
    %c0_13 = arith.constant 0 : index
    %9 = vector.load %arg13[%c0_12, %c0_13] : memref<8x32xf32, #tpu.memory_space<vmem>>, vector<8x32xf32>
    %c0_14 = arith.constant 0 : index
    %c0_15 = arith.constant 0 : index
    %10 = vector.load %arg14[%c0_14, %c0_15] : memref<8x32xf32, #tpu.memory_space<vmem>>, vector<8x32xf32>
    %c0_i32_16 = arith.constant 0 : i32
    %11 = arith.index_cast %c0_i32_16 : i32 to index
    %c0_17 = arith.constant 0 : index
    %c0_18 = arith.constant 0 : index
    %12 = vector.load %arg1[%11, %c0_17, %c0_18] : memref<8x8x128xf32, #tpu.memory_space<vmem>>, vector<1x8x128xf32>
    %13 = vector.shape_cast %12 : vector<1x8x128xf32> to vector<8x128xf32>
    %cst = arith.constant dense<0.000000e+00> : vector<8x128xf32>
    %14 = tpu.matmul %7, %3, %cst {dimension_numbers = #tpu.dot_dimension_numbers<[1], [0], [0], [1], [0, 0, 1, 1], [], []>} : vector<8x32xf32>, vector<32x128xf32>, vector<8x128xf32> -> vector<8x128xf32>
    %15 = arith.addf %13, %14 : vector<8x128xf32>
    %16 = vector.extract_strided_slice %15 {offsets = [0, 0], sizes = [8, 32], strides = [1, 1]} : vector<8x128xf32> to vector<8x32xf32>
    %17 = arith.negf %16 : vector<8x32xf32>
    %18 = math.exp %17 : vector<8x32xf32>
    %cst_19 = arith.constant 1.000000e+00 : f32
    %19 = vector.broadcast %cst_19 : f32 to vector<8x32xf32>
    %20 = arith.addf %19, %18 : vector<8x32xf32>
    %21 = arith.divf %19, %20 : vector<8x32xf32>
    %22 = vector.extract_strided_slice %15 {offsets = [0, 32], sizes = [8, 32], strides = [1, 1]} : vector<8x128xf32> to vector<8x32xf32>
    %23 = arith.negf %22 : vector<8x32xf32>
    %24 = math.exp %23 : vector<8x32xf32>
    %cst_20 = arith.constant 1.000000e+00 : f32
    %25 = vector.broadcast %cst_20 : f32 to vector<8x32xf32>
    %26 = arith.addf %25, %24 : vector<8x32xf32>
    %27 = arith.divf %25, %26 : vector<8x32xf32>
    %28 = vector.extract_strided_slice %15 {offsets = [0, 64], sizes = [8, 32], strides = [1, 1]} : vector<8x128xf32> to vector<8x32xf32>
    %29 = math.tanh %28 : vector<8x32xf32>
    %30 = vector.extract_strided_slice %15 {offsets = [0, 96], sizes = [8, 32], strides = [1, 1]} : vector<8x128xf32> to vector<8x32xf32>
    %31 = arith.negf %30 : vector<8x32xf32>
    %32 = math.exp %31 : vector<8x32xf32>
    %cst_21 = arith.constant 1.000000e+00 : f32
    %33 = vector.broadcast %cst_21 : f32 to vector<8x32xf32>
    %34 = arith.addf %33, %32 : vector<8x32xf32>
    %35 = arith.divf %33, %34 : vector<8x32xf32>
    %36 = arith.mulf %27, %8 : vector<8x32xf32>
    %37 = arith.mulf %21, %29 : vector<8x32xf32>
    %38 = arith.addf %36, %37 : vector<8x32xf32>
    %39 = math.tanh %38 : vector<8x32xf32>
    %40 = arith.mulf %35, %39 : vector<8x32xf32>
    %cst_22 = arith.constant dense<0.000000e+00> : vector<8x128xf32>
    %41 = tpu.matmul %40, %4, %cst_22 {dimension_numbers = #tpu.dot_dimension_numbers<[1], [0], [0], [1], [0, 0, 1, 1], [], []>} : vector<8x32xf32>, vector<32x128xf32>, vector<8x128xf32> -> vector<8x128xf32>
    %cst_23 = arith.constant dense<0.000000e+00> : vector<8x128xf32>
    %42 = tpu.matmul %9, %5, %cst_23 {dimension_numbers = #tpu.dot_dimension_numbers<[1], [0], [0], [1], [0, 0, 1, 1], [], []>} : vector<8x32xf32>, vector<32x128xf32>, vector<8x128xf32> -> vector<8x128xf32>
    %43 = arith.addf %41, %42 : vector<8x128xf32>
    %44 = vector.broadcast %6 : vector<1x128xf32> to vector<8x128xf32>
    %45 = arith.addf %43, %44 : vector<8x128xf32>
    %46 = vector.extract_strided_slice %45 {offsets = [0, 0], sizes = [8, 32], strides = [1, 1]} : vector<8x128xf32> to vector<8x32xf32>
    %47 = arith.negf %46 : vector<8x32xf32>
    %48 = math.exp %47 : vector<8x32xf32>
    %cst_24 = arith.constant 1.000000e+00 : f32
    %49 = vector.broadcast %cst_24 : f32 to vector<8x32xf32>
    %50 = arith.addf %49, %48 : vector<8x32xf32>
    %51 = arith.divf %49, %50 : vector<8x32xf32>
    %52 = vector.extract_strided_slice %45 {offsets = [0, 32], sizes = [8, 32], strides = [1, 1]} : vector<8x128xf32> to vector<8x32xf32>
    %53 = arith.negf %52 : vector<8x32xf32>
    %54 = math.exp %53 : vector<8x32xf32>
    %cst_25 = arith.constant 1.000000e+00 : f32
    %55 = vector.broadcast %cst_25 : f32 to vector<8x32xf32>
    %56 = arith.addf %55, %54 : vector<8x32xf32>
    %57 = arith.divf %55, %56 : vector<8x32xf32>
    %58 = vector.extract_strided_slice %45 {offsets = [0, 64], sizes = [8, 32], strides = [1, 1]} : vector<8x128xf32> to vector<8x32xf32>
    %59 = math.tanh %58 : vector<8x32xf32>
    %60 = vector.extract_strided_slice %45 {offsets = [0, 96], sizes = [8, 32], strides = [1, 1]} : vector<8x128xf32> to vector<8x32xf32>
    %61 = arith.negf %60 : vector<8x32xf32>
    %62 = math.exp %61 : vector<8x32xf32>
    %cst_26 = arith.constant 1.000000e+00 : f32
    %63 = vector.broadcast %cst_26 : f32 to vector<8x32xf32>
    %64 = arith.addf %63, %62 : vector<8x32xf32>
    %65 = arith.divf %63, %64 : vector<8x32xf32>
    %66 = arith.mulf %57, %10 : vector<8x32xf32>
    %67 = arith.mulf %51, %59 : vector<8x32xf32>
    %68 = arith.addf %66, %67 : vector<8x32xf32>
    %69 = math.tanh %68 : vector<8x32xf32>
    %70 = arith.mulf %65, %69 : vector<8x32xf32>
    %71 = arith.index_cast %c0_i32_16 : i32 to index
    %c0_27 = arith.constant 0 : index
    %c0_28 = arith.constant 0 : index
    %72 = vector.load %arg8[%71, %c0_27, %c0_28] : memref<8x8x32xf32, #tpu.memory_space<vmem>>, vector<1x8x32xf32>
    %73 = vector.shape_cast %72 : vector<1x8x32xf32> to vector<8x32xf32>
    %74 = vector.shape_cast %70 : vector<8x32xf32> to vector<1x8x32xf32>
    tpu.vector_store %arg8[%71, %c0_27, %c0_28], %74 {strides = array<i32>} : memref<8x8x32xf32, #tpu.memory_space<vmem>>, vector<1x8x32xf32>,
    %c1_i32 = arith.constant 1 : i32
    %75 = arith.index_cast %c1_i32 : i32 to index
    %c0_29 = arith.constant 0 : index
    %c0_30 = arith.constant 0 : index
    %76 = vector.load %arg1[%75, %c0_29, %c0_30] : memref<8x8x128xf32, #tpu.memory_space<vmem>>, vector<1x8x128xf32>
    %77 = vector.shape_cast %76 : vector<1x8x128xf32> to vector<8x128xf32>
    %cst_31 = arith.constant dense<0.000000e+00> : vector<8x128xf32>
    %78 = tpu.matmul %40, %3, %cst_31 {dimension_numbers = #tpu.dot_dimension_numbers<[1], [0], [0], [1], [0, 0, 1, 1], [], []>} : vector<8x32xf32>, vector<32x128xf32>, vector<8x128xf32> -> vector<8x128xf32>
    %79 = arith.addf %77, %78 : vector<8x128xf32>
    %80 = vector.extract_strided_slice %79 {offsets = [0, 0], sizes = [8, 32], strides = [1, 1]} : vector<8x128xf32> to vector<8x32xf32>
    %81 = arith.negf %80 : vector<8x32xf32>
    %82 = math.exp %81 : vector<8x32xf32>
    %cst_32 = arith.constant 1.000000e+00 : f32
    %83 = vector.broadcast %cst_32 : f32 to vector<8x32xf32>
    %84 = arith.addf %83, %82 : vector<8x32xf32>
    %85 = arith.divf %83, %84 : vector<8x32xf32>
    %86 = vector.extract_strided_slice %79 {offsets = [0, 32], sizes = [8, 32], strides = [1, 1]} : vector<8x128xf32> to vector<8x32xf32>
    %87 = arith.negf %86 : vector<8x32xf32>
    %88 = math.exp %87 : vector<8x32xf32>
    %cst_33 = arith.constant 1.000000e+00 : f32
    %89 = vector.broadcast %cst_33 : f32 to vector<8x32xf32>
    %90 = arith.addf %89, %88 : vector<8x32xf32>
    %91 = arith.divf %89, %90 : vector<8x32xf32>
    %92 = vector.extract_strided_slice %79 {offsets = [0, 64], sizes = [8, 32], strides = [1, 1]} : vector<8x128xf32> to vector<8x32xf32>
    %93 = math.tanh %92 : vector<8x32xf32>
    %94 = vector.extract_strided_slice %79 {offsets = [0, 96], sizes = [8, 32], strides = [1, 1]} : vector<8x128xf32> to vector<8x32xf32>
    %95 = arith.negf %94 : vector<8x32xf32>
    %96 = math.exp %95 : vector<8x32xf32>
    %cst_34 = arith.constant 1.000000e+00 : f32
    %97 = vector.broadcast %cst_34 : f32 to vector<8x32xf32>
    %98 = arith.addf %97, %96 : vector<8x32xf32>
    %99 = arith.divf %97, %98 : vector<8x32xf32>
    %100 = arith.mulf %91, %38 : vector<8x32xf32>
    %101 = arith.mulf %85, %93 : vector<8x32xf32>
    %102 = arith.addf %100, %101 : vector<8x32xf32>
    %103 = math.tanh %102 : vector<8x32xf32>
    %104 = arith.mulf %99, %103 : vector<8x32xf32>
    %cst_35 = arith.constant dense<0.000000e+00> : vector<8x128xf32>
    %105 = tpu.matmul %104, %4, %cst_35 {dimension_numbers = #tpu.dot_dimension_numbers<[1], [0], [0], [1], [0, 0, 1, 1], [], []>} : vector<8x32xf32>, vector<32x128xf32>, vector<8x128xf32> -> vector<8x128xf32>
    %cst_36 = arith.constant dense<0.000000e+00> : vector<8x128xf32>
    %106 = tpu.matmul %70, %5, %cst_36 {dimension_numbers = #tpu.dot_dimension_numbers<[1], [0], [0], [1], [0, 0, 1, 1], [], []>} : vector<8x32xf32>, vector<32x128xf32>, vector<8x128xf32> -> vector<8x128xf32>
    %107 = arith.addf %105, %106 : vector<8x128xf32>
    %108 = vector.broadcast %6 : vector<1x128xf32> to vector<8x128xf32>
    %109 = arith.addf %107, %108 : vector<8x128xf32>
    %110 = vector.extract_strided_slice %109 {offsets = [0, 0], sizes = [8, 32], strides = [1, 1]} : vector<8x128xf32> to vector<8x32xf32>
    %111 = arith.negf %110 : vector<8x32xf32>
    %112 = math.exp %111 : vector<8x32xf32>
    %cst_37 = arith.constant 1.000000e+00 : f32
    %113 = vector.broadcast %cst_37 : f32 to vector<8x32xf32>
    %114 = arith.addf %113, %112 : vector<8x32xf32>
    %115 = arith.divf %113, %114 : vector<8x32xf32>
    %116 = vector.extract_strided_slice %109 {offsets = [0, 32], sizes = [8, 32], strides = [1, 1]} : vector<8x128xf32> to vector<8x32xf32>
    %117 = arith.negf %116 : vector<8x32xf32>
    %118 = math.exp %117 : vector<8x32xf32>
    %cst_38 = arith.constant 1.000000e+00 : f32
    %119 = vector.broadcast %cst_38 : f32 to vector<8x32xf32>
    %120 = arith.addf %119, %118 : vector<8x32xf32>
    %121 = arith.divf %119, %120 : vector<8x32xf32>
    %122 = vector.extract_strided_slice %109 {offsets = [0, 64], sizes = [8, 32], strides = [1, 1]} : vector<8x128xf32> to vector<8x32xf32>
    %123 = math.tanh %122 : vector<8x32xf32>
    %124 = vector.extract_strided_slice %109 {offsets = [0, 96], sizes = [8, 32], strides = [1, 1]} : vector<8x128xf32> to vector<8x32xf32>
    %125 = arith.negf %124 : vector<8x32xf32>
    %126 = math.exp %125 : vector<8x32xf32>
    %cst_39 = arith.constant 1.000000e+00 : f32
    %127 = vector.broadcast %cst_39 : f32 to vector<8x32xf32>
    %128 = arith.addf %127, %126 : vector<8x32xf32>
    %129 = arith.divf %127, %128 : vector<8x32xf32>
    %130 = arith.mulf %121, %68 : vector<8x32xf32>
    %131 = arith.mulf %115, %123 : vector<8x32xf32>
    %132 = arith.addf %130, %131 : vector<8x32xf32>
    %133 = math.tanh %132 : vector<8x32xf32>
    %134 = arith.mulf %129, %133 : vector<8x32xf32>
    %135 = arith.index_cast %c1_i32 : i32 to index
    %c0_40 = arith.constant 0 : index
    %c0_41 = arith.constant 0 : index
    %136 = vector.load %arg8[%135, %c0_40, %c0_41] : memref<8x8x32xf32, #tpu.memory_space<vmem>>, vector<1x8x32xf32>
    %137 = vector.shape_cast %136 : vector<1x8x32xf32> to vector<8x32xf32>
    %138 = vector.shape_cast %134 : vector<8x32xf32> to vector<1x8x32xf32>
    tpu.vector_store %arg8[%135, %c0_40, %c0_41], %138 {strides = array<i32>} : memref<8x8x32xf32, #tpu.memory_space<vmem>>, vector<1x8x32xf32>,
    %c2_i32 = arith.constant 2 : i32
    %139 = arith.index_cast %c2_i32 : i32 to index
    %c0_42 = arith.constant 0 : index
    %c0_43 = arith.constant 0 : index
    %140 = vector.load %arg1[%139, %c0_42, %c0_43] : memref<8x8x128xf32, #tpu.memory_space<vmem>>, vector<1x8x128xf32>
    %141 = vector.shape_cast %140 : vector<1x8x128xf32> to vector<8x128xf32>
    %cst_44 = arith.constant dense<0.000000e+00> : vector<8x128xf32>
    %142 = tpu.matmul %104, %3, %cst_44 {dimension_numbers = #tpu.dot_dimension_numbers<[1], [0], [0], [1], [0, 0, 1, 1], [], []>} : vector<8x32xf32>, vector<32x128xf32>, vector<8x128xf32> -> vector<8x128xf32>
    %143 = arith.addf %141, %142 : vector<8x128xf32>
    %144 = vector.extract_strided_slice %143 {offsets = [0, 0], sizes = [8, 32], strides = [1, 1]} : vector<8x128xf32> to vector<8x32xf32>
    %145 = arith.negf %144 : vector<8x32xf32>
    %146 = math.exp %145 : vector<8x32xf32>
    %cst_45 = arith.constant 1.000000e+00 : f32
    %147 = vector.broadcast %cst_45 : f32 to vector<8x32xf32>
    %148 = arith.addf %147, %146 : vector<8x32xf32>
    %149 = arith.divf %147, %148 : vector<8x32xf32>
    %150 = vector.extract_strided_slice %143 {offsets = [0, 32], sizes = [8, 32], strides = [1, 1]} : vector<8x128xf32> to vector<8x32xf32>
    %151 = arith.negf %150 : vector<8x32xf32>
    %152 = math.exp %151 : vector<8x32xf32>
    %cst_46 = arith.constant 1.000000e+00 : f32
    %153 = vector.broadcast %cst_46 : f32 to vector<8x32xf32>
    %154 = arith.addf %153, %152 : vector<8x32xf32>
    %155 = arith.divf %153, %154 : vector<8x32xf32>
    %156 = vector.extract_strided_slice %143 {offsets = [0, 64], sizes = [8, 32], strides = [1, 1]} : vector<8x128xf32> to vector<8x32xf32>
    %157 = math.tanh %156 : vector<8x32xf32>
    %158 = vector.extract_strided_slice %143 {offsets = [0, 96], sizes = [8, 32], strides = [1, 1]} : vector<8x128xf32> to vector<8x32xf32>
    %159 = arith.negf %158 : vector<8x32xf32>
    %160 = math.exp %159 : vector<8x32xf32>
    %cst_47 = arith.constant 1.000000e+00 : f32
    %161 = vector.broadcast %cst_47 : f32 to vector<8x32xf32>
    %162 = arith.addf %161, %160 : vector<8x32xf32>
    %163 = arith.divf %161, %162 : vector<8x32xf32>
    %164 = arith.mulf %155, %102 : vector<8x32xf32>
    %165 = arith.mulf %149, %157 : vector<8x32xf32>
    %166 = arith.addf %164, %165 : vector<8x32xf32>
    %167 = math.tanh %166 : vector<8x32xf32>
    %168 = arith.mulf %163, %167 : vector<8x32xf32>
    %cst_48 = arith.constant dense<0.000000e+00> : vector<8x128xf32>
    %169 = tpu.matmul %168, %4, %cst_48 {dimension_numbers = #tpu.dot_dimension_numbers<[1], [0], [0], [1], [0, 0, 1, 1], [], []>} : vector<8x32xf32>, vector<32x128xf32>, vector<8x128xf32> -> vector<8x128xf32>
    %cst_49 = arith.constant dense<0.000000e+00> : vector<8x128xf32>
    %170 = tpu.matmul %134, %5, %cst_49 {dimension_numbers = #tpu.dot_dimension_numbers<[1], [0], [0], [1], [0, 0, 1, 1], [], []>} : vector<8x32xf32>, vector<32x128xf32>, vector<8x128xf32> -> vector<8x128xf32>
    %171 = arith.addf %169, %170 : vector<8x128xf32>
    %172 = vector.broadcast %6 : vector<1x128xf32> to vector<8x128xf32>
    %173 = arith.addf %171, %172 : vector<8x128xf32>
    %174 = vector.extract_strided_slice %173 {offsets = [0, 0], sizes = [8, 32], strides = [1, 1]} : vector<8x128xf32> to vector<8x32xf32>
    %175 = arith.negf %174 : vector<8x32xf32>
    %176 = math.exp %175 : vector<8x32xf32>
    %cst_50 = arith.constant 1.000000e+00 : f32
    %177 = vector.broadcast %cst_50 : f32 to vector<8x32xf32>
    %178 = arith.addf %177, %176 : vector<8x32xf32>
    %179 = arith.divf %177, %178 : vector<8x32xf32>
    %180 = vector.extract_strided_slice %173 {offsets = [0, 32], sizes = [8, 32], strides = [1, 1]} : vector<8x128xf32> to vector<8x32xf32>
    %181 = arith.negf %180 : vector<8x32xf32>
    %182 = math.exp %181 : vector<8x32xf32>
    %cst_51 = arith.constant 1.000000e+00 : f32
    %183 = vector.broadcast %cst_51 : f32 to vector<8x32xf32>
    %184 = arith.addf %183, %182 : vector<8x32xf32>
    %185 = arith.divf %183, %184 : vector<8x32xf32>
    %186 = vector.extract_strided_slice %173 {offsets = [0, 64], sizes = [8, 32], strides = [1, 1]} : vector<8x128xf32> to vector<8x32xf32>
    %187 = math.tanh %186 : vector<8x32xf32>
    %188 = vector.extract_strided_slice %173 {offsets = [0, 96], sizes = [8, 32], strides = [1, 1]} : vector<8x128xf32> to vector<8x32xf32>
    %189 = arith.negf %188 : vector<8x32xf32>
    %190 = math.exp %189 : vector<8x32xf32>
    %cst_52 = arith.constant 1.000000e+00 : f32
    %191 = vector.broadcast %cst_52 : f32 to vector<8x32xf32>
    %192 = arith.addf %191, %190 : vector<8x32xf32>
    %193 = arith.divf %191, %192 : vector<8x32xf32>
    %194 = arith.mulf %185, %132 : vector<8x32xf32>
    %195 = arith.mulf %179, %187 : vector<8x32xf32>
    %196 = arith.addf %194, %195 : vector<8x32xf32>
    %197 = math.tanh %196 : vector<8x32xf32>
    %198 = arith.mulf %193, %197 : vector<8x32xf32>
    %199 = arith.index_cast %c2_i32 : i32 to index
    %c0_53 = arith.constant 0 : index
    %c0_54 = arith.constant 0 : index
    %200 = vector.load %arg8[%199, %c0_53, %c0_54] : memref<8x8x32xf32, #tpu.memory_space<vmem>>, vector<1x8x32xf32>
    %201 = vector.shape_cast %200 : vector<1x8x32xf32> to vector<8x32xf32>
    %202 = vector.shape_cast %198 : vector<8x32xf32> to vector<1x8x32xf32>
    tpu.vector_store %arg8[%199, %c0_53, %c0_54], %202 {strides = array<i32>} : memref<8x8x32xf32, #tpu.memory_space<vmem>>, vector<1x8x32xf32>,
    %c3_i32 = arith.constant 3 : i32
    %203 = arith.index_cast %c3_i32 : i32 to index
    %c0_55 = arith.constant 0 : index
    %c0_56 = arith.constant 0 : index
    %204 = vector.load %arg1[%203, %c0_55, %c0_56] : memref<8x8x128xf32, #tpu.memory_space<vmem>>, vector<1x8x128xf32>
    %205 = vector.shape_cast %204 : vector<1x8x128xf32> to vector<8x128xf32>
    %cst_57 = arith.constant dense<0.000000e+00> : vector<8x128xf32>
    %206 = tpu.matmul %168, %3, %cst_57 {dimension_numbers = #tpu.dot_dimension_numbers<[1], [0], [0], [1], [0, 0, 1, 1], [], []>} : vector<8x32xf32>, vector<32x128xf32>, vector<8x128xf32> -> vector<8x128xf32>
    %207 = arith.addf %205, %206 : vector<8x128xf32>
    %208 = vector.extract_strided_slice %207 {offsets = [0, 0], sizes = [8, 32], strides = [1, 1]} : vector<8x128xf32> to vector<8x32xf32>
    %209 = arith.negf %208 : vector<8x32xf32>
    %210 = math.exp %209 : vector<8x32xf32>
    %cst_58 = arith.constant 1.000000e+00 : f32
    %211 = vector.broadcast %cst_58 : f32 to vector<8x32xf32>
    %212 = arith.addf %211, %210 : vector<8x32xf32>
    %213 = arith.divf %211, %212 : vector<8x32xf32>
    %214 = vector.extract_strided_slice %207 {offsets = [0, 32], sizes = [8, 32], strides = [1, 1]} : vector<8x128xf32> to vector<8x32xf32>
    %215 = arith.negf %214 : vector<8x32xf32>
    %216 = math.exp %215 : vector<8x32xf32>
    %cst_59 = arith.constant 1.000000e+00 : f32
    %217 = vector.broadcast %cst_59 : f32 to vector<8x32xf32>
    %218 = arith.addf %217, %216 : vector<8x32xf32>
    %219 = arith.divf %217, %218 : vector<8x32xf32>
    %220 = vector.extract_strided_slice %207 {offsets = [0, 64], sizes = [8, 32], strides = [1, 1]} : vector<8x128xf32> to vector<8x32xf32>
    %221 = math.tanh %220 : vector<8x32xf32>
    %222 = vector.extract_strided_slice %207 {offsets = [0, 96], sizes = [8, 32], strides = [1, 1]} : vector<8x128xf32> to vector<8x32xf32>
    %223 = arith.negf %222 : vector<8x32xf32>
    %224 = math.exp %223 : vector<8x32xf32>
    %cst_60 = arith.constant 1.000000e+00 : f32
    %225 = vector.broadcast %cst_60 : f32 to vector<8x32xf32>
    %226 = arith.addf %225, %224 : vector<8x32xf32>
    %227 = arith.divf %225, %226 : vector<8x32xf32>
    %228 = arith.mulf %219, %166 : vector<8x32xf32>
    %229 = arith.mulf %213, %221 : vector<8x32xf32>
    %230 = arith.addf %228, %229 : vector<8x32xf32>
    %231 = math.tanh %230 : vector<8x32xf32>
    %232 = arith.mulf %227, %231 : vector<8x32xf32>
    %cst_61 = arith.constant dense<0.000000e+00> : vector<8x128xf32>
    %233 = tpu.matmul %232, %4, %cst_61 {dimension_numbers = #tpu.dot_dimension_numbers<[1], [0], [0], [1], [0, 0, 1, 1], [], []>} : vector<8x32xf32>, vector<32x128xf32>, vector<8x128xf32> -> vector<8x128xf32>
    %cst_62 = arith.constant dense<0.000000e+00> : vector<8x128xf32>
    %234 = tpu.matmul %198, %5, %cst_62 {dimension_numbers = #tpu.dot_dimension_numbers<[1], [0], [0], [1], [0, 0, 1, 1], [], []>} : vector<8x32xf32>, vector<32x128xf32>, vector<8x128xf32> -> vector<8x128xf32>
    %235 = arith.addf %233, %234 : vector<8x128xf32>
    %236 = vector.broadcast %6 : vector<1x128xf32> to vector<8x128xf32>
    %237 = arith.addf %235, %236 : vector<8x128xf32>
    %238 = vector.extract_strided_slice %237 {offsets = [0, 0], sizes = [8, 32], strides = [1, 1]} : vector<8x128xf32> to vector<8x32xf32>
    %239 = arith.negf %238 : vector<8x32xf32>
    %240 = math.exp %239 : vector<8x32xf32>
    %cst_63 = arith.constant 1.000000e+00 : f32
    %241 = vector.broadcast %cst_63 : f32 to vector<8x32xf32>
    %242 = arith.addf %241, %240 : vector<8x32xf32>
    %243 = arith.divf %241, %242 : vector<8x32xf32>
    %244 = vector.extract_strided_slice %237 {offsets = [0, 32], sizes = [8, 32], strides = [1, 1]} : vector<8x128xf32> to vector<8x32xf32>
    %245 = arith.negf %244 : vector<8x32xf32>
    %246 = math.exp %245 : vector<8x32xf32>
    %cst_64 = arith.constant 1.000000e+00 : f32
    %247 = vector.broadcast %cst_64 : f32 to vector<8x32xf32>
    %248 = arith.addf %247, %246 : vector<8x32xf32>
    %249 = arith.divf %247, %248 : vector<8x32xf32>
    %250 = vector.extract_strided_slice %237 {offsets = [0, 64], sizes = [8, 32], strides = [1, 1]} : vector<8x128xf32> to vector<8x32xf32>
    %251 = math.tanh %250 : vector<8x32xf32>
    %252 = vector.extract_strided_slice %237 {offsets = [0, 96], sizes = [8, 32], strides = [1, 1]} : vector<8x128xf32> to vector<8x32xf32>
    %253 = arith.negf %252 : vector<8x32xf32>
    %254 = math.exp %253 : vector<8x32xf32>
    %cst_65 = arith.constant 1.000000e+00 : f32
    %255 = vector.broadcast %cst_65 : f32 to vector<8x32xf32>
    %256 = arith.addf %255, %254 : vector<8x32xf32>
    %257 = arith.divf %255, %256 : vector<8x32xf32>
    %258 = arith.mulf %249, %196 : vector<8x32xf32>
    %259 = arith.mulf %243, %251 : vector<8x32xf32>
    %260 = arith.addf %258, %259 : vector<8x32xf32>
    %261 = math.tanh %260 : vector<8x32xf32>
    %262 = arith.mulf %257, %261 : vector<8x32xf32>
    %263 = arith.index_cast %c3_i32 : i32 to index
    %c0_66 = arith.constant 0 : index
    %c0_67 = arith.constant 0 : index
    %264 = vector.load %arg8[%263, %c0_66, %c0_67] : memref<8x8x32xf32, #tpu.memory_space<vmem>>, vector<1x8x32xf32>
    %265 = vector.shape_cast %264 : vector<1x8x32xf32> to vector<8x32xf32>
    %266 = vector.shape_cast %262 : vector<8x32xf32> to vector<1x8x32xf32>
    tpu.vector_store %arg8[%263, %c0_66, %c0_67], %266 {strides = array<i32>} : memref<8x8x32xf32, #tpu.memory_space<vmem>>, vector<1x8x32xf32>,
    %c4_i32 = arith.constant 4 : i32
    %267 = arith.index_cast %c4_i32 : i32 to index
    %c0_68 = arith.constant 0 : index
    %c0_69 = arith.constant 0 : index
    %268 = vector.load %arg1[%267, %c0_68, %c0_69] : memref<8x8x128xf32, #tpu.memory_space<vmem>>, vector<1x8x128xf32>
    %269 = vector.shape_cast %268 : vector<1x8x128xf32> to vector<8x128xf32>
    %cst_70 = arith.constant dense<0.000000e+00> : vector<8x128xf32>
    %270 = tpu.matmul %232, %3, %cst_70 {dimension_numbers = #tpu.dot_dimension_numbers<[1], [0], [0], [1], [0, 0, 1, 1], [], []>} : vector<8x32xf32>, vector<32x128xf32>, vector<8x128xf32> -> vector<8x128xf32>
    %271 = arith.addf %269, %270 : vector<8x128xf32>
    %272 = vector.extract_strided_slice %271 {offsets = [0, 0], sizes = [8, 32], strides = [1, 1]} : vector<8x128xf32> to vector<8x32xf32>
    %273 = arith.negf %272 : vector<8x32xf32>
    %274 = math.exp %273 : vector<8x32xf32>
    %cst_71 = arith.constant 1.000000e+00 : f32
    %275 = vector.broadcast %cst_71 : f32 to vector<8x32xf32>
    %276 = arith.addf %275, %274 : vector<8x32xf32>
    %277 = arith.divf %275, %276 : vector<8x32xf32>
    %278 = vector.extract_strided_slice %271 {offsets = [0, 32], sizes = [8, 32], strides = [1, 1]} : vector<8x128xf32> to vector<8x32xf32>
    %279 = arith.negf %278 : vector<8x32xf32>
    %280 = math.exp %279 : vector<8x32xf32>
    %cst_72 = arith.constant 1.000000e+00 : f32
    %281 = vector.broadcast %cst_72 : f32 to vector<8x32xf32>
    %282 = arith.addf %281, %280 : vector<8x32xf32>
    %283 = arith.divf %281, %282 : vector<8x32xf32>
    %284 = vector.extract_strided_slice %271 {offsets = [0, 64], sizes = [8, 32], strides = [1, 1]} : vector<8x128xf32> to vector<8x32xf32>
    %285 = math.tanh %284 : vector<8x32xf32>
    %286 = vector.extract_strided_slice %271 {offsets = [0, 96], sizes = [8, 32], strides = [1, 1]} : vector<8x128xf32> to vector<8x32xf32>
    %287 = arith.negf %286 : vector<8x32xf32>
    %288 = math.exp %287 : vector<8x32xf32>
    %cst_73 = arith.constant 1.000000e+00 : f32
    %289 = vector.broadcast %cst_73 : f32 to vector<8x32xf32>
    %290 = arith.addf %289, %288 : vector<8x32xf32>
    %291 = arith.divf %289, %290 : vector<8x32xf32>
    %292 = arith.mulf %283, %230 : vector<8x32xf32>
    %293 = arith.mulf %277, %285 : vector<8x32xf32>
    %294 = arith.addf %292, %293 : vector<8x32xf32>
    %295 = math.tanh %294 : vector<8x32xf32>
    %296 = arith.mulf %291, %295 : vector<8x32xf32>
    %cst_74 = arith.constant dense<0.000000e+00> : vector<8x128xf32>
    %297 = tpu.matmul %296, %4, %cst_74 {dimension_numbers = #tpu.dot_dimension_numbers<[1], [0], [0], [1], [0, 0, 1, 1], [], []>} : vector<8x32xf32>, vector<32x128xf32>, vector<8x128xf32> -> vector<8x128xf32>
    %cst_75 = arith.constant dense<0.000000e+00> : vector<8x128xf32>
    %298 = tpu.matmul %262, %5, %cst_75 {dimension_numbers = #tpu.dot_dimension_numbers<[1], [0], [0], [1], [0, 0, 1, 1], [], []>} : vector<8x32xf32>, vector<32x128xf32>, vector<8x128xf32> -> vector<8x128xf32>
    %299 = arith.addf %297, %298 : vector<8x128xf32>
    %300 = vector.broadcast %6 : vector<1x128xf32> to vector<8x128xf32>
    %301 = arith.addf %299, %300 : vector<8x128xf32>
    %302 = vector.extract_strided_slice %301 {offsets = [0, 0], sizes = [8, 32], strides = [1, 1]} : vector<8x128xf32> to vector<8x32xf32>
    %303 = arith.negf %302 : vector<8x32xf32>
    %304 = math.exp %303 : vector<8x32xf32>
    %cst_76 = arith.constant 1.000000e+00 : f32
    %305 = vector.broadcast %cst_76 : f32 to vector<8x32xf32>
    %306 = arith.addf %305, %304 : vector<8x32xf32>
    %307 = arith.divf %305, %306 : vector<8x32xf32>
    %308 = vector.extract_strided_slice %301 {offsets = [0, 32], sizes = [8, 32], strides = [1, 1]} : vector<8x128xf32> to vector<8x32xf32>
    %309 = arith.negf %308 : vector<8x32xf32>
    %310 = math.exp %309 : vector<8x32xf32>
    %cst_77 = arith.constant 1.000000e+00 : f32
    %311 = vector.broadcast %cst_77 : f32 to vector<8x32xf32>
    %312 = arith.addf %311, %310 : vector<8x32xf32>
    %313 = arith.divf %311, %312 : vector<8x32xf32>
    %314 = vector.extract_strided_slice %301 {offsets = [0, 64], sizes = [8, 32], strides = [1, 1]} : vector<8x128xf32> to vector<8x32xf32>
    %315 = math.tanh %314 : vector<8x32xf32>
    %316 = vector.extract_strided_slice %301 {offsets = [0, 96], sizes = [8, 32], strides = [1, 1]} : vector<8x128xf32> to vector<8x32xf32>
    %317 = arith.negf %316 : vector<8x32xf32>
    %318 = math.exp %317 : vector<8x32xf32>
    %cst_78 = arith.constant 1.000000e+00 : f32
    %319 = vector.broadcast %cst_78 : f32 to vector<8x32xf32>
    %320 = arith.addf %319, %318 : vector<8x32xf32>
    %321 = arith.divf %319, %320 : vector<8x32xf32>
    %322 = arith.mulf %313, %260 : vector<8x32xf32>
    %323 = arith.mulf %307, %315 : vector<8x32xf32>
    %324 = arith.addf %322, %323 : vector<8x32xf32>
    %325 = math.tanh %324 : vector<8x32xf32>
    %326 = arith.mulf %321, %325 : vector<8x32xf32>
    %327 = arith.index_cast %c4_i32 : i32 to index
    %c0_79 = arith.constant 0 : index
    %c0_80 = arith.constant 0 : index
    %328 = vector.load %arg8[%327, %c0_79, %c0_80] : memref<8x8x32xf32, #tpu.memory_space<vmem>>, vector<1x8x32xf32>
    %329 = vector.shape_cast %328 : vector<1x8x32xf32> to vector<8x32xf32>
    %330 = vector.shape_cast %326 : vector<8x32xf32> to vector<1x8x32xf32>
    tpu.vector_store %arg8[%327, %c0_79, %c0_80], %330 {strides = array<i32>} : memref<8x8x32xf32, #tpu.memory_space<vmem>>, vector<1x8x32xf32>,
    %c5_i32 = arith.constant 5 : i32
    %331 = arith.index_cast %c5_i32 : i32 to index
    %c0_81 = arith.constant 0 : index
    %c0_82 = arith.constant 0 : index
    %332 = vector.load %arg1[%331, %c0_81, %c0_82] : memref<8x8x128xf32, #tpu.memory_space<vmem>>, vector<1x8x128xf32>
    %333 = vector.shape_cast %332 : vector<1x8x128xf32> to vector<8x128xf32>
    %cst_83 = arith.constant dense<0.000000e+00> : vector<8x128xf32>
    %334 = tpu.matmul %296, %3, %cst_83 {dimension_numbers = #tpu.dot_dimension_numbers<[1], [0], [0], [1], [0, 0, 1, 1], [], []>} : vector<8x32xf32>, vector<32x128xf32>, vector<8x128xf32> -> vector<8x128xf32>
    %335 = arith.addf %333, %334 : vector<8x128xf32>
    %336 = vector.extract_strided_slice %335 {offsets = [0, 0], sizes = [8, 32], strides = [1, 1]} : vector<8x128xf32> to vector<8x32xf32>
    %337 = arith.negf %336 : vector<8x32xf32>
    %338 = math.exp %337 : vector<8x32xf32>
    %cst_84 = arith.constant 1.000000e+00 : f32
    %339 = vector.broadcast %cst_84 : f32 to vector<8x32xf32>
    %340 = arith.addf %339, %338 : vector<8x32xf32>
    %341 = arith.divf %339, %340 : vector<8x32xf32>
    %342 = vector.extract_strided_slice %335 {offsets = [0, 32], sizes = [8, 32], strides = [1, 1]} : vector<8x128xf32> to vector<8x32xf32>
    %343 = arith.negf %342 : vector<8x32xf32>
    %344 = math.exp %343 : vector<8x32xf32>
    %cst_85 = arith.constant 1.000000e+00 : f32
    %345 = vector.broadcast %cst_85 : f32 to vector<8x32xf32>
    %346 = arith.addf %345, %344 : vector<8x32xf32>
    %347 = arith.divf %345, %346 : vector<8x32xf32>
    %348 = vector.extract_strided_slice %335 {offsets = [0, 64], sizes = [8, 32], strides = [1, 1]} : vector<8x128xf32> to vector<8x32xf32>
    %349 = math.tanh %348 : vector<8x32xf32>
    %350 = vector.extract_strided_slice %335 {offsets = [0, 96], sizes = [8, 32], strides = [1, 1]} : vector<8x128xf32> to vector<8x32xf32>
    %351 = arith.negf %350 : vector<8x32xf32>
    %352 = math.exp %351 : vector<8x32xf32>
    %cst_86 = arith.constant 1.000000e+00 : f32
    %353 = vector.broadcast %cst_86 : f32 to vector<8x32xf32>
    %354 = arith.addf %353, %352 : vector<8x32xf32>
    %355 = arith.divf %353, %354 : vector<8x32xf32>
    %356 = arith.mulf %347, %294 : vector<8x32xf32>
    %357 = arith.mulf %341, %349 : vector<8x32xf32>
    %358 = arith.addf %356, %357 : vector<8x32xf32>
    %359 = math.tanh %358 : vector<8x32xf32>
    %360 = arith.mulf %355, %359 : vector<8x32xf32>
    %cst_87 = arith.constant dense<0.000000e+00> : vector<8x128xf32>
    %361 = tpu.matmul %360, %4, %cst_87 {dimension_numbers = #tpu.dot_dimension_numbers<[1], [0], [0], [1], [0, 0, 1, 1], [], []>} : vector<8x32xf32>, vector<32x128xf32>, vector<8x128xf32> -> vector<8x128xf32>
    %cst_88 = arith.constant dense<0.000000e+00> : vector<8x128xf32>
    %362 = tpu.matmul %326, %5, %cst_88 {dimension_numbers = #tpu.dot_dimension_numbers<[1], [0], [0], [1], [0, 0, 1, 1], [], []>} : vector<8x32xf32>, vector<32x128xf32>, vector<8x128xf32> -> vector<8x128xf32>
    %363 = arith.addf %361, %362 : vector<8x128xf32>
    %364 = vector.broadcast %6 : vector<1x128xf32> to vector<8x128xf32>
    %365 = arith.addf %363, %364 : vector<8x128xf32>
    %366 = vector.extract_strided_slice %365 {offsets = [0, 0], sizes = [8, 32], strides = [1, 1]} : vector<8x128xf32> to vector<8x32xf32>
    %367 = arith.negf %366 : vector<8x32xf32>
    %368 = math.exp %367 : vector<8x32xf32>
    %cst_89 = arith.constant 1.000000e+00 : f32
    %369 = vector.broadcast %cst_89 : f32 to vector<8x32xf32>
    %370 = arith.addf %369, %368 : vector<8x32xf32>
    %371 = arith.divf %369, %370 : vector<8x32xf32>
    %372 = vector.extract_strided_slice %365 {offsets = [0, 32], sizes = [8, 32], strides = [1, 1]} : vector<8x128xf32> to vector<8x32xf32>
    %373 = arith.negf %372 : vector<8x32xf32>
    %374 = math.exp %373 : vector<8x32xf32>
    %cst_90 = arith.constant 1.000000e+00 : f32
    %375 = vector.broadcast %cst_90 : f32 to vector<8x32xf32>
    %376 = arith.addf %375, %374 : vector<8x32xf32>
    %377 = arith.divf %375, %376 : vector<8x32xf32>
    %378 = vector.extract_strided_slice %365 {offsets = [0, 64], sizes = [8, 32], strides = [1, 1]} : vector<8x128xf32> to vector<8x32xf32>
    %379 = math.tanh %378 : vector<8x32xf32>
    %380 = vector.extract_strided_slice %365 {offsets = [0, 96], sizes = [8, 32], strides = [1, 1]} : vector<8x128xf32> to vector<8x32xf32>
    %381 = arith.negf %380 : vector<8x32xf32>
    %382 = math.exp %381 : vector<8x32xf32>
    %cst_91 = arith.constant 1.000000e+00 : f32
    %383 = vector.broadcast %cst_91 : f32 to vector<8x32xf32>
    %384 = arith.addf %383, %382 : vector<8x32xf32>
    %385 = arith.divf %383, %384 : vector<8x32xf32>
    %386 = arith.mulf %377, %324 : vector<8x32xf32>
    %387 = arith.mulf %371, %379 : vector<8x32xf32>
    %388 = arith.addf %386, %387 : vector<8x32xf32>
    %389 = math.tanh %388 : vector<8x32xf32>
    %390 = arith.mulf %385, %389 : vector<8x32xf32>
    %391 = arith.index_cast %c5_i32 : i32 to index
    %c0_92 = arith.constant 0 : index
    %c0_93 = arith.constant 0 : index
    %392 = vector.load %arg8[%391, %c0_92, %c0_93] : memref<8x8x32xf32, #tpu.memory_space<vmem>>, vector<1x8x32xf32>
    %393 = vector.shape_cast %392 : vector<1x8x32xf32> to vector<8x32xf32>
    %394 = vector.shape_cast %390 : vector<8x32xf32> to vector<1x8x32xf32>
    tpu.vector_store %arg8[%391, %c0_92, %c0_93], %394 {strides = array<i32>} : memref<8x8x32xf32, #tpu.memory_space<vmem>>, vector<1x8x32xf32>,
    %c6_i32 = arith.constant 6 : i32
    %395 = arith.index_cast %c6_i32 : i32 to index
    %c0_94 = arith.constant 0 : index
    %c0_95 = arith.constant 0 : index
    %396 = vector.load %arg1[%395, %c0_94, %c0_95] : memref<8x8x128xf32, #tpu.memory_space<vmem>>, vector<1x8x128xf32>
    %397 = vector.shape_cast %396 : vector<1x8x128xf32> to vector<8x128xf32>
    %cst_96 = arith.constant dense<0.000000e+00> : vector<8x128xf32>
    %398 = tpu.matmul %360, %3, %cst_96 {dimension_numbers = #tpu.dot_dimension_numbers<[1], [0], [0], [1], [0, 0, 1, 1], [], []>} : vector<8x32xf32>, vector<32x128xf32>, vector<8x128xf32> -> vector<8x128xf32>
    %399 = arith.addf %397, %398 : vector<8x128xf32>
    %400 = vector.extract_strided_slice %399 {offsets = [0, 0], sizes = [8, 32], strides = [1, 1]} : vector<8x128xf32> to vector<8x32xf32>
    %401 = arith.negf %400 : vector<8x32xf32>
    %402 = math.exp %401 : vector<8x32xf32>
    %cst_97 = arith.constant 1.000000e+00 : f32
    %403 = vector.broadcast %cst_97 : f32 to vector<8x32xf32>
    %404 = arith.addf %403, %402 : vector<8x32xf32>
    %405 = arith.divf %403, %404 : vector<8x32xf32>
    %406 = vector.extract_strided_slice %399 {offsets = [0, 32], sizes = [8, 32], strides = [1, 1]} : vector<8x128xf32> to vector<8x32xf32>
    %407 = arith.negf %406 : vector<8x32xf32>
    %408 = math.exp %407 : vector<8x32xf32>
    %cst_98 = arith.constant 1.000000e+00 : f32
    %409 = vector.broadcast %cst_98 : f32 to vector<8x32xf32>
    %410 = arith.addf %409, %408 : vector<8x32xf32>
    %411 = arith.divf %409, %410 : vector<8x32xf32>
    %412 = vector.extract_strided_slice %399 {offsets = [0, 64], sizes = [8, 32], strides = [1, 1]} : vector<8x128xf32> to vector<8x32xf32>
    %413 = math.tanh %412 : vector<8x32xf32>
    %414 = vector.extract_strided_slice %399 {offsets = [0, 96], sizes = [8, 32], strides = [1, 1]} : vector<8x128xf32> to vector<8x32xf32>
    %415 = arith.negf %414 : vector<8x32xf32>
    %416 = math.exp %415 : vector<8x32xf32>
    %cst_99 = arith.constant 1.000000e+00 : f32
    %417 = vector.broadcast %cst_99 : f32 to vector<8x32xf32>
    %418 = arith.addf %417, %416 : vector<8x32xf32>
    %419 = arith.divf %417, %418 : vector<8x32xf32>
    %420 = arith.mulf %411, %358 : vector<8x32xf32>
    %421 = arith.mulf %405, %413 : vector<8x32xf32>
    %422 = arith.addf %420, %421 : vector<8x32xf32>
    %423 = math.tanh %422 : vector<8x32xf32>
    %424 = arith.mulf %419, %423 : vector<8x32xf32>
    %cst_100 = arith.constant dense<0.000000e+00> : vector<8x128xf32>
    %425 = tpu.matmul %424, %4, %cst_100 {dimension_numbers = #tpu.dot_dimension_numbers<[1], [0], [0], [1], [0, 0, 1, 1], [], []>} : vector<8x32xf32>, vector<32x128xf32>, vector<8x128xf32> -> vector<8x128xf32>
    %cst_101 = arith.constant dense<0.000000e+00> : vector<8x128xf32>
    %426 = tpu.matmul %390, %5, %cst_101 {dimension_numbers = #tpu.dot_dimension_numbers<[1], [0], [0], [1], [0, 0, 1, 1], [], []>} : vector<8x32xf32>, vector<32x128xf32>, vector<8x128xf32> -> vector<8x128xf32>
    %427 = arith.addf %425, %426 : vector<8x128xf32>
    %428 = vector.broadcast %6 : vector<1x128xf32> to vector<8x128xf32>
    %429 = arith.addf %427, %428 : vector<8x128xf32>
    %430 = vector.extract_strided_slice %429 {offsets = [0, 0], sizes = [8, 32], strides = [1, 1]} : vector<8x128xf32> to vector<8x32xf32>
    %431 = arith.negf %430 : vector<8x32xf32>
    %432 = math.exp %431 : vector<8x32xf32>
    %cst_102 = arith.constant 1.000000e+00 : f32
    %433 = vector.broadcast %cst_102 : f32 to vector<8x32xf32>
    %434 = arith.addf %433, %432 : vector<8x32xf32>
    %435 = arith.divf %433, %434 : vector<8x32xf32>
    %436 = vector.extract_strided_slice %429 {offsets = [0, 32], sizes = [8, 32], strides = [1, 1]} : vector<8x128xf32> to vector<8x32xf32>
    %437 = arith.negf %436 : vector<8x32xf32>
    %438 = math.exp %437 : vector<8x32xf32>
    %cst_103 = arith.constant 1.000000e+00 : f32
    %439 = vector.broadcast %cst_103 : f32 to vector<8x32xf32>
    %440 = arith.addf %439, %438 : vector<8x32xf32>
    %441 = arith.divf %439, %440 : vector<8x32xf32>
    %442 = vector.extract_strided_slice %429 {offsets = [0, 64], sizes = [8, 32], strides = [1, 1]} : vector<8x128xf32> to vector<8x32xf32>
    %443 = math.tanh %442 : vector<8x32xf32>
    %444 = vector.extract_strided_slice %429 {offsets = [0, 96], sizes = [8, 32], strides = [1, 1]} : vector<8x128xf32> to vector<8x32xf32>
    %445 = arith.negf %444 : vector<8x32xf32>
    %446 = math.exp %445 : vector<8x32xf32>
    %cst_104 = arith.constant 1.000000e+00 : f32
    %447 = vector.broadcast %cst_104 : f32 to vector<8x32xf32>
    %448 = arith.addf %447, %446 : vector<8x32xf32>
    %449 = arith.divf %447, %448 : vector<8x32xf32>
    %450 = arith.mulf %441, %388 : vector<8x32xf32>
    %451 = arith.mulf %435, %443 : vector<8x32xf32>
    %452 = arith.addf %450, %451 : vector<8x32xf32>
    %453 = math.tanh %452 : vector<8x32xf32>
    %454 = arith.mulf %449, %453 : vector<8x32xf32>
    %455 = arith.index_cast %c6_i32 : i32 to index
    %c0_105 = arith.constant 0 : index
    %c0_106 = arith.constant 0 : index
    %456 = vector.load %arg8[%455, %c0_105, %c0_106] : memref<8x8x32xf32, #tpu.memory_space<vmem>>, vector<1x8x32xf32>
    %457 = vector.shape_cast %456 : vector<1x8x32xf32> to vector<8x32xf32>
    %458 = vector.shape_cast %454 : vector<8x32xf32> to vector<1x8x32xf32>
    tpu.vector_store %arg8[%455, %c0_105, %c0_106], %458 {strides = array<i32>} : memref<8x8x32xf32, #tpu.memory_space<vmem>>, vector<1x8x32xf32>,
    %c7_i32 = arith.constant 7 : i32
    %459 = arith.index_cast %c7_i32 : i32 to index
    %c0_107 = arith.constant 0 : index
    %c0_108 = arith.constant 0 : index
    %460 = vector.load %arg1[%459, %c0_107, %c0_108] : memref<8x8x128xf32, #tpu.memory_space<vmem>>, vector<1x8x128xf32>
    %461 = vector.shape_cast %460 : vector<1x8x128xf32> to vector<8x128xf32>
    %cst_109 = arith.constant dense<0.000000e+00> : vector<8x128xf32>
    %462 = tpu.matmul %424, %3, %cst_109 {dimension_numbers = #tpu.dot_dimension_numbers<[1], [0], [0], [1], [0, 0, 1, 1], [], []>} : vector<8x32xf32>, vector<32x128xf32>, vector<8x128xf32> -> vector<8x128xf32>
    %463 = arith.addf %461, %462 : vector<8x128xf32>
    %464 = vector.extract_strided_slice %463 {offsets = [0, 0], sizes = [8, 32], strides = [1, 1]} : vector<8x128xf32> to vector<8x32xf32>
    %465 = arith.negf %464 : vector<8x32xf32>
    %466 = math.exp %465 : vector<8x32xf32>
    %cst_110 = arith.constant 1.000000e+00 : f32
    %467 = vector.broadcast %cst_110 : f32 to vector<8x32xf32>
    %468 = arith.addf %467, %466 : vector<8x32xf32>
    %469 = arith.divf %467, %468 : vector<8x32xf32>
    %470 = vector.extract_strided_slice %463 {offsets = [0, 32], sizes = [8, 32], strides = [1, 1]} : vector<8x128xf32> to vector<8x32xf32>
    %471 = arith.negf %470 : vector<8x32xf32>
    %472 = math.exp %471 : vector<8x32xf32>
    %cst_111 = arith.constant 1.000000e+00 : f32
    %473 = vector.broadcast %cst_111 : f32 to vector<8x32xf32>
    %474 = arith.addf %473, %472 : vector<8x32xf32>
    %475 = arith.divf %473, %474 : vector<8x32xf32>
    %476 = vector.extract_strided_slice %463 {offsets = [0, 64], sizes = [8, 32], strides = [1, 1]} : vector<8x128xf32> to vector<8x32xf32>
    %477 = math.tanh %476 : vector<8x32xf32>
    %478 = vector.extract_strided_slice %463 {offsets = [0, 96], sizes = [8, 32], strides = [1, 1]} : vector<8x128xf32> to vector<8x32xf32>
    %479 = arith.negf %478 : vector<8x32xf32>
    %480 = math.exp %479 : vector<8x32xf32>
    %cst_112 = arith.constant 1.000000e+00 : f32
    %481 = vector.broadcast %cst_112 : f32 to vector<8x32xf32>
    %482 = arith.addf %481, %480 : vector<8x32xf32>
    %483 = arith.divf %481, %482 : vector<8x32xf32>
    %484 = arith.mulf %475, %422 : vector<8x32xf32>
    %485 = arith.mulf %469, %477 : vector<8x32xf32>
    %486 = arith.addf %484, %485 : vector<8x32xf32>
    %487 = math.tanh %486 : vector<8x32xf32>
    %488 = arith.mulf %483, %487 : vector<8x32xf32>
    %cst_113 = arith.constant dense<0.000000e+00> : vector<8x128xf32>
    %489 = tpu.matmul %488, %4, %cst_113 {dimension_numbers = #tpu.dot_dimension_numbers<[1], [0], [0], [1], [0, 0, 1, 1], [], []>} : vector<8x32xf32>, vector<32x128xf32>, vector<8x128xf32> -> vector<8x128xf32>
    %cst_114 = arith.constant dense<0.000000e+00> : vector<8x128xf32>
    %490 = tpu.matmul %454, %5, %cst_114 {dimension_numbers = #tpu.dot_dimension_numbers<[1], [0], [0], [1], [0, 0, 1, 1], [], []>} : vector<8x32xf32>, vector<32x128xf32>, vector<8x128xf32> -> vector<8x128xf32>
    %491 = arith.addf %489, %490 : vector<8x128xf32>
    %492 = vector.broadcast %6 : vector<1x128xf32> to vector<8x128xf32>
    %493 = arith.addf %491, %492 : vector<8x128xf32>
    %494 = vector.extract_strided_slice %493 {offsets = [0, 0], sizes = [8, 32], strides = [1, 1]} : vector<8x128xf32> to vector<8x32xf32>
    %495 = arith.negf %494 : vector<8x32xf32>
    %496 = math.exp %495 : vector<8x32xf32>
    %cst_115 = arith.constant 1.000000e+00 : f32
    %497 = vector.broadcast %cst_115 : f32 to vector<8x32xf32>
    %498 = arith.addf %497, %496 : vector<8x32xf32>
    %499 = arith.divf %497, %498 : vector<8x32xf32>
    %500 = vector.extract_strided_slice %493 {offsets = [0, 32], sizes = [8, 32], strides = [1, 1]} : vector<8x128xf32> to vector<8x32xf32>
    %501 = arith.negf %500 : vector<8x32xf32>
    %502 = math.exp %501 : vector<8x32xf32>
    %cst_116 = arith.constant 1.000000e+00 : f32
    %503 = vector.broadcast %cst_116 : f32 to vector<8x32xf32>
    %504 = arith.addf %503, %502 : vector<8x32xf32>
    %505 = arith.divf %503, %504 : vector<8x32xf32>
    %506 = vector.extract_strided_slice %493 {offsets = [0, 64], sizes = [8, 32], strides = [1, 1]} : vector<8x128xf32> to vector<8x32xf32>
    %507 = math.tanh %506 : vector<8x32xf32>
    %508 = vector.extract_strided_slice %493 {offsets = [0, 96], sizes = [8, 32], strides = [1, 1]} : vector<8x128xf32> to vector<8x32xf32>
    %509 = arith.negf %508 : vector<8x32xf32>
    %510 = math.exp %509 : vector<8x32xf32>
    %cst_117 = arith.constant 1.000000e+00 : f32
    %511 = vector.broadcast %cst_117 : f32 to vector<8x32xf32>
    %512 = arith.addf %511, %510 : vector<8x32xf32>
    %513 = arith.divf %511, %512 : vector<8x32xf32>
    %514 = arith.mulf %505, %452 : vector<8x32xf32>
    %515 = arith.mulf %499, %507 : vector<8x32xf32>
    %516 = arith.addf %514, %515 : vector<8x32xf32>
    %517 = math.tanh %516 : vector<8x32xf32>
    %518 = arith.mulf %513, %517 : vector<8x32xf32>
    %519 = arith.index_cast %c7_i32 : i32 to index
    %c0_118 = arith.constant 0 : index
    %c0_119 = arith.constant 0 : index
    %520 = vector.load %arg8[%519, %c0_118, %c0_119] : memref<8x8x32xf32, #tpu.memory_space<vmem>>, vector<1x8x32xf32>
    %521 = vector.shape_cast %520 : vector<1x8x32xf32> to vector<8x32xf32>
    %522 = vector.shape_cast %518 : vector<8x32xf32> to vector<1x8x32xf32>
    tpu.vector_store %arg8[%519, %c0_118, %c0_119], %522 {strides = array<i32>} : memref<8x8x32xf32, #tpu.memory_space<vmem>>, vector<1x8x32xf32>,
    %c8_i32 = arith.constant 8 : i32
    %c0_120 = arith.constant 0 : index
    %c0_121 = arith.constant 0 : index
    %523 = vector.load %arg11[%c0_120, %c0_121] : memref<8x32xf32, #tpu.memory_space<vmem>>, vector<8x32xf32>
    tpu.vector_store %arg11[%c0_120, %c0_121], %488 {strides = array<i32>} : memref<8x32xf32, #tpu.memory_space<vmem>>, vector<8x32xf32>,
    %c0_122 = arith.constant 0 : index
    %c0_123 = arith.constant 0 : index
    %524 = vector.load %arg12[%c0_122, %c0_123] : memref<8x32xf32, #tpu.memory_space<vmem>>, vector<8x32xf32>
    tpu.vector_store %arg12[%c0_122, %c0_123], %486 {strides = array<i32>} : memref<8x32xf32, #tpu.memory_space<vmem>>, vector<8x32xf32>,
    %c0_124 = arith.constant 0 : index
    %c0_125 = arith.constant 0 : index
    %525 = vector.load %arg13[%c0_124, %c0_125] : memref<8x32xf32, #tpu.memory_space<vmem>>, vector<8x32xf32>
    tpu.vector_store %arg13[%c0_124, %c0_125], %518 {strides = array<i32>} : memref<8x32xf32, #tpu.memory_space<vmem>>, vector<8x32xf32>,
    %c0_126 = arith.constant 0 : index
    %c0_127 = arith.constant 0 : index
    %526 = vector.load %arg14[%c0_126, %c0_127] : memref<8x32xf32, #tpu.memory_space<vmem>>, vector<8x32xf32>
    tpu.vector_store %arg14[%c0_126, %c0_127], %516 {strides = array<i32>} : memref<8x32xf32, #tpu.memory_space<vmem>>, vector<8x32xf32>,
    %c0_i32_128 = arith.constant 0 : i32
    %527 = arith.cmpi eq, %arg0, %c0_i32_128 : i32
    %528 = arith.extui %527 : i1 to i32
    %c0_i32_129 = arith.constant 0 : i32
    %529 = arith.cmpi ne, %528, %c0_i32_129 : i32
    scf.if %529 {
      %c0_130 = arith.constant 0 : index
      %c0_131 = arith.constant 0 : index
      %530 = vector.load %arg6[%c0_130, %c0_131] : memref<32x5xf32, #tpu.memory_space<vmem>>, vector<32x5xf32>
      %cst_132 = arith.constant dense<0.000000e+00> : vector<8x5xf32>
      %531 = tpu.matmul %518, %530, %cst_132 {dimension_numbers = #tpu.dot_dimension_numbers<[1], [0], [0], [1], [0, 0, 1, 1], [], []>} : vector<8x32xf32>, vector<32x5xf32>, vector<8x5xf32> -> vector<8x5xf32>
      %c0_133 = arith.constant 0 : index
      %c0_134 = arith.constant 0 : index
      %532 = vector.load %arg7[%c0_133, %c0_134] : memref<1x5xf32, #tpu.memory_space<vmem>>, vector<1x5xf32>
      %533 = vector.broadcast %532 : vector<1x5xf32> to vector<8x5xf32>
      %534 = arith.addf %531, %533 : vector<8x5xf32>
      %c0_135 = arith.constant 0 : index
      %c0_136 = arith.constant 0 : index
      %535 = vector.load %arg9[%c0_135, %c0_136] : memref<8x5xf32, #tpu.memory_space<vmem>>, vector<8x5xf32>
      tpu.vector_store %arg9[%c0_135, %c0_136], %534 {strides = array<i32>} : memref<8x5xf32, #tpu.memory_space<vmem>>, vector<8x5xf32>,
      %cst_137 = arith.constant dense<0xFF800000> : vector<8xf32>
      %536 = vector.multi_reduction <maximumf>, %534, %cst_137 [1] : vector<8x5xf32> to vector<8xf32>
      %537 = vector.shape_cast %536 : vector<8xf32> to vector<8x1xf32>
      %538 = vector.broadcast %537 : vector<8x1xf32> to vector<8x5xf32>
      %539 = arith.subf %534, %538 : vector<8x5xf32>
      %540 = math.exp %539 : vector<8x5xf32>
      %cst_138 = arith.constant dense<0.000000e+00> : vector<8xf32>
      %541 = vector.multi_reduction <add>, %540, %cst_138 [1] : vector<8x5xf32> to vector<8xf32>
      %542 = vector.shape_cast %541 : vector<8xf32> to vector<8x1xf32>
      %543 = math.log %542 : vector<8x1xf32>
      %544 = vector.broadcast %543 : vector<8x1xf32> to vector<8x5xf32>
      %545 = arith.subf %539, %544 : vector<8x5xf32>
      %c0_139 = arith.constant 0 : index
      %c0_140 = arith.constant 0 : index
      %546 = vector.load %arg10[%c0_139, %c0_140] : memref<8x5xf32, #tpu.memory_space<vmem>>, vector<8x5xf32>
      tpu.vector_store %arg10[%c0_139, %c0_140], %545 {strides = array<i32>} : memref<8x5xf32, #tpu.memory_space<vmem>>, vector<8x5xf32>,
    } else {
    }
    return
  }
  func.func @transform_0(%arg0: i32) -> (i32, i32, i32) {
    %c0_i32 = arith.constant 0 : i32
    %c0_i32_0 = arith.constant 0 : i32
    %c0_i32_1 = arith.constant 0 : i32
    return %arg0, %c0_i32, %c0_i32_0 : i32, i32, i32
  }
  func.func @transform_1(%arg0: i32) -> (i32, i32) {
    %c0_i32 = arith.constant 0 : i32
    %c0_i32_0 = arith.constant 0 : i32
    %c0_i32_1 = arith.constant 0 : i32
    return %c0_i32, %c0_i32_0 : i32, i32
  }
  func.func @transform_2(%arg0: i32) -> (i32, i32) {
    %c0_i32 = arith.constant 0 : i32
    %c0_i32_0 = arith.constant 0 : i32
    %c0_i32_1 = arith.constant 0 : i32
    return %c0_i32, %c0_i32_0 : i32, i32
  }
  func.func @transform_3(%arg0: i32) -> (i32, i32) {
    %c0_i32 = arith.constant 0 : i32
    %c0_i32_0 = arith.constant 0 : i32
    %c0_i32_1 = arith.constant 0 : i32
    return %c0_i32, %c0_i32_0 : i32, i32
  }
  func.func @transform_4(%arg0: i32) -> (i32, i32) {
    %c0_i32 = arith.constant 0 : i32
    %c0_i32_0 = arith.constant 0 : i32
    %c0_i32_1 = arith.constant 0 : i32
    return %c0_i32, %c0_i32_0 : i32, i32
  }
  func.func @transform_5(%arg0: i32) -> (i32, i32) {
    %c0_i32 = arith.constant 0 : i32
    %c0_i32_0 = arith.constant 0 : i32
    %c0_i32_1 = arith.constant 0 : i32
    return %c0_i32, %c0_i32_0 : i32, i32
  }
  func.func @transform_6(%arg0: i32) -> (i32, i32) {
    %c0_i32 = arith.constant 0 : i32
    %c0_i32_0 = arith.constant 0 : i32
    %c0_i32_1 = arith.constant 0 : i32
    return %c0_i32, %c0_i32_0 : i32, i32
  }
  func.func @transform_7(%arg0: i32) -> (i32, i32, i32) {
    %c0_i32 = arith.constant 0 : i32
    %c0_i32_0 = arith.constant 0 : i32
    %c0_i32_1 = arith.constant 0 : i32
    return %arg0, %c0_i32, %c0_i32_0 : i32, i32, i32
  }
  func.func @transform_8(%arg0: i32) -> (i32, i32) {
    %c0_i32 = arith.constant 0 : i32
    %c0_i32_0 = arith.constant 0 : i32
    %c0_i32_1 = arith.constant 0 : i32
    return %c0_i32, %c0_i32_0 : i32, i32
  }
  func.func @transform_9(%arg0: i32) -> (i32, i32) {
    %c0_i32 = arith.constant 0 : i32
    %c0_i32_0 = arith.constant 0 : i32
    %c0_i32_1 = arith.constant 0 : i32
    return %c0_i32, %c0_i32_0 : i32, i32
  }
}

</mosaic_0001>

<llo_original>
// kernel: lstm_model_forward.1
$region0: #{lstm_model_forward.1}
  #allocation0 [shape = 'u32[]', space=smem, size = 0x4, offset = 0x4, fixed_abs, tag = 'smem constant byte address 0x4 - core index']
  #allocation1 [shape = 'u32[144,128]{1,0:T(1,128)}', space=vmem, size = 0x12000, scoped, tag = 'internal scratch']
  #allocation2 [shape = 'f32[8,32]{1,0:T(8,128)}', space=vmem, size = 0x1000, scoped, tag = 'scratch operand']
  #allocation3 [shape = 'f32[8,32]{1,0:T(8,128)}', space=vmem, size = 0x1000, scoped, tag = 'scratch operand']
  #allocation4 [shape = 'f32[8,32]{1,0:T(8,128)}', space=vmem, size = 0x1000, scoped, tag = 'scratch operand']
  #allocation5 [shape = 'f32[8,32]{1,0:T(8,128)}', space=vmem, size = 0x1000, scoped, tag = 'scratch operand']
  %s0 = inlined_call_operand.vmem [shape: f32[8,8,128], index: 0, kind: input, shape index: {}]
  %s1 = inlined_call_operand.vmem [shape: f32[32,128], index: 1, kind: input, shape index: {}]
  %s2 = inlined_call_operand.vmem [shape: f32[32,128], index: 2, kind: input, shape index: {}]
  %s3 = inlined_call_operand.vmem [shape: f32[32,128], index: 3, kind: input, shape index: {}]
  %s4 = inlined_call_operand.vmem [shape: f32[1,128], index: 4, kind: input, shape index: {}]
  %s5 = inlined_call_operand.vmem [shape: f32[32,5], index: 5, kind: input, shape index: {}]
  %s6 = inlined_call_operand.vmem [shape: f32[1,5], index: 6, kind: input, shape index: {}]
  %s7 = inlined_call_operand.vmem [shape: f32[8,8,32], index: 7, kind: output, shape index: {0}]
  %s8 = inlined_call_operand.vmem [shape: f32[8,5], index: 8, kind: output, shape index: {1}]
  %s9 = inlined_call_operand.vmem [shape: f32[8,5], index: 9, kind: output, shape index: {2}]
  %10 = xla_tuple %s7, %s8, %s9
  %s11 = sld [smem:[#allocation0]]
  $region62: #{lstm_model_forward.1} parent=0
    _
  %s13 = ssub.s32 1, %s11
  %s14 = scalar_select 0, %s13, %s11
  // Predicated region
  $region2: #{lstm_model_forward.1} parent=0 // pred_check
    _
  $region3: #{lstm_model_forward.1} parent=0 // pred_check_branch
    %16 = sbr.rel (0) target = $region5
  $region4: #{lstm_model_forward.1} parent=0 // pred_region
    _
  $region5: #{lstm_model_forward.1} parent=0 // pred_fallthru
    _
  // Predicated region
  $region6: #{lstm_model_forward.1} parent=0 // pred_check
    _
  $region7: #{lstm_model_forward.1} parent=0 // pred_check_branch
    %18 = sbr.rel (0) target = $region9
  $region8: #{lstm_model_forward.1} parent=0 // pred_region
    _
  $region9: #{lstm_model_forward.1} parent=0 // pred_fallthru
    _
  // Predicated region
  $region10: #{lstm_model_forward.1} parent=0 // pred_check
    _
  $region11: #{lstm_model_forward.1} parent=0 // pred_check_branch
    %20 = sbr.rel (0) target = $region13
  $region12: #{lstm_model_forward.1} parent=0 // pred_region
    _
  $region13: #{lstm_model_forward.1} parent=0 // pred_fallthru
    _
  // Predicated region
  $region14: #{lstm_model_forward.1} parent=0 // pred_check
    _
  $region15: #{lstm_model_forward.1} parent=0 // pred_check_branch
    %22 = sbr.rel (0) target = $region17
  $region16: #{lstm_model_forward.1} parent=0 // pred_region
    _
  $region17: #{lstm_model_forward.1} parent=0 // pred_fallthru
    _
  // Predicated region
  $region18: #{lstm_model_forward.1} parent=0 // pred_check
    _
  $region19: #{lstm_model_forward.1} parent=0 // pred_check_branch
    %24 = sbr.rel (0) target = $region21
  $region20: #{lstm_model_forward.1} parent=0 // pred_region
    _
  $region21: #{lstm_model_forward.1} parent=0 // pred_fallthru
    _
  // Predicated region
  $region22: #{lstm_model_forward.1} parent=0 // pred_check
    _
  $region23: #{lstm_model_forward.1} parent=0 // pred_check_branch
    %26 = sbr.rel (0) target = $region25
  $region24: #{lstm_model_forward.1} parent=0 // pred_region
    _
  $region25: #{lstm_model_forward.1} parent=0 // pred_fallthru
    _
  // Predicated region
  $region26: #{lstm_model_forward.1} parent=0 // pred_check
    _
  $region27: #{lstm_model_forward.1} parent=0 // pred_check_branch
    %28 = sbr.rel (0) target = $region29
  $region28: #{lstm_model_forward.1} parent=0 // pred_region
    _
  $region29: #{lstm_model_forward.1} parent=0 // pred_fallthru
    _
  %p29 = scmp.eq.s32.totalorder 0, 0
  // Predicated region
  $region30: #{lstm_model_forward.1} parent=0 // pred_check
    %p30 = pneg %p29
  $region31: #{lstm_model_forward.1} parent=0 // pred_check_branch
    %32 = sbr.rel (%p30) target = $region33
  $region32: #{lstm_model_forward.1} parent=0 // pred_region
    %vm33 = vcmask 261120
    %34 = vst.msk [vmem:[#allocation2] sm:$0xff] %vm33, 0.0
    %35 = vst.msk [vmem:[#allocation3] sm:$0xff] %vm33, 0.0
    %36 = vst.msk [vmem:[#allocation4] sm:$0xff] %vm33, 0.0
    %37 = vst.msk [vmem:[#allocation5] sm:$0xff] %vm33, 0.0
  $region33: #{lstm_model_forward.1} parent=0 // pred_fallthru
    _
  %v38 = vld [vmem:[%s1] sm:$0xff]
  %v39 = vld [vmem:[%s1 + $0x8] sm:$0xff]
  %v40 = vld [vmem:[%s1 + $0x10] sm:$0xff]
  %v41 = vld [vmem:[%s1 + $0x18] sm:$0xff]
  %v42 = vld [vmem:[%s2] sm:$0xff]
  %v43 = vld [vmem:[%s2 + $0x8] sm:$0xff]
  %v44 = vld [vmem:[%s2 + $0x10] sm:$0xff]
  %v45 = vld [vmem:[%s2 + $0x18] sm:$0xff]
  %v46 = vld [vmem:[%s3] sm:$0xff]
  %v47 = vld [vmem:[%s3 + $0x8] sm:$0xff]
  %v48 = vld [vmem:[%s3 + $0x10] sm:$0xff]
  %v49 = vld [vmem:[%s3 + $0x18] sm:$0xff]
  %v50 = vld [vmem:[%s4] sm:$0x1]
  %v51 = vld [vmem:[#allocation2] sm:$0xff]
  %v52 = vld [vmem:[#allocation3] sm:$0xff]
  %v53 = vld [vmem:[#allocation4] sm:$0xff]
  %v54 = vld [vmem:[#allocation5] sm:$0xff]
  %v55 = vld [vmem:[%s0] sm:$0xff]
  %vm56 = vcmask 261120
  %v58 = vsel %vm56, %v51, 0
  %60 = vmatprep.subr.mxu0 0.0
  %61 = vmatpush1.msra.mxu0 %v38
  %62 = vmatprep.subr.mxu0 0.0
  %63 = vmatpush1.msra.mxu0 %v39
  %64 = vmatprep.subr.mxu0 0.0
  %65 = vmatpush1.msra.mxu0 %v40
  %66 = vmatprep.subr.mxu0 0.0
  %67 = vmatpush1.msra.mxu0 %v41
  %68 = vmatprep.subr.mxu0 0.0
  %69 = vmatpush1.msra.mxu0 0.0
  %70 = vmatprep.subr.mxu0 0.0
  %71 = vmatpush1.msra.mxu0 0.0
  %72 = vmatprep.subr.mxu0 0.0
  %73 = vmatpush1.msra.mxu0 0.0
  %74 = vmatprep.subr.mxu0 0.0
  %75 = vmatpush1.msra.mxu0 0.0
  %76 = vmatprep.subr.mxu0 0.0
  %77 = vmatpush1.msra.mxu0 0.0
  %78 = vmatprep.subr.mxu0 0.0
  %79 = vmatpush1.msra.mxu0 0.0
  %80 = vmatprep.subr.mxu0 0.0
  %81 = vmatpush1.msra.mxu0 0.0
  %82 = vmatprep.subr.mxu0 0.0
  %83 = vmatpush1.msra.mxu0 0.0
  %84 = vmatprep.subr.mxu0 0.0
  %85 = vmatpush1.msra.mxu0 0.0
  %86 = vmatprep.subr.mxu0 0.0
  %87 = vmatpush1.msra.mxu0 0.0
  %88 = vmatprep.subr.mxu0 0.0
  %89 = vmatpush1.msra.mxu0 0.0
  %90 = vmatprep.subr.mxu0 0.0
  %91 = vmatpush1.msra.mxu0 0.0
  %92 = vmatprep.subr.mxu0 0.0
  %93 = vmatpush1.msra.mxu0 0.0
  %94 = vmatprep.subr.mxu0 0.0
  %95 = vmatpush1.msra.mxu0 0.0
  %96 = vmatprep.subr.mxu0 0.0
  %97 = vmatpush1.msra.mxu0 0.0
  %98 = vmatprep.subr.mxu0 0.0
  %99 = vmatpush1.msra.mxu0 0.0
  %100 = vmatprep.subr.mxu0 0.0
  %101 = vmatpush1.msra.mxu0 0.0
  %102 = vmatprep.subr.mxu0 0.0
  %103 = vmatpush1.msra.mxu0 0.0
  %104 = vmatprep.subr.mxu0 0.0
  %105 = vmatpush1.msra.mxu0 0.0
  %106 = vmatprep.subr.mxu0 0.0
  %107 = vmatpush1.msra.mxu0 0.0
  %108 = vmatprep.subr.mxu0 0.0
  %109 = vmatpush1.msra.mxu0 0.0
  %110 = vmatprep.subr.mxu0 0.0
  %111 = vmatpush1.msra.mxu0 0.0
  %112 = vmatprep.subr.mxu0 0.0
  %113 = vmatpush1.msra.mxu0 0.0
  %114 = vmatprep.subr.mxu0 0.0
  %115 = vmatpush1.msra.mxu0 0.0
  %116 = vmatprep.subr.mxu0 0.0
  %117 = vmatpush1.msra.mxu0 0.0
  %118 = vmatprep.subr.mxu0 0.0
  %119 = vmatpush1.msra.mxu0 0.0
  %120 = vmatprep.subr.mxu0 0.0
  %121 = vmatpush1.msra.mxu0 0.0
  %122 = vmatprep.subr.mxu0 0.0
  %123 = vmatpush1.msra.mxu0 0.0
  %124 = vmatprep.mubr.f32.mxu0 0.0
  %125 = vmatmul.mubr.f32.gmra.mrb[0].mxu0 %v58
  %v126 = vpop.f32.mrb[0].mxu0
  %v127 = vadd.f32 0.0, %v126
  %v128 = vpop.f32.mrb[0].mxu0
  %129 = vdwg.mxu0
  %v130 = vadd.f32 %v55, %v127
  %v131 = vxor.u32 %v130, 2147483648
  %v132 = vmul.f32 %v131, 1.442695
  %v133 = vpow.pop %v132
  %v134 = vadd.f32 %v133, 1.0
  %v135 = vrcp.pop %v134
  %v136 = vmul.f32 1.0, %v135
  %v137 = vtanh.pop %v130
  %139 = vrot.lane.b32.xlu0 %v52, 32
  %v140 = vpop.permute.xlu0 %139
  %v142 = vmul.f32 %v136, %v140
  %144 = vrot.lane.b32.xlu0 %v137, 64
  %v145 = vpop.permute.xlu0 %144
  %v147 = vmul.f32 %v136, %v145
  %149 = vrot.lane.b32.xlu0 %v147, 32
  %v150 = vpop.permute.xlu0 %149
  %v152 = vadd.f32 %v142, %v150
  %v153 = vtanh.pop %v152
  %155 = vrot.lane.b32.xlu0 %v153, 64
  %v156 = vpop.permute.xlu0 %155
  %v158 = vmul.f32 %v136, %v156
  %v160 = vsel %vm56, %v53, 0
  %162 = vmatprep.subr.mxu0 0.0
  %163 = vmatpush1.msra.mxu0 %v46
  %164 = vmatprep.subr.mxu0 0.0
  %165 = vmatpush1.msra.mxu0 %v47
  %166 = vmatprep.subr.mxu0 0.0
  %167 = vmatpush1.msra.mxu0 %v48
  %168 = vmatprep.subr.mxu0 0.0
  %169 = vmatpush1.msra.mxu0 %v49
  %170 = vmatprep.subr.mxu0 0.0
  %171 = vmatpush1.msra.mxu0 0.0
  %172 = vmatprep.subr.mxu0 0.0
  %173 = vmatpush1.msra.mxu0 0.0
  %174 = vmatprep.subr.mxu0 0.0
  %175 = vmatpush1.msra.mxu0 0.0
  %176 = vmatprep.subr.mxu0 0.0
  %177 = vmatpush1.msra.mxu0 0.0
  %178 = vmatprep.subr.mxu0 0.0
  %179 = vmatpush1.msra.mxu0 0.0
  %180 = vmatprep.subr.mxu0 0.0
  %181 = vmatpush1.msra.mxu0 0.0
  %182 = vmatprep.subr.mxu0 0.0
  %183 = vmatpush1.msra.mxu0 0.0
  %184 = vmatprep.subr.mxu0 0.0
  %185 = vmatpush1.msra.mxu0 0.0
  %186 = vmatprep.subr.mxu0 0.0
  %187 = vmatpush1.msra.mxu0 0.0
  %188 = vmatprep.subr.mxu0 0.0
  %189 = vmatpush1.msra.mxu0 0.0
  %190 = vmatprep.subr.mxu0 0.0
  %191 = vmatpush1.msra.mxu0 0.0
  %192 = vmatprep.subr.mxu0 0.0
  %193 = vmatpush1.msra.mxu0 0.0
  %194 = vmatprep.subr.mxu0 0.0
  %195 = vmatpush1.msra.mxu0 0.0
  %196 = vmatprep.subr.mxu0 0.0
  %197 = vmatpush1.msra.mxu0 0.0
  %198 = vmatprep.subr.mxu0 0.0
  %199 = vmatpush1.msra.mxu0 0.0
  %200 = vmatprep.subr.mxu0 0.0
  %201 = vmatpush1.msra.mxu0 0.0
  %202 = vmatprep.subr.mxu0 0.0
  %203 = vmatpush1.msra.mxu0 0.0
  %204 = vmatprep.subr.mxu0 0.0
  %205 = vmatpush1.msra.mxu0 0.0
  %206 = vmatprep.subr.mxu0 0.0
  %207 = vmatpush1.msra.mxu0 0.0
  %208 = vmatprep.subr.mxu0 0.0
  %209 = vmatpush1.msra.mxu0 0.0
  %210 = vmatprep.subr.mxu0 0.0
  %211 = vmatpush1.msra.mxu0 0.0
  %212 = vmatprep.subr.mxu0 0.0
  %213 = vmatpush1.msra.mxu0 0.0
  %214 = vmatprep.subr.mxu0 0.0
  %215 = vmatpush1.msra.mxu0 0.0
  %216 = vmatprep.subr.mxu0 0.0
  %217 = vmatpush1.msra.mxu0 0.0
  %218 = vmatprep.subr.mxu0 0.0
  %219 = vmatpush1.msra.mxu0 0.0
  %220 = vmatprep.subr.mxu0 0.0
  %221 = vmatpush1.msra.mxu0 0.0
  %222 = vmatprep.subr.mxu0 0.0
  %223 = vmatpush1.msra.mxu0 0.0
  %224 = vmatprep.subr.mxu0 0.0
  %225 = vmatpush1.msra.mxu0 0.0
  %226 = vmatprep.mubr.f32.mxu0 0.0
  %227 = vmatmul.mubr.f32.gmra.mrb[0].mxu0 %v160
  %v228 = vpop.f32.mrb[0].mxu0
  %v229 = vadd.f32 0.0, %v228
  %v230 = vpop.f32.mrb[0].mxu0
  %231 = vdwg.mxu0
  %233 = vrot.lane.b32.xlu0 %v158, 32
  %v234 = vpop.permute.xlu0 %233
  %v235 = vsel %vm56, %v234, 0
  %237 = vmatprep.subr.mxu0 0.0
  %238 = vmatpush1.msra.mxu0 %v42
  %239 = vmatprep.subr.mxu0 0.0
  %240 = vmatpush1.msra.mxu0 %v43
  %241 = vmatprep.subr.mxu0 0.0
  %242 = vmatpush1.msra.mxu0 %v44
  %243 = vmatprep.subr.mxu0 0.0
  %244 = vmatpush1.msra.mxu0 %v45
  %245 = vmatprep.subr.mxu0 0.0
  %246 = vmatpush1.msra.mxu0 0.0
  %247 = vmatprep.subr.mxu0 0.0
  %248 = vmatpush1.msra.mxu0 0.0
  %249 = vmatprep.subr.mxu0 0.0
  %250 = vmatpush1.msra.mxu0 0.0
  %251 = vmatprep.subr.mxu0 0.0
  %252 = vmatpush1.msra.mxu0 0.0
  %253 = vmatprep.subr.mxu0 0.0
  %254 = vmatpush1.msra.mxu0 0.0
  %255 = vmatprep.subr.mxu0 0.0
  %256 = vmatpush1.msra.mxu0 0.0
  %257 = vmatprep.subr.mxu0 0.0
  %258 = vmatpush1.msra.mxu0 0.0
  %259 = vmatprep.subr.mxu0 0.0
  %260 = vmatpush1.msra.mxu0 0.0
  %261 = vmatprep.subr.mxu0 0.0
  %262 = vmatpush1.msra.mxu0 0.0
  %263 = vmatprep.subr.mxu0 0.0
  %264 = vmatpush1.msra.mxu0 0.0
  %265 = vmatprep.subr.mxu0 0.0
  %266 = vmatpush1.msra.mxu0 0.0
  %267 = vmatprep.subr.mxu0 0.0
  %268 = vmatpush1.msra.mxu0 0.0
  %269 = vmatprep.subr.mxu0 0.0
  %270 = vmatpush1.msra.mxu0 0.0
  %271 = vmatprep.subr.mxu0 0.0
  %272 = vmatpush1.msra.mxu0 0.0
  %273 = vmatprep.subr.mxu0 0.0
  %274 = vmatpush1.msra.mxu0 0.0
  %275 = vmatprep.subr.mxu0 0.0
  %276 = vmatpush1.msra.mxu0 0.0
  %277 = vmatprep.subr.mxu0 0.0
  %278 = vmatpush1.msra.mxu0 0.0
  %279 = vmatprep.subr.mxu0 0.0
  %280 = vmatpush1.msra.mxu0 0.0
  %281 = vmatprep.subr.mxu0 0.0
  %282 = vmatpush1.msra.mxu0 0.0
  %283 = vmatprep.subr.mxu0 0.0
  %284 = vmatpush1.msra.mxu0 0.0
  %285 = vmatprep.subr.mxu0 0.0
  %286 = vmatpush1.msra.mxu0 0.0
  %287 = vmatprep.subr.mxu0 0.0
  %288 = vmatpush1.msra.mxu0 0.0
  %289 = vmatprep.subr.mxu0 0.0
  %290 = vmatpush1.msra.mxu0 0.0
  %291 = vmatprep.subr.mxu0 0.0
  %292 = vmatpush1.msra.mxu0 0.0
  %293 = vmatprep.subr.mxu0 0.0
  %294 = vmatpush1.msra.mxu0 0.0
  %295 = vmatprep.subr.mxu0 0.0
  %296 = vmatpush1.msra.mxu0 0.0
  %297 = vmatprep.subr.mxu0 0.0
  %298 = vmatpush1.msra.mxu0 0.0
  %299 = vmatprep.subr.mxu0 0.0
  %300 = vmatpush1.msra.mxu0 0.0
  %301 = vmatprep.mubr.f32.mxu0 0.0
  %302 = vmatmul.mubr.f32.gmra.mrb[0].mxu0 %v235
  %v303 = vpop.f32.mrb[0].mxu0
  %v304 = vadd.f32 %v229, %v303
  %v305 = vpop.f32.mrb[0].mxu0
  %306 = vdwg.mxu0
  %v308 = vlaneseq
  %v309 = vshrl.u32 %v308, 7
  %v310 = vsub.s32 0, %v309
  %v311 = vrot.slane %v50, %v310
  %v313 = vadd.f32 %v304, %v311
  %v314 = vxor.u32 %v313, 2147483648
  %v315 = vmul.f32 %v314, 1.442695
  %v316 = vpow.pop %v315
  %v317 = vadd.f32 %v316, 1.0
  %v318 = vrcp.pop %v317
  %v319 = vmul.f32 1.0, %v318
  %v320 = vtanh.pop %v313
  %322 = vrot.lane.b32.xlu0 %v54, 32
  %v323 = vpop.permute.xlu0 %322
  %v325 = vmul.f32 %v319, %v323
  %327 = vrot.lane.b32.xlu0 %v320, 64
  %v328 = vpop.permute.xlu0 %327
  %v330 = vmul.f32 %v319, %v328
  %332 = vrot.lane.b32.xlu0 %v330, 32
  %v333 = vpop.permute.xlu0 %332
  %v335 = vadd.f32 %v325, %v333
  %v336 = vtanh.pop %v335
  %338 = vrot.lane.b32.xlu0 %v336, 64
  %v339 = vpop.permute.xlu0 %338
  %v341 = vmul.f32 %v319, %v339
  %343 = vrot.lane.b32.xlu0 %v341, 32
  %v344 = vpop.permute.xlu0 %343
  %346 = vst.msk [vmem:[%s7] sm:$0xff] %vm56, %v344
  %s347 = scalar_lea.vmem %s0, 8
  %v348 = vld [vmem:[%s347] sm:$0xff]
  %349 = vmatprep.subr.mxu0 0.0
  %350 = vmatpush1.msra.mxu0 %v38
  %351 = vmatprep.subr.mxu0 0.0
  %352 = vmatpush1.msra.mxu0 %v39
  %353 = vmatprep.subr.mxu0 0.0
  %354 = vmatpush1.msra.mxu0 %v40
  %355 = vmatprep.subr.mxu0 0.0
  %356 = vmatpush1.msra.mxu0 %v41
  %357 = vmatprep.subr.mxu0 0.0
  %358 = vmatpush1.msra.mxu0 0.0
  %359 = vmatprep.subr.mxu0 0.0
  %360 = vmatpush1.msra.mxu0 0.0
  %361 = vmatprep.subr.mxu0 0.0
  %362 = vmatpush1.msra.mxu0 0.0
  %363 = vmatprep.subr.mxu0 0.0
  %364 = vmatpush1.msra.mxu0 0.0
  %365 = vmatprep.subr.mxu0 0.0
  %366 = vmatpush1.msra.mxu0 0.0
  %367 = vmatprep.subr.mxu0 0.0
  %368 = vmatpush1.msra.mxu0 0.0
  %369 = vmatprep.subr.mxu0 0.0
  %370 = vmatpush1.msra.mxu0 0.0
  %371 = vmatprep.subr.mxu0 0.0
  %372 = vmatpush1.msra.mxu0 0.0
  %373 = vmatprep.subr.mxu0 0.0
  %374 = vmatpush1.msra.mxu0 0.0
  %375 = vmatprep.subr.mxu0 0.0
  %376 = vmatpush1.msra.mxu0 0.0
  %377 = vmatprep.subr.mxu0 0.0
  %378 = vmatpush1.msra.mxu0 0.0
  %379 = vmatprep.subr.mxu0 0.0
  %380 = vmatpush1.msra.mxu0 0.0
  %381 = vmatprep.subr.mxu0 0.0
  %382 = vmatpush1.msra.mxu0 0.0
  %383 = vmatprep.subr.mxu0 0.0
  %384 = vmatpush1.msra.mxu0 0.0
  %385 = vmatprep.subr.mxu0 0.0
  %386 = vmatpush1.msra.mxu0 0.0
  %387 = vmatprep.subr.mxu0 0.0
  %388 = vmatpush1.msra.mxu0 0.0
  %389 = vmatprep.subr.mxu0 0.0
  %390 = vmatpush1.msra.mxu0 0.0
  %391 = vmatprep.subr.mxu0 0.0
  %392 = vmatpush1.msra.mxu0 0.0
  %393 = vmatprep.subr.mxu0 0.0
  %394 = vmatpush1.msra.mxu0 0.0
  %395 = vmatprep.subr.mxu0 0.0
  %396 = vmatpush1.msra.mxu0 0.0
  %397 = vmatprep.subr.mxu0 0.0
  %398 = vmatpush1.msra.mxu0 0.0
  %399 = vmatprep.subr.mxu0 0.0
  %400 = vmatpush1.msra.mxu0 0.0
  %401 = vmatprep.subr.mxu0 0.0
  %402 = vmatpush1.msra.mxu0 0.0
  %403 = vmatprep.subr.mxu0 0.0
  %404 = vmatpush1.msra.mxu0 0.0
  %405 = vmatprep.subr.mxu0 0.0
  %406 = vmatpush1.msra.mxu0 0.0
  %407 = vmatprep.subr.mxu0 0.0
  %408 = vmatpush1.msra.mxu0 0.0
  %409 = vmatprep.subr.mxu0 0.0
  %410 = vmatpush1.msra.mxu0 0.0
  %411 = vmatprep.subr.mxu0 0.0
  %412 = vmatpush1.msra.mxu0 0.0
  %413 = vmatprep.mubr.f32.mxu0 0.0
  %414 = vmatmul.mubr.f32.gmra.mrb[0].mxu0 %v235
  %v415 = vpop.f32.mrb[0].mxu0
  %v416 = vadd.f32 0.0, %v415
  %v417 = vpop.f32.mrb[0].mxu0
  %418 = vdwg.mxu0
  %v419 = vadd.f32 %v348, %v416
  %v420 = vxor.u32 %v419, 2147483648
  %v421 = vmul.f32 %v420, 1.442695
  %v422 = vpow.pop %v421
  %v423 = vadd.f32 %v422, 1.0
  %v424 = vrcp.pop %v423
  %v425 = vmul.f32 1.0, %v424
  %v426 = vtanh.pop %v419
  %v427 = vmul.f32 %v425, %v152
  %429 = vrot.lane.b32.xlu0 %v426, 64
  %v430 = vpop.permute.xlu0 %429
  %v432 = vmul.f32 %v425, %v430
  %434 = vrot.lane.b32.xlu0 %v432, 32
  %v435 = vpop.permute.xlu0 %434
  %v437 = vadd.f32 %v427, %v435
  %v438 = vtanh.pop %v437
  %440 = vrot.lane.b32.xlu0 %v438, 64
  %v441 = vpop.permute.xlu0 %440
  %v443 = vmul.f32 %v425, %v441
  %v444 = vsel %vm56, %v344, 0
  %446 = vmatprep.subr.mxu0 0.0
  %447 = vmatpush1.msra.mxu0 %v46
  %448 = vmatprep.subr.mxu0 0.0
  %449 = vmatpush1.msra.mxu0 %v47
  %450 = vmatprep.subr.mxu0 0.0
  %451 = vmatpush1.msra.mxu0 %v48
  %452 = vmatprep.subr.mxu0 0.0
  %453 = vmatpush1.msra.mxu0 %v49
  %454 = vmatprep.subr.mxu0 0.0
  %455 = vmatpush1.msra.mxu0 0.0
  %456 = vmatprep.subr.mxu0 0.0
  %457 = vmatpush1.msra.mxu0 0.0
  %458 = vmatprep.subr.mxu0 0.0
  %459 = vmatpush1.msra.mxu0 0.0
  %460 = vmatprep.subr.mxu0 0.0
  %461 = vmatpush1.msra.mxu0 0.0
  %462 = vmatprep.subr.mxu0 0.0
  %463 = vmatpush1.msra.mxu0 0.0
  %464 = vmatprep.subr.mxu0 0.0
  %465 = vmatpush1.msra.mxu0 0.0
  %466 = vmatprep.subr.mxu0 0.0
  %467 = vmatpush1.msra.mxu0 0.0
  %468 = vmatprep.subr.mxu0 0.0
  %469 = vmatpush1.msra.mxu0 0.0
  %470 = vmatprep.subr.mxu0 0.0
  %471 = vmatpush1.msra.mxu0 0.0
  %472 = vmatprep.subr.mxu0 0.0
  %473 = vmatpush1.msra.mxu0 0.0
  %474 = vmatprep.subr.mxu0 0.0
  %475 = vmatpush1.msra.mxu0 0.0
  %476 = vmatprep.subr.mxu0 0.0
  %477 = vmatpush1.msra.mxu0 0.0
  %478 = vmatprep.subr.mxu0 0.0
  %479 = vmatpush1.msra.mxu0 0.0
  %480 = vmatprep.subr.mxu0 0.0
  %481 = vmatpush1.msra.mxu0 0.0
  %482 = vmatprep.subr.mxu0 0.0
  %483 = vmatpush1.msra.mxu0 0.0
  %484 = vmatprep.subr.mxu0 0.0
  %485 = vmatpush1.msra.mxu0 0.0
  %486 = vmatprep.subr.mxu0 0.0
  %487 = vmatpush1.msra.mxu0 0.0
  %488 = vmatprep.subr.mxu0 0.0
  %489 = vmatpush1.msra.mxu0 0.0
  %490 = vmatprep.subr.mxu0 0.0
  %491 = vmatpush1.msra.mxu0 0.0
  %492 = vmatprep.subr.mxu0 0.0
  %493 = vmatpush1.msra.mxu0 0.0
  %494 = vmatprep.subr.mxu0 0.0
  %495 = vmatpush1.msra.mxu0 0.0
  %496 = vmatprep.subr.mxu0 0.0
  %497 = vmatpush1.msra.mxu0 0.0
  %498 = vmatprep.subr.mxu0 0.0
  %499 = vmatpush1.msra.mxu0 0.0
  %500 = vmatprep.subr.mxu0 0.0
  %501 = vmatpush1.msra.mxu0 0.0
  %502 = vmatprep.subr.mxu0 0.0
  %503 = vmatpush1.msra.mxu0 0.0
  %504 = vmatprep.subr.mxu0 0.0
  %505 = vmatpush1.msra.mxu0 0.0
  %506 = vmatprep.subr.mxu0 0.0
  %507 = vmatpush1.msra.mxu0 0.0
  %508 = vmatprep.subr.mxu0 0.0
  %509 = vmatpush1.msra.mxu0 0.0
  %510 = vmatprep.mubr.f32.mxu0 0.0
  %511 = vmatmul.mubr.f32.gmra.mrb[0].mxu0 %v444
  %v512 = vpop.f32.mrb[0].mxu0
  %v513 = vadd.f32 0.0, %v512
  %v514 = vpop.f32.mrb[0].mxu0
  %515 = vdwg.mxu0
  %517 = vrot.lane.b32.xlu0 %v443, 32
  %v518 = vpop.permute.xlu0 %517
  %v519 = vsel %vm56, %v518, 0
  %521 = vmatprep.subr.mxu0 0.0
  %522 = vmatpush1.msra.mxu0 %v42
  %523 = vmatprep.subr.mxu0 0.0
  %524 = vmatpush1.msra.mxu0 %v43
  %525 = vmatprep.subr.mxu0 0.0
  %526 = vmatpush1.msra.mxu0 %v44
  %527 = vmatprep.subr.mxu0 0.0
  %528 = vmatpush1.msra.mxu0 %v45
  %529 = vmatprep.subr.mxu0 0.0
  %530 = vmatpush1.msra.mxu0 0.0
  %531 = vmatprep.subr.mxu0 0.0
  %532 = vmatpush1.msra.mxu0 0.0
  %533 = vmatprep.subr.mxu0 0.0
  %534 = vmatpush1.msra.mxu0 0.0
  %535 = vmatprep.subr.mxu0 0.0
  %536 = vmatpush1.msra.mxu0 0.0
  %537 = vmatprep.subr.mxu0 0.0
  %538 = vmatpush1.msra.mxu0 0.0
  %539 = vmatprep.subr.mxu0 0.0
  %540 = vmatpush1.msra.mxu0 0.0
  %541 = vmatprep.subr.mxu0 0.0
  %542 = vmatpush1.msra.mxu0 0.0
  %543 = vmatprep.subr.mxu0 0.0
  %544 = vmatpush1.msra.mxu0 0.0
  %545 = vmatprep.subr.mxu0 0.0
  %546 = vmatpush1.msra.mxu0 0.0
  %547 = vmatprep.subr.mxu0 0.0
  %548 = vmatpush1.msra.mxu0 0.0
  %549 = vmatprep.subr.mxu0 0.0
  %550 = vmatpush1.msra.mxu0 0.0
  %551 = vmatprep.subr.mxu0 0.0
  %552 = vmatpush1.msra.mxu0 0.0
  %553 = vmatprep.subr.mxu0 0.0
  %554 = vmatpush1.msra.mxu0 0.0
  %555 = vmatprep.subr.mxu0 0.0
  %556 = vmatpush1.msra.mxu0 0.0
  %557 = vmatprep.subr.mxu0 0.0
  %558 = vmatpush1.msra.mxu0 0.0
  %559 = vmatprep.subr.mxu0 0.0
  %560 = vmatpush1.msra.mxu0 0.0
  %561 = vmatprep.subr.mxu0 0.0
  %562 = vmatpush1.msra.mxu0 0.0
  %563 = vmatprep.subr.mxu0 0.0
  %564 = vmatpush1.msra.mxu0 0.0
  %565 = vmatprep.subr.mxu0 0.0
  %566 = vmatpush1.msra.mxu0 0.0
  %567 = vmatprep.subr.mxu0 0.0
  %568 = vmatpush1.msra.mxu0 0.0
  %569 = vmatprep.subr.mxu0 0.0
  %570 = vmatpush1.msra.mxu0 0.0
  %571 = vmatprep.subr.mxu0 0.0
  %572 = vmatpush1.msra.mxu0 0.0
  %573 = vmatprep.subr.mxu0 0.0
  %574 = vmatpush1.msra.mxu0 0.0
  %575 = vmatprep.subr.mxu0 0.0
  %576 = vmatpush1.msra.mxu0 0.0
  %577 = vmatprep.subr.mxu0 0.0
  %578 = vmatpush1.msra.mxu0 0.0
  %579 = vmatprep.subr.mxu0 0.0
  %580 = vmatpush1.msra.mxu0 0.0
  %581 = vmatprep.subr.mxu0 0.0
  %582 = vmatpush1.msra.mxu0 0.0
  %583 = vmatprep.subr.mxu0 0.0
  %584 = vmatpush1.msra.mxu0 0.0
  %585 = vmatprep.mubr.f32.mxu0 0.0
  %586 = vmatmul.mubr.f32.gmra.mrb[0].mxu0 %v519
  %v587 = vpop.f32.mrb[0].mxu0
  %v588 = vadd.f32 %v513, %v587
  %v589 = vpop.f32.mrb[0].mxu0
  %590 = vdwg.mxu0
  %v591 = vadd.f32 %v588, %v311
  %v592 = vxor.u32 %v591, 2147483648
  %v593 = vmul.f32 %v592, 1.442695
  %v594 = vpow.pop %v593
  %v595 = vadd.f32 %v594, 1.0
  %v596 = vrcp.pop %v595
  %v597 = vmul.f32 1.0, %v596
  %v598 = vtanh.pop %v591
  %v599 = vmul.f32 %v597, %v335
  %601 = vrot.lane.b32.xlu0 %v598, 64
  %v602 = vpop.permute.xlu0 %601
  %v604 = vmul.f32 %v597, %v602
  %606 = vrot.lane.b32.xlu0 %v604, 32
  %v607 = vpop.permute.xlu0 %606
  %v609 = vadd.f32 %v599, %v607
  %v610 = vtanh.pop %v609
  %612 = vrot.lane.b32.xlu0 %v610, 64
  %v613 = vpop.permute.xlu0 %612
  %v615 = vmul.f32 %v597, %v613
  %617 = vrot.lane.b32.xlu0 %v615, 32
  %v618 = vpop.permute.xlu0 %617
  %s620 = scalar_lea.vmem %s7, 8
  %621 = vst.msk [vmem:[%s620] sm:$0xff] %vm56, %v618
  %s622 = scalar_lea.vmem %s0, 16
  %v623 = vld [vmem:[%s622] sm:$0xff]
  %624 = vmatprep.subr.mxu0 0.0
  %625 = vmatpush1.msra.mxu0 %v38
  %626 = vmatprep.subr.mxu0 0.0
  %627 = vmatpush1.msra.mxu0 %v39
  %628 = vmatprep.subr.mxu0 0.0
  %629 = vmatpush1.msra.mxu0 %v40
  %630 = vmatprep.subr.mxu0 0.0
  %631 = vmatpush1.msra.mxu0 %v41
  %632 = vmatprep.subr.mxu0 0.0
  %633 = vmatpush1.msra.mxu0 0.0
  %634 = vmatprep.subr.mxu0 0.0
  %635 = vmatpush1.msra.mxu0 0.0
  %636 = vmatprep.subr.mxu0 0.0
  %637 = vmatpush1.msra.mxu0 0.0
  %638 = vmatprep.subr.mxu0 0.0
  %639 = vmatpush1.msra.mxu0 0.0
  %640 = vmatprep.subr.mxu0 0.0
  %641 = vmatpush1.msra.mxu0 0.0
  %642 = vmatprep.subr.mxu0 0.0
  %643 = vmatpush1.msra.mxu0 0.0
  %644 = vmatprep.subr.mxu0 0.0
  %645 = vmatpush1.msra.mxu0 0.0
  %646 = vmatprep.subr.mxu0 0.0
  %647 = vmatpush1.msra.mxu0 0.0
  %648 = vmatprep.subr.mxu0 0.0
  %649 = vmatpush1.msra.mxu0 0.0
  %650 = vmatprep.subr.mxu0 0.0
  %651 = vmatpush1.msra.mxu0 0.0
  %652 = vmatprep.subr.mxu0 0.0
  %653 = vmatpush1.msra.mxu0 0.0
  %654 = vmatprep.subr.mxu0 0.0
  %655 = vmatpush1.msra.mxu0 0.0
  %656 = vmatprep.subr.mxu0 0.0
  %657 = vmatpush1.msra.mxu0 0.0
  %658 = vmatprep.subr.mxu0 0.0
  %659 = vmatpush1.msra.mxu0 0.0
  %660 = vmatprep.subr.mxu0 0.0
  %661 = vmatpush1.msra.mxu0 0.0
  %662 = vmatprep.subr.mxu0 0.0
  %663 = vmatpush1.msra.mxu0 0.0
  %664 = vmatprep.subr.mxu0 0.0
  %665 = vmatpush1.msra.mxu0 0.0
  %666 = vmatprep.subr.mxu0 0.0
  %667 = vmatpush1.msra.mxu0 0.0
  %668 = vmatprep.subr.mxu0 0.0
  %669 = vmatpush1.msra.mxu0 0.0
  %670 = vmatprep.subr.mxu0 0.0
  %671 = vmatpush1.msra.mxu0 0.0
  %672 = vmatprep.subr.mxu0 0.0
  %673 = vmatpush1.msra.mxu0 0.0
  %674 = vmatprep.subr.mxu0 0.0
  %675 = vmatpush1.msra.mxu0 0.0
  %676 = vmatprep.subr.mxu0 0.0
  %677 = vmatpush1.msra.mxu0 0.0
  %678 = vmatprep.subr.mxu0 0.0
  %679 = vmatpush1.msra.mxu0 0.0
  %680 = vmatprep.subr.mxu0 0.0
  %681 = vmatpush1.msra.mxu0 0.0
  %682 = vmatprep.subr.mxu0 0.0
  %683 = vmatpush1.msra.mxu0 0.0
  %684 = vmatprep.subr.mxu0 0.0
  %685 = vmatpush1.msra.mxu0 0.0
  %686 = vmatprep.subr.mxu0 0.0
  %687 = vmatpush1.msra.mxu0 0.0
  %688 = vmatprep.mubr.f32.mxu0 0.0
  %689 = vmatmul.mubr.f32.gmra.mrb[0].mxu0 %v519
  %v690 = vpop.f32.mrb[0].mxu0
  %v691 = vadd.f32 0.0, %v690
  %v692 = vpop.f32.mrb[0].mxu0
  %693 = vdwg.mxu0
  %v694 = vadd.f32 %v623, %v691
  %v695 = vxor.u32 %v694, 2147483648
  %v696 = vmul.f32 %v695, 1.442695
  %v697 = vpow.pop %v696
  %v698 = vadd.f32 %v697, 1.0
  %v699 = vrcp.pop %v698
  %v700 = vmul.f32 1.0, %v699
  %v701 = vtanh.pop %v694
  %v702 = vmul.f32 %v700, %v437
  %704 = vrot.lane.b32.xlu0 %v701, 64
  %v705 = vpop.permute.xlu0 %704
  %v707 = vmul.f32 %v700, %v705
  %709 = vrot.lane.b32.xlu0 %v707, 32
  %v710 = vpop.permute.xlu0 %709
  %v712 = vadd.f32 %v702, %v710
  %v713 = vtanh.pop %v712
  %715 = vrot.lane.b32.xlu0 %v713, 64
  %v716 = vpop.permute.xlu0 %715
  %v718 = vmul.f32 %v700, %v716
  %v719 = vsel %vm56, %v618, 0
  %721 = vmatprep.subr.mxu0 0.0
  %722 = vmatpush1.msra.mxu0 %v46
  %723 = vmatprep.subr.mxu0 0.0
  %724 = vmatpush1.msra.mxu0 %v47
  %725 = vmatprep.subr.mxu0 0.0
  %726 = vmatpush1.msra.mxu0 %v48
  %727 = vmatprep.subr.mxu0 0.0
  %728 = vmatpush1.msra.mxu0 %v49
  %729 = vmatprep.subr.mxu0 0.0
  %730 = vmatpush1.msra.mxu0 0.0
  %731 = vmatprep.subr.mxu0 0.0
  %732 = vmatpush1.msra.mxu0 0.0
  %733 = vmatprep.subr.mxu0 0.0
  %734 = vmatpush1.msra.mxu0 0.0
  %735 = vmatprep.subr.mxu0 0.0
  %736 = vmatpush1.msra.mxu0 0.0
  %737 = vmatprep.subr.mxu0 0.0
  %738 = vmatpush1.msra.mxu0 0.0
  %739 = vmatprep.subr.mxu0 0.0
  %740 = vmatpush1.msra.mxu0 0.0
  %741 = vmatprep.subr.mxu0 0.0
  %742 = vmatpush1.msra.mxu0 0.0
  %743 = vmatprep.subr.mxu0 0.0
  %744 = vmatpush1.msra.mxu0 0.0
  %745 = vmatprep.subr.mxu0 0.0
  %746 = vmatpush1.msra.mxu0 0.0
  %747 = vmatprep.subr.mxu0 0.0
  %748 = vmatpush1.msra.mxu0 0.0
  %749 = vmatprep.subr.mxu0 0.0
  %750 = vmatpush1.msra.mxu0 0.0
  %751 = vmatprep.subr.mxu0 0.0
  %752 = vmatpush1.msra.mxu0 0.0
  %753 = vmatprep.subr.mxu0 0.0
  %754 = vmatpush1.msra.mxu0 0.0
  %755 = vmatprep.subr.mxu0 0.0
  %756 = vmatpush1.msra.mxu0 0.0
  %757 = vmatprep.subr.mxu0 0.0
  %758 = vmatpush1.msra.mxu0 0.0
  %759 = vmatprep.subr.mxu0 0.0
  %760 = vmatpush1.msra.mxu0 0.0
  %761 = vmatprep.subr.mxu0 0.0
  %762 = vmatpush1.msra.mxu0 0.0
  %763 = vmatprep.subr.mxu0 0.0
  %764 = vmatpush1.msra.mxu0 0.0
  %765 = vmatprep.subr.mxu0 0.0
  %766 = vmatpush1.msra.mxu0 0.0
  %767 = vmatprep.subr.mxu0 0.0
  %768 = vmatpush1.msra.mxu0 0.0
  %769 = vmatprep.subr.mxu0 0.0
  %770 = vmatpush1.msra.mxu0 0.0
  %771 = vmatprep.subr.mxu0 0.0
  %772 = vmatpush1.msra.mxu0 0.0
  %773 = vmatprep.subr.mxu0 0.0
  %774 = vmatpush1.msra.mxu0 0.0
  %775 = vmatprep.subr.mxu0 0.0
  %776 = vmatpush1.msra.mxu0 0.0
  %777 = vmatprep.subr.mxu0 0.0
  %778 = vmatpush1.msra.mxu0 0.0
  %779 = vmatprep.subr.mxu0 0.0
  %780 = vmatpush1.msra.mxu0 0.0
  %781 = vmatprep.subr.mxu0 0.0
  %782 = vmatpush1.msra.mxu0 0.0
  %783 = vmatprep.subr.mxu0 0.0
  %784 = vmatpush1.msra.mxu0 0.0
  %785 = vmatprep.mubr.f32.mxu0 0.0
  %786 = vmatmul.mubr.f32.gmra.mrb[0].mxu0 %v719
  %v787 = vpop.f32.mrb[0].mxu0
  %v788 = vadd.f32 0.0, %v787
  %v789 = vpop.f32.mrb[0].mxu0
  %790 = vdwg.mxu0
  %792 = vrot.lane.b32.xlu0 %v718, 32
  %v793 = vpop.permute.xlu0 %792
  %v794 = vsel %vm56, %v793, 0
  %796 = vmatprep.subr.mxu0 0.0
  %797 = vmatpush1.msra.mxu0 %v42
  %798 = vmatprep.subr.mxu0 0.0
  %799 = vmatpush1.msra.mxu0 %v43
  %800 = vmatprep.subr.mxu0 0.0
  %801 = vmatpush1.msra.mxu0 %v44
  %802 = vmatprep.subr.mxu0 0.0
  %803 = vmatpush1.msra.mxu0 %v45
  %804 = vmatprep.subr.mxu0 0.0
  %805 = vmatpush1.msra.mxu0 0.0
  %806 = vmatprep.subr.mxu0 0.0
  %807 = vmatpush1.msra.mxu0 0.0
  %808 = vmatprep.subr.mxu0 0.0
  %809 = vmatpush1.msra.mxu0 0.0
  %810 = vmatprep.subr.mxu0 0.0
  %811 = vmatpush1.msra.mxu0 0.0
  %812 = vmatprep.subr.mxu0 0.0
  %813 = vmatpush1.msra.mxu0 0.0
  %814 = vmatprep.subr.mxu0 0.0
  %815 = vmatpush1.msra.mxu0 0.0
  %816 = vmatprep.subr.mxu0 0.0
  %817 = vmatpush1.msra.mxu0 0.0
  %818 = vmatprep.subr.mxu0 0.0
  %819 = vmatpush1.msra.mxu0 0.0
  %820 = vmatprep.subr.mxu0 0.0
  %821 = vmatpush1.msra.mxu0 0.0
  %822 = vmatprep.subr.mxu0 0.0
  %823 = vmatpush1.msra.mxu0 0.0
  %824 = vmatprep.subr.mxu0 0.0
  %825 = vmatpush1.msra.mxu0 0.0
  %826 = vmatprep.subr.mxu0 0.0
  %827 = vmatpush1.msra.mxu0 0.0
  %828 = vmatprep.subr.mxu0 0.0
  %829 = vmatpush1.msra.mxu0 0.0
  %830 = vmatprep.subr.mxu0 0.0
  %831 = vmatpush1.msra.mxu0 0.0
  %832 = vmatprep.subr.mxu0 0.0
  %833 = vmatpush1.msra.mxu0 0.0
  %834 = vmatprep.subr.mxu0 0.0
  %835 = vmatpush1.msra.mxu0 0.0
  %836 = vmatprep.subr.mxu0 0.0
  %837 = vmatpush1.msra.mxu0 0.0
  %838 = vmatprep.subr.mxu0 0.0
  %839 = vmatpush1.msra.mxu0 0.0
  %840 = vmatprep.subr.mxu0 0.0
  %841 = vmatpush1.msra.mxu0 0.0
  %842 = vmatprep.subr.mxu0 0.0
  %843 = vmatpush1.msra.mxu0 0.0
  %844 = vmatprep.subr.mxu0 0.0
  %845 = vmatpush1.msra.mxu0 0.0
  %846 = vmatprep.subr.mxu0 0.0
  %847 = vmatpush1.msra.mxu0 0.0
  %848 = vmatprep.subr.mxu0 0.0
  %849 = vmatpush1.msra.mxu0 0.0
  %850 = vmatprep.subr.mxu0 0.0
  %851 = vmatpush1.msra.mxu0 0.0
  %852 = vmatprep.subr.mxu0 0.0
  %853 = vmatpush1.msra.mxu0 0.0
  %854 = vmatprep.subr.mxu0 0.0
  %855 = vmatpush1.msra.mxu0 0.0
  %856 = vmatprep.subr.mxu0 0.0
  %857 = vmatpush1.msra.mxu0 0.0
  %858 = vmatprep.subr.mxu0 0.0
  %859 = vmatpush1.msra.mxu0 0.0
  %860 = vmatprep.mubr.f32.mxu0 0.0
  %861 = vmatmul.mubr.f32.gmra.mrb[0].mxu0 %v794
  %v862 = vpop.f32.mrb[0].mxu0
  %v863 = vadd.f32 %v788, %v862
  %v864 = vpop.f32.mrb[0].mxu0
  %865 = vdwg.mxu0
  %v866 = vadd.f32 %v863, %v311
  %v867 = vxor.u32 %v866, 2147483648
  %v868 = vmul.f32 %v867, 1.442695
  %v869 = vpow.pop %v868
  %v870 = vadd.f32 %v869, 1.0
  %v871 = vrcp.pop %v870
  %v872 = vmul.f32 1.0, %v871
  %v873 = vtanh.pop %v866
  %v874 = vmul.f32 %v872, %v609
  %876 = vrot.lane.b32.xlu0 %v873, 64
  %v877 = vpop.permute.xlu0 %876
  %v879 = vmul.f32 %v872, %v877
  %881 = vrot.lane.b32.xlu0 %v879, 32
  %v882 = vpop.permute.xlu0 %881
  %v884 = vadd.f32 %v874, %v882
  %v885 = vtanh.pop %v884
  %887 = vrot.lane.b32.xlu0 %v885, 64
  %v888 = vpop.permute.xlu0 %887
  %v890 = vmul.f32 %v872, %v888
  %892 = vrot.lane.b32.xlu0 %v890, 32
  %v893 = vpop.permute.xlu0 %892
  %s895 = scalar_lea.vmem %s7, 16
  %896 = vst.msk [vmem:[%s895] sm:$0xff] %vm56, %v893
  %s897 = scalar_lea.vmem %s0, 24
  %v898 = vld [vmem:[%s897] sm:$0xff]
  %899 = vmatprep.subr.mxu0 0.0
  %900 = vmatpush1.msra.mxu0 %v38
  %901 = vmatprep.subr.mxu0 0.0
  %902 = vmatpush1.msra.mxu0 %v39
  %903 = vmatprep.subr.mxu0 0.0
  %904 = vmatpush1.msra.mxu0 %v40
  %905 = vmatprep.subr.mxu0 0.0
  %906 = vmatpush1.msra.mxu0 %v41
  %907 = vmatprep.subr.mxu0 0.0
  %908 = vmatpush1.msra.mxu0 0.0
  %909 = vmatprep.subr.mxu0 0.0
  %910 = vmatpush1.msra.mxu0 0.0
  %911 = vmatprep.subr.mxu0 0.0
  %912 = vmatpush1.msra.mxu0 0.0
  %913 = vmatprep.subr.mxu0 0.0
  %914 = vmatpush1.msra.mxu0 0.0
  %915 = vmatprep.subr.mxu0 0.0
  %916 = vmatpush1.msra.mxu0 0.0
  %917 = vmatprep.subr.mxu0 0.0
  %918 = vmatpush1.msra.mxu0 0.0
  %919 = vmatprep.subr.mxu0 0.0
  %920 = vmatpush1.msra.mxu0 0.0
  %921 = vmatprep.subr.mxu0 0.0
  %922 = vmatpush1.msra.mxu0 0.0
  %923 = vmatprep.subr.mxu0 0.0
  %924 = vmatpush1.msra.mxu0 0.0
  %925 = vmatprep.subr.mxu0 0.0
  %926 = vmatpush1.msra.mxu0 0.0
  %927 = vmatprep.subr.mxu0 0.0
  %928 = vmatpush1.msra.mxu0 0.0
  %929 = vmatprep.subr.mxu0 0.0
  %930 = vmatpush1.msra.mxu0 0.0
  %931 = vmatprep.subr.mxu0 0.0
  %932 = vmatpush1.msra.mxu0 0.0
  %933 = vmatprep.subr.mxu0 0.0
  %934 = vmatpush1.msra.mxu0 0.0
  %935 = vmatprep.subr.mxu0 0.0
  %936 = vmatpush1.msra.mxu0 0.0
  %937 = vmatprep.subr.mxu0 0.0
  %938 = vmatpush1.msra.mxu0 0.0
  %939 = vmatprep.subr.mxu0 0.0
  %940 = vmatpush1.msra.mxu0 0.0
  %941 = vmatprep.subr.mxu0 0.0
  %942 = vmatpush1.msra.mxu0 0.0
  %943 = vmatprep.subr.mxu0 0.0
  %944 = vmatpush1.msra.mxu0 0.0
  %945 = vmatprep.subr.mxu0 0.0
  %946 = vmatpush1.msra.mxu0 0.0
  %947 = vmatprep.subr.mxu0 0.0
  %948 = vmatpush1.msra.mxu0 0.0
  %949 = vmatprep.subr.mxu0 0.0
  %950 = vmatpush1.msra.mxu0 0.0
  %951 = vmatprep.subr.mxu0 0.0
  %952 = vmatpush1.msra.mxu0 0.0
  %953 = vmatprep.subr.mxu0 0.0
  %954 = vmatpush1.msra.mxu0 0.0
  %955 = vmatprep.subr.mxu0 0.0
  %956 = vmatpush1.msra.mxu0 0.0
  %957 = vmatprep.subr.mxu0 0.0
  %958 = vmatpush1.msra.mxu0 0.0
  %959 = vmatprep.subr.mxu0 0.0
  %960 = vmatpush1.msra.mxu0 0.0
  %961 = vmatprep.subr.mxu0 0.0
  %962 = vmatpush1.msra.mxu0 0.0
  %963 = vmatprep.mubr.f32.mxu0 0.0
  %964 = vmatmul.mubr.f32.gmra.mrb[0].mxu0 %v794
  %v965 = vpop.f32.mrb[0].mxu0
  %v966 = vadd.f32 0.0, %v965
  %v967 = vpop.f32.mrb[0].mxu0
  %968 = vdwg.mxu0
  %v969 = vadd.f32 %v898, %v966
  %v970 = vxor.u32 %v969, 2147483648
  %v971 = vmul.f32 %v970, 1.442695
  %v972 = vpow.pop %v971
  %v973 = vadd.f32 %v972, 1.0
  %v974 = vrcp.pop %v973
  %v975 = vmul.f32 1.0, %v974
  %v976 = vtanh.pop %v969
  %v977 = vmul.f32 %v975, %v712
  %979 = vrot.lane.b32.xlu0 %v976, 64
  %v980 = vpop.permute.xlu0 %979
  %v982 = vmul.f32 %v975, %v980
  %984 = vrot.lane.b32.xlu0 %v982, 32
  %v985 = vpop.permute.xlu0 %984
  %v987 = vadd.f32 %v977, %v985
  %v988 = vtanh.pop %v987
  %990 = vrot.lane.b32.xlu0 %v988, 64
  %v991 = vpop.permute.xlu0 %990
  %v993 = vmul.f32 %v975, %v991
  %v994 = vsel %vm56, %v893, 0
  %996 = vmatprep.subr.mxu0 0.0
  %997 = vmatpush1.msra.mxu0 %v46
  %998 = vmatprep.subr.mxu0 0.0
  %999 = vmatpush1.msra.mxu0 %v47
  %1000 = vmatprep.subr.mxu0 0.0
  %1001 = vmatpush1.msra.mxu0 %v48
  %1002 = vmatprep.subr.mxu0 0.0
  %1003 = vmatpush1.msra.mxu0 %v49
  %1004 = vmatprep.subr.mxu0 0.0
  %1005 = vmatpush1.msra.mxu0 0.0
  %1006 = vmatprep.subr.mxu0 0.0
  %1007 = vmatpush1.msra.mxu0 0.0
  %1008 = vmatprep.subr.mxu0 0.0
  %1009 = vmatpush1.msra.mxu0 0.0
  %1010 = vmatprep.subr.mxu0 0.0
  %1011 = vmatpush1.msra.mxu0 0.0
  %1012 = vmatprep.subr.mxu0 0.0
  %1013 = vmatpush1.msra.mxu0 0.0
  %1014 = vmatprep.subr.mxu0 0.0
  %1015 = vmatpush1.msra.mxu0 0.0
  %1016 = vmatprep.subr.mxu0 0.0
  %1017 = vmatpush1.msra.mxu0 0.0
  %1018 = vmatprep.subr.mxu0 0.0
  %1019 = vmatpush1.msra.mxu0 0.0
  %1020 = vmatprep.subr.mxu0 0.0
  %1021 = vmatpush1.msra.mxu0 0.0
  %1022 = vmatprep.subr.mxu0 0.0
  %1023 = vmatpush1.msra.mxu0 0.0
  %1024 = vmatprep.subr.mxu0 0.0
  %1025 = vmatpush1.msra.mxu0 0.0
  %1026 = vmatprep.subr.mxu0 0.0
  %1027 = vmatpush1.msra.mxu0 0.0
  %1028 = vmatprep.subr.mxu0 0.0
  %1029 = vmatpush1.msra.mxu0 0.0
  %1030 = vmatprep.subr.mxu0 0.0
  %1031 = vmatpush1.msra.mxu0 0.0
  %1032 = vmatprep.subr.mxu0 0.0
  %1033 = vmatpush1.msra.mxu0 0.0
  %1034 = vmatprep.subr.mxu0 0.0
  %1035 = vmatpush1.msra.mxu0 0.0
  %1036 = vmatprep.subr.mxu0 0.0
  %1037 = vmatpush1.msra.mxu0 0.0
  %1038 = vmatprep.subr.mxu0 0.0
  %1039 = vmatpush1.msra.mxu0 0.0
  %1040 = vmatprep.subr.mxu0 0.0
  %1041 = vmatpush1.msra.mxu0 0.0
  %1042 = vmatprep.subr.mxu0 0.0
  %1043 = vmatpush1.msra.mxu0 0.0
  %1044 = vmatprep.subr.mxu0 0.0
  %1045 = vmatpush1.msra.mxu0 0.0
  %1046 = vmatprep.subr.mxu0 0.0
  %1047 = vmatpush1.msra.mxu0 0.0
  %1048 = vmatprep.subr.mxu0 0.0
  %1049 = vmatpush1.msra.mxu0 0.0
  %1050 = vmatprep.subr.mxu0 0.0
  %1051 = vmatpush1.msra.mxu0 0.0
  %1052 = vmatprep.subr.mxu0 0.0
  %1053 = vmatpush1.msra.mxu0 0.0
  %1054 = vmatprep.subr.mxu0 0.0
  %1055 = vmatpush1.msra.mxu0 0.0
  %1056 = vmatprep.subr.mxu0 0.0
  %1057 = vmatpush1.msra.mxu0 0.0
  %1058 = vmatprep.subr.mxu0 0.0
  %1059 = vmatpush1.msra.mxu0 0.0
  %1060 = vmatprep.mubr.f32.mxu0 0.0
  %1061 = vmatmul.mubr.f32.gmra.mrb[0].mxu0 %v994
  %v1062 = vpop.f32.mrb[0].mxu0
  %v1063 = vadd.f32 0.0, %v1062
  %v1064 = vpop.f32.mrb[0].mxu0
  %1065 = vdwg.mxu0
  %1067 = vrot.lane.b32.xlu0 %v993, 32
  %v1068 = vpop.permute.xlu0 %1067
  %v1069 = vsel %vm56, %v1068, 0
  %1071 = vmatprep.subr.mxu0 0.0
  %1072 = vmatpush1.msra.mxu0 %v42
  %1073 = vmatprep.subr.mxu0 0.0
  %1074 = vmatpush1.msra.mxu0 %v43
  %1075 = vmatprep.subr.mxu0 0.0
  %1076 = vmatpush1.msra.mxu0 %v44
  %1077 = vmatprep.subr.mxu0 0.0
  %1078 = vmatpush1.msra.mxu0 %v45
  %1079 = vmatprep.subr.mxu0 0.0
  %1080 = vmatpush1.msra.mxu0 0.0
  %1081 = vmatprep.subr.mxu0 0.0
  %1082 = vmatpush1.msra.mxu0 0.0
  %1083 = vmatprep.subr.mxu0 0.0
  %1084 = vmatpush1.msra.mxu0 0.0
  %1085 = vmatprep.subr.mxu0 0.0
  %1086 = vmatpush1.msra.mxu0 0.0
  %1087 = vmatprep.subr.mxu0 0.0
  %1088 = vmatpush1.msra.mxu0 0.0
  %1089 = vmatprep.subr.mxu0 0.0
  %1090 = vmatpush1.msra.mxu0 0.0
  %1091 = vmatprep.subr.mxu0 0.0
  %1092 = vmatpush1.msra.mxu0 0.0
  %1093 = vmatprep.subr.mxu0 0.0
  %1094 = vmatpush1.msra.mxu0 0.0
  %1095 = vmatprep.subr.mxu0 0.0
  %1096 = vmatpush1.msra.mxu0 0.0
  %1097 = vmatprep.subr.mxu0 0.0
  %1098 = vmatpush1.msra.mxu0 0.0
  %1099 = vmatprep.subr.mxu0 0.0
  %1100 = vmatpush1.msra.mxu0 0.0
  %1101 = vmatprep.subr.mxu0 0.0
  %1102 = vmatpush1.msra.mxu0 0.0
  %1103 = vmatprep.subr.mxu0 0.0
  %1104 = vmatpush1.msra.mxu0 0.0
  %1105 = vmatprep.subr.mxu0 0.0
  %1106 = vmatpush1.msra.mxu0 0.0
  %1107 = vmatprep.subr.mxu0 0.0
  %1108 = vmatpush1.msra.mxu0 0.0
  %1109 = vmatprep.subr.mxu0 0.0
  %1110 = vmatpush1.msra.mxu0 0.0
  %1111 = vmatprep.subr.mxu0 0.0
  %1112 = vmatpush1.msra.mxu0 0.0
  %1113 = vmatprep.subr.mxu0 0.0
  %1114 = vmatpush1.msra.mxu0 0.0
  %1115 = vmatprep.subr.mxu0 0.0
  %1116 = vmatpush1.msra.mxu0 0.0
  %1117 = vmatprep.subr.mxu0 0.0
  %1118 = vmatpush1.msra.mxu0 0.0
  %1119 = vmatprep.subr.mxu0 0.0
  %1120 = vmatpush1.msra.mxu0 0.0
  %1121 = vmatprep.subr.mxu0 0.0
  %1122 = vmatpush1.msra.mxu0 0.0
  %1123 = vmatprep.subr.mxu0 0.0
  %1124 = vmatpush1.msra.mxu0 0.0
  %1125 = vmatprep.subr.mxu0 0.0
  %1126 = vmatpush1.msra.mxu0 0.0
  %1127 = vmatprep.subr.mxu0 0.0
  %1128 = vmatpush1.msra.mxu0 0.0
  %1129 = vmatprep.subr.mxu0 0.0
  %1130 = vmatpush1.msra.mxu0 0.0
  %1131 = vmatprep.subr.mxu0 0.0
  %1132 = vmatpush1.msra.mxu0 0.0
  %1133 = vmatprep.subr.mxu0 0.0
  %1134 = vmatpush1.msra.mxu0 0.0
  %1135 = vmatprep.mubr.f32.mxu0 0.0
  %1136 = vmatmul.mubr.f32.gmra.mrb[0].mxu0 %v1069
  %v1137 = vpop.f32.mrb[0].mxu0
  %v1138 = vadd.f32 %v1063, %v1137
  %v1139 = vpop.f32.mrb[0].mxu0
  %1140 = vdwg.mxu0
  %v1141 = vadd.f32 %v1138, %v311
  %v1142 = vxor.u32 %v1141, 2147483648
  %v1143 = vmul.f32 %v1142, 1.442695
  %v1144 = vpow.pop %v1143
  %v1145 = vadd.f32 %v1144, 1.0
  %v1146 = vrcp.pop %v1145
  %v1147 = vmul.f32 1.0, %v1146
  %v1148 = vtanh.pop %v1141
  %v1149 = vmul.f32 %v1147, %v884
  %1151 = vrot.lane.b32.xlu0 %v1148, 64
  %v1152 = vpop.permute.xlu0 %1151
  %v1154 = vmul.f32 %v1147, %v1152
  %1156 = vrot.lane.b32.xlu0 %v1154, 32
  %v1157 = vpop.permute.xlu0 %1156
  %v1159 = vadd.f32 %v1149, %v1157
  %v1160 = vtanh.pop %v1159
  %1162 = vrot.lane.b32.xlu0 %v1160, 64
  %v1163 = vpop.permute.xlu0 %1162
  %v1165 = vmul.f32 %v1147, %v1163
  %1167 = vrot.lane.b32.xlu0 %v1165, 32
  %v1168 = vpop.permute.xlu0 %1167
  %s1170 = scalar_lea.vmem %s7, 24
  %1171 = vst.msk [vmem:[%s1170] sm:$0xff] %vm56, %v1168
  %s1172 = scalar_lea.vmem %s0, 32
  %v1173 = vld [vmem:[%s1172] sm:$0xff]
  %1174 = vmatprep.subr.mxu0 0.0
  %1175 = vmatpush1.msra.mxu0 %v38
  %1176 = vmatprep.subr.mxu0 0.0
  %1177 = vmatpush1.msra.mxu0 %v39
  %1178 = vmatprep.subr.mxu0 0.0
  %1179 = vmatpush1.msra.mxu0 %v40
  %1180 = vmatprep.subr.mxu0 0.0
  %1181 = vmatpush1.msra.mxu0 %v41
  %1182 = vmatprep.subr.mxu0 0.0
  %1183 = vmatpush1.msra.mxu0 0.0
  %1184 = vmatprep.subr.mxu0 0.0
  %1185 = vmatpush1.msra.mxu0 0.0
  %1186 = vmatprep.subr.mxu0 0.0
  %1187 = vmatpush1.msra.mxu0 0.0
  %1188 = vmatprep.subr.mxu0 0.0
  %1189 = vmatpush1.msra.mxu0 0.0
  %1190 = vmatprep.subr.mxu0 0.0
  %1191 = vmatpush1.msra.mxu0 0.0
  %1192 = vmatprep.subr.mxu0 0.0
  %1193 = vmatpush1.msra.mxu0 0.0
  %1194 = vmatprep.subr.mxu0 0.0
  %1195 = vmatpush1.msra.mxu0 0.0
  %1196 = vmatprep.subr.mxu0 0.0
  %1197 = vmatpush1.msra.mxu0 0.0
  %1198 = vmatprep.subr.mxu0 0.0
  %1199 = vmatpush1.msra.mxu0 0.0
  %1200 = vmatprep.subr.mxu0 0.0
  %1201 = vmatpush1.msra.mxu0 0.0
  %1202 = vmatprep.subr.mxu0 0.0
  %1203 = vmatpush1.msra.mxu0 0.0
  %1204 = vmatprep.subr.mxu0 0.0
  %1205 = vmatpush1.msra.mxu0 0.0
  %1206 = vmatprep.subr.mxu0 0.0
  %1207 = vmatpush1.msra.mxu0 0.0
  %1208 = vmatprep.subr.mxu0 0.0
  %1209 = vmatpush1.msra.mxu0 0.0
  %1210 = vmatprep.subr.mxu0 0.0
  %1211 = vmatpush1.msra.mxu0 0.0
  %1212 = vmatprep.subr.mxu0 0.0
  %1213 = vmatpush1.msra.mxu0 0.0
  %1214 = vmatprep.subr.mxu0 0.0
  %1215 = vmatpush1.msra.mxu0 0.0
  %1216 = vmatprep.subr.mxu0 0.0
  %1217 = vmatpush1.msra.mxu0 0.0
  %1218 = vmatprep.subr.mxu0 0.0
  %1219 = vmatpush1.msra.mxu0 0.0
  %1220 = vmatprep.subr.mxu0 0.0
  %1221 = vmatpush1.msra.mxu0 0.0
  %1222 = vmatprep.subr.mxu0 0.0
  %1223 = vmatpush1.msra.mxu0 0.0
  %1224 = vmatprep.subr.mxu0 0.0
  %1225 = vmatpush1.msra.mxu0 0.0
  %1226 = vmatprep.subr.mxu0 0.0
  %1227 = vmatpush1.msra.mxu0 0.0
  %1228 = vmatprep.subr.mxu0 0.0
  %1229 = vmatpush1.msra.mxu0 0.0
  %1230 = vmatprep.subr.mxu0 0.0
  %1231 = vmatpush1.msra.mxu0 0.0
  %1232 = vmatprep.subr.mxu0 0.0
  %1233 = vmatpush1.msra.mxu0 0.0
  %1234 = vmatprep.subr.mxu0 0.0
  %1235 = vmatpush1.msra.mxu0 0.0
  %1236 = vmatprep.subr.mxu0 0.0
  %1237 = vmatpush1.msra.mxu0 0.0
  %1238 = vmatprep.mubr.f32.mxu0 0.0
  %1239 = vmatmul.mubr.f32.gmra.mrb[0].mxu0 %v1069
  %v1240 = vpop.f32.mrb[0].mxu0
  %v1241 = vadd.f32 0.0, %v1240
  %v1242 = vpop.f32.mrb[0].mxu0
  %1243 = vdwg.mxu0
  %v1244 = vadd.f32 %v1173, %v1241
  %v1245 = vxor.u32 %v1244, 2147483648
  %v1246 = vmul.f32 %v1245, 1.442695
  %v1247 = vpow.pop %v1246
  %v1248 = vadd.f32 %v1247, 1.0
  %v1249 = vrcp.pop %v1248
  %v1250 = vmul.f32 1.0, %v1249
  %v1251 = vtanh.pop %v1244
  %v1252 = vmul.f32 %v1250, %v987
  %1254 = vrot.lane.b32.xlu0 %v1251, 64
  %v1255 = vpop.permute.xlu0 %1254
  %v1257 = vmul.f32 %v1250, %v1255
  %1259 = vrot.lane.b32.xlu0 %v1257, 32
  %v1260 = vpop.permute.xlu0 %1259
  %v1262 = vadd.f32 %v1252, %v1260
  %v1263 = vtanh.pop %v1262
  %1265 = vrot.lane.b32.xlu0 %v1263, 64
  %v1266 = vpop.permute.xlu0 %1265
  %v1268 = vmul.f32 %v1250, %v1266
  %v1269 = vsel %vm56, %v1168, 0
  %1271 = vmatprep.subr.mxu0 0.0
  %1272 = vmatpush1.msra.mxu0 %v46
  %1273 = vmatprep.subr.mxu0 0.0
  %1274 = vmatpush1.msra.mxu0 %v47
  %1275 = vmatprep.subr.mxu0 0.0
  %1276 = vmatpush1.msra.mxu0 %v48
  %1277 = vmatprep.subr.mxu0 0.0
  %1278 = vmatpush1.msra.mxu0 %v49
  %1279 = vmatprep.subr.mxu0 0.0
  %1280 = vmatpush1.msra.mxu0 0.0
  %1281 = vmatprep.subr.mxu0 0.0
  %1282 = vmatpush1.msra.mxu0 0.0
  %1283 = vmatprep.subr.mxu0 0.0
  %1284 = vmatpush1.msra.mxu0 0.0
  %1285 = vmatprep.subr.mxu0 0.0
  %1286 = vmatpush1.msra.mxu0 0.0
  %1287 = vmatprep.subr.mxu0 0.0
  %1288 = vmatpush1.msra.mxu0 0.0
  %1289 = vmatprep.subr.mxu0 0.0
  %1290 = vmatpush1.msra.mxu0 0.0
  %1291 = vmatprep.subr.mxu0 0.0
  %1292 = vmatpush1.msra.mxu0 0.0
  %1293 = vmatprep.subr.mxu0 0.0
  %1294 = vmatpush1.msra.mxu0 0.0
  %1295 = vmatprep.subr.mxu0 0.0
  %1296 = vmatpush1.msra.mxu0 0.0
  %1297 = vmatprep.subr.mxu0 0.0
  %1298 = vmatpush1.msra.mxu0 0.0
  %1299 = vmatprep.subr.mxu0 0.0
  %1300 = vmatpush1.msra.mxu0 0.0
  %1301 = vmatprep.subr.mxu0 0.0
  %1302 = vmatpush1.msra.mxu0 0.0
  %1303 = vmatprep.subr.mxu0 0.0
  %1304 = vmatpush1.msra.mxu0 0.0
  %1305 = vmatprep.subr.mxu0 0.0
  %1306 = vmatpush1.msra.mxu0 0.0
  %1307 = vmatprep.subr.mxu0 0.0
  %1308 = vmatpush1.msra.mxu0 0.0
  %1309 = vmatprep.subr.mxu0 0.0
  %1310 = vmatpush1.msra.mxu0 0.0
  %1311 = vmatprep.subr.mxu0 0.0
  %1312 = vmatpush1.msra.mxu0 0.0
  %1313 = vmatprep.subr.mxu0 0.0
  %1314 = vmatpush1.msra.mxu0 0.0
  %1315 = vmatprep.subr.mxu0 0.0
  %1316 = vmatpush1.msra.mxu0 0.0
  %1317 = vmatprep.subr.mxu0 0.0
  %1318 = vmatpush1.msra.mxu0 0.0
  %1319 = vmatprep.subr.mxu0 0.0
  %1320 = vmatpush1.msra.mxu0 0.0
  %1321 = vmatprep.subr.mxu0 0.0
  %1322 = vmatpush1.msra.mxu0 0.0
  %1323 = vmatprep.subr.mxu0 0.0
  %1324 = vmatpush1.msra.mxu0 0.0
  %1325 = vmatprep.subr.mxu0 0.0
  %1326 = vmatpush1.msra.mxu0 0.0
  %1327 = vmatprep.subr.mxu0 0.0
  %1328 = vmatpush1.msra.mxu0 0.0
  %1329 = vmatprep.subr.mxu0 0.0
  %1330 = vmatpush1.msra.mxu0 0.0
  %1331 = vmatprep.subr.mxu0 0.0
  %1332 = vmatpush1.msra.mxu0 0.0
  %1333 = vmatprep.subr.mxu0 0.0
  %1334 = vmatpush1.msra.mxu0 0.0
  %1335 = vmatprep.mubr.f32.mxu0 0.0
  %1336 = vmatmul.mubr.f32.gmra.mrb[0].mxu0 %v1269
  %v1337 = vpop.f32.mrb[0].mxu0
  %v1338 = vadd.f32 0.0, %v1337
  %v1339 = vpop.f32.mrb[0].mxu0
  %1340 = vdwg.mxu0
  %1342 = vrot.lane.b32.xlu0 %v1268, 32
  %v1343 = vpop.permute.xlu0 %1342
  %v1344 = vsel %vm56, %v1343, 0
  %1346 = vmatprep.subr.mxu0 0.0
  %1347 = vmatpush1.msra.mxu0 %v42
  %1348 = vmatprep.subr.mxu0 0.0
  %1349 = vmatpush1.msra.mxu0 %v43
  %1350 = vmatprep.subr.mxu0 0.0
  %1351 = vmatpush1.msra.mxu0 %v44
  %1352 = vmatprep.subr.mxu0 0.0
  %1353 = vmatpush1.msra.mxu0 %v45
  %1354 = vmatprep.subr.mxu0 0.0
  %1355 = vmatpush1.msra.mxu0 0.0
  %1356 = vmatprep.subr.mxu0 0.0
  %1357 = vmatpush1.msra.mxu0 0.0
  %1358 = vmatprep.subr.mxu0 0.0
  %1359 = vmatpush1.msra.mxu0 0.0
  %1360 = vmatprep.subr.mxu0 0.0
  %1361 = vmatpush1.msra.mxu0 0.0
  %1362 = vmatprep.subr.mxu0 0.0
  %1363 = vmatpush1.msra.mxu0 0.0
  %1364 = vmatprep.subr.mxu0 0.0
  %1365 = vmatpush1.msra.mxu0 0.0
  %1366 = vmatprep.subr.mxu0 0.0
  %1367 = vmatpush1.msra.mxu0 0.0
  %1368 = vmatprep.subr.mxu0 0.0
  %1369 = vmatpush1.msra.mxu0 0.0
  %1370 = vmatprep.subr.mxu0 0.0
  %1371 = vmatpush1.msra.mxu0 0.0
  %1372 = vmatprep.subr.mxu0 0.0
  %1373 = vmatpush1.msra.mxu0 0.0
  %1374 = vmatprep.subr.mxu0 0.0
  %1375 = vmatpush1.msra.mxu0 0.0
  %1376 = vmatprep.subr.mxu0 0.0
  %1377 = vmatpush1.msra.mxu0 0.0
  %1378 = vmatprep.subr.mxu0 0.0
  %1379 = vmatpush1.msra.mxu0 0.0
  %1380 = vmatprep.subr.mxu0 0.0
  %1381 = vmatpush1.msra.mxu0 0.0
  %1382 = vmatprep.subr.mxu0 0.0
  %1383 = vmatpush1.msra.mxu0 0.0
  %1384 = vmatprep.subr.mxu0 0.0
  %1385 = vmatpush1.msra.mxu0 0.0
  %1386 = vmatprep.subr.mxu0 0.0
  %1387 = vmatpush1.msra.mxu0 0.0
  %1388 = vmatprep.subr.mxu0 0.0
  %1389 = vmatpush1.msra.mxu0 0.0
  %1390 = vmatprep.subr.mxu0 0.0
  %1391 = vmatpush1.msra.mxu0 0.0
  %1392 = vmatprep.subr.mxu0 0.0
  %1393 = vmatpush1.msra.mxu0 0.0
  %1394 = vmatprep.subr.mxu0 0.0
  %1395 = vmatpush1.msra.mxu0 0.0
  %1396 = vmatprep.subr.mxu0 0.0
  %1397 = vmatpush1.msra.mxu0 0.0
  %1398 = vmatprep.subr.mxu0 0.0
  %1399 = vmatpush1.msra.mxu0 0.0
  %1400 = vmatprep.subr.mxu0 0.0
  %1401 = vmatpush1.msra.mxu0 0.0
  %1402 = vmatprep.subr.mxu0 0.0
  %1403 = vmatpush1.msra.mxu0 0.0
  %1404 = vmatprep.subr.mxu0 0.0
  %1405 = vmatpush1.msra.mxu0 0.0
  %1406 = vmatprep.subr.mxu0 0.0
  %1407 = vmatpush1.msra.mxu0 0.0
  %1408 = vmatprep.subr.mxu0 0.0
  %1409 = vmatpush1.msra.mxu0 0.0
  %1410 = vmatprep.mubr.f32.mxu0 0.0
  %1411 = vmatmul.mubr.f32.gmra.mrb[0].mxu0 %v1344
  %v1412 = vpop.f32.mrb[0].mxu0
  %v1413 = vadd.f32 %v1338, %v1412
  %v1414 = vpop.f32.mrb[0].mxu0
  %1415 = vdwg.mxu0
  %v1416 = vadd.f32 %v1413, %v311
  %v1417 = vxor.u32 %v1416, 2147483648
  %v1418 = vmul.f32 %v1417, 1.442695
  %v1419 = vpow.pop %v1418
  %v1420 = vadd.f32 %v1419, 1.0
  %v1421 = vrcp.pop %v1420
  %v1422 = vmul.f32 1.0, %v1421
  %v1423 = vtanh.pop %v1416
  %v1424 = vmul.f32 %v1422, %v1159
  %1426 = vrot.lane.b32.xlu0 %v1423, 64
  %v1427 = vpop.permute.xlu0 %1426
  %v1429 = vmul.f32 %v1422, %v1427
  %1431 = vrot.lane.b32.xlu0 %v1429, 32
  %v1432 = vpop.permute.xlu0 %1431
  %v1434 = vadd.f32 %v1424, %v1432
  %v1435 = vtanh.pop %v1434
  %1437 = vrot.lane.b32.xlu0 %v1435, 64
  %v1438 = vpop.permute.xlu0 %1437
  %v1440 = vmul.f32 %v1422, %v1438
  %1442 = vrot.lane.b32.xlu0 %v1440, 32
  %v1443 = vpop.permute.xlu0 %1442
  %s1445 = scalar_lea.vmem %s7, 32
  %1446 = vst.msk [vmem:[%s1445] sm:$0xff] %vm56, %v1443
  %s1447 = scalar_lea.vmem %s0, 40
  %v1448 = vld [vmem:[%s1447] sm:$0xff]
  %1449 = vmatprep.subr.mxu0 0.0
  %1450 = vmatpush1.msra.mxu0 %v38
  %1451 = vmatprep.subr.mxu0 0.0
  %1452 = vmatpush1.msra.mxu0 %v39
  %1453 = vmatprep.subr.mxu0 0.0
  %1454 = vmatpush1.msra.mxu0 %v40
  %1455 = vmatprep.subr.mxu0 0.0
  %1456 = vmatpush1.msra.mxu0 %v41
  %1457 = vmatprep.subr.mxu0 0.0
  %1458 = vmatpush1.msra.mxu0 0.0
  %1459 = vmatprep.subr.mxu0 0.0
  %1460 = vmatpush1.msra.mxu0 0.0
  %1461 = vmatprep.subr.mxu0 0.0
  %1462 = vmatpush1.msra.mxu0 0.0
  %1463 = vmatprep.subr.mxu0 0.0
  %1464 = vmatpush1.msra.mxu0 0.0
  %1465 = vmatprep.subr.mxu0 0.0
  %1466 = vmatpush1.msra.mxu0 0.0
  %1467 = vmatprep.subr.mxu0 0.0
  %1468 = vmatpush1.msra.mxu0 0.0
  %1469 = vmatprep.subr.mxu0 0.0
  %1470 = vmatpush1.msra.mxu0 0.0
  %1471 = vmatprep.subr.mxu0 0.0
  %1472 = vmatpush1.msra.mxu0 0.0
  %1473 = vmatprep.subr.mxu0 0.0
  %1474 = vmatpush1.msra.mxu0 0.0
  %1475 = vmatprep.subr.mxu0 0.0
  %1476 = vmatpush1.msra.mxu0 0.0
  %1477 = vmatprep.subr.mxu0 0.0
  %1478 = vmatpush1.msra.mxu0 0.0
  %1479 = vmatprep.subr.mxu0 0.0
  %1480 = vmatpush1.msra.mxu0 0.0
  %1481 = vmatprep.subr.mxu0 0.0
  %1482 = vmatpush1.msra.mxu0 0.0
  %1483 = vmatprep.subr.mxu0 0.0
  %1484 = vmatpush1.msra.mxu0 0.0
  %1485 = vmatprep.subr.mxu0 0.0
  %1486 = vmatpush1.msra.mxu0 0.0
  %1487 = vmatprep.subr.mxu0 0.0
  %1488 = vmatpush1.msra.mxu0 0.0
  %1489 = vmatprep.subr.mxu0 0.0
  %1490 = vmatpush1.msra.mxu0 0.0
  %1491 = vmatprep.subr.mxu0 0.0
  %1492 = vmatpush1.msra.mxu0 0.0
  %1493 = vmatprep.subr.mxu0 0.0
  %1494 = vmatpush1.msra.mxu0 0.0
  %1495 = vmatprep.subr.mxu0 0.0
  %1496 = vmatpush1.msra.mxu0 0.0
  %1497 = vmatprep.subr.mxu0 0.0
  %1498 = vmatpush1.msra.mxu0 0.0
  %1499 = vmatprep.subr.mxu0 0.0
  %1500 = vmatpush1.msra.mxu0 0.0
  %1501 = vmatprep.subr.mxu0 0.0
  %1502 = vmatpush1.msra.mxu0 0.0
  %1503 = vmatprep.subr.mxu0 0.0
  %1504 = vmatpush1.msra.mxu0 0.0
  %1505 = vmatprep.subr.mxu0 0.0
  %1506 = vmatpush1.msra.mxu0 0.0
  %1507 = vmatprep.subr.mxu0 0.0
  %1508 = vmatpush1.msra.mxu0 0.0
  %1509 = vmatprep.subr.mxu0 0.0
  %1510 = vmatpush1.msra.mxu0 0.0
  %1511 = vmatprep.subr.mxu0 0.0
  %1512 = vmatpush1.msra.mxu0 0.0
  %1513 = vmatprep.mubr.f32.mxu0 0.0
  %1514 = vmatmul.mubr.f32.gmra.mrb[0].mxu0 %v1344
  %v1515 = vpop.f32.mrb[0].mxu0
  %v1516 = vadd.f32 0.0, %v1515
  %v1517 = vpop.f32.mrb[0].mxu0
  %1518 = vdwg.mxu0
  %v1519 = vadd.f32 %v1448, %v1516
  %v1520 = vxor.u32 %v1519, 2147483648
  %v1521 = vmul.f32 %v1520, 1.442695
  %v1522 = vpow.pop %v1521
  %v1523 = vadd.f32 %v1522, 1.0
  %v1524 = vrcp.pop %v1523
  %v1525 = vmul.f32 1.0, %v1524
  %v1526 = vtanh.pop %v1519
  %v1527 = vmul.f32 %v1525, %v1262
  %1529 = vrot.lane.b32.xlu0 %v1526, 64
  %v1530 = vpop.permute.xlu0 %1529
  %v1532 = vmul.f32 %v1525, %v1530
  %1534 = vrot.lane.b32.xlu0 %v1532, 32
  %v1535 = vpop.permute.xlu0 %1534
  %v1537 = vadd.f32 %v1527, %v1535
  %v1538 = vtanh.pop %v1537
  %1540 = vrot.lane.b32.xlu0 %v1538, 64
  %v1541 = vpop.permute.xlu0 %1540
  %v1543 = vmul.f32 %v1525, %v1541
  %v1544 = vsel %vm56, %v1443, 0
  %1546 = vmatprep.subr.mxu0 0.0
  %1547 = vmatpush1.msra.mxu0 %v46
  %1548 = vmatprep.subr.mxu0 0.0
  %1549 = vmatpush1.msra.mxu0 %v47
  %1550 = vmatprep.subr.mxu0 0.0
  %1551 = vmatpush1.msra.mxu0 %v48
  %1552 = vmatprep.subr.mxu0 0.0
  %1553 = vmatpush1.msra.mxu0 %v49
  %1554 = vmatprep.subr.mxu0 0.0
  %1555 = vmatpush1.msra.mxu0 0.0
  %1556 = vmatprep.subr.mxu0 0.0
  %1557 = vmatpush1.msra.mxu0 0.0
  %1558 = vmatprep.subr.mxu0 0.0
  %1559 = vmatpush1.msra.mxu0 0.0
  %1560 = vmatprep.subr.mxu0 0.0
  %1561 = vmatpush1.msra.mxu0 0.0
  %1562 = vmatprep.subr.mxu0 0.0
  %1563 = vmatpush1.msra.mxu0 0.0
  %1564 = vmatprep.subr.mxu0 0.0
  %1565 = vmatpush1.msra.mxu0 0.0
  %1566 = vmatprep.subr.mxu0 0.0
  %1567 = vmatpush1.msra.mxu0 0.0
  %1568 = vmatprep.subr.mxu0 0.0
  %1569 = vmatpush1.msra.mxu0 0.0
  %1570 = vmatprep.subr.mxu0 0.0
  %1571 = vmatpush1.msra.mxu0 0.0
  %1572 = vmatprep.subr.mxu0 0.0
  %1573 = vmatpush1.msra.mxu0 0.0
  %1574 = vmatprep.subr.mxu0 0.0
  %1575 = vmatpush1.msra.mxu0 0.0
  %1576 = vmatprep.subr.mxu0 0.0
  %1577 = vmatpush1.msra.mxu0 0.0
  %1578 = vmatprep.subr.mxu0 0.0
  %1579 = vmatpush1.msra.mxu0 0.0
  %1580 = vmatprep.subr.mxu0 0.0
  %1581 = vmatpush1.msra.mxu0 0.0
  %1582 = vmatprep.subr.mxu0 0.0
  %1583 = vmatpush1.msra.mxu0 0.0
  %1584 = vmatprep.subr.mxu0 0.0
  %1585 = vmatpush1.msra.mxu0 0.0
  %1586 = vmatprep.subr.mxu0 0.0
  %1587 = vmatpush1.msra.mxu0 0.0
  %1588 = vmatprep.subr.mxu0 0.0
  %1589 = vmatpush1.msra.mxu0 0.0
  %1590 = vmatprep.subr.mxu0 0.0
  %1591 = vmatpush1.msra.mxu0 0.0
  %1592 = vmatprep.subr.mxu0 0.0
  %1593 = vmatpush1.msra.mxu0 0.0
  %1594 = vmatprep.subr.mxu0 0.0
  %1595 = vmatpush1.msra.mxu0 0.0
  %1596 = vmatprep.subr.mxu0 0.0
  %1597 = vmatpush1.msra.mxu0 0.0
  %1598 = vmatprep.subr.mxu0 0.0
  %1599 = vmatpush1.msra.mxu0 0.0
  %1600 = vmatprep.subr.mxu0 0.0
  %1601 = vmatpush1.msra.mxu0 0.0
  %1602 = vmatprep.subr.mxu0 0.0
  %1603 = vmatpush1.msra.mxu0 0.0
  %1604 = vmatprep.subr.mxu0 0.0
  %1605 = vmatpush1.msra.mxu0 0.0
  %1606 = vmatprep.subr.mxu0 0.0
  %1607 = vmatpush1.msra.mxu0 0.0
  %1608 = vmatprep.subr.mxu0 0.0
  %1609 = vmatpush1.msra.mxu0 0.0
  %1610 = vmatprep.mubr.f32.mxu0 0.0
  %1611 = vmatmul.mubr.f32.gmra.mrb[0].mxu0 %v1544
  %v1612 = vpop.f32.mrb[0].mxu0
  %v1613 = vadd.f32 0.0, %v1612
  %v1614 = vpop.f32.mrb[0].mxu0
  %1615 = vdwg.mxu0
  %1617 = vrot.lane.b32.xlu0 %v1543, 32
  %v1618 = vpop.permute.xlu0 %1617
  %v1619 = vsel %vm56, %v1618, 0
  %1621 = vmatprep.subr.mxu0 0.0
  %1622 = vmatpush1.msra.mxu0 %v42
  %1623 = vmatprep.subr.mxu0 0.0
  %1624 = vmatpush1.msra.mxu0 %v43
  %1625 = vmatprep.subr.mxu0 0.0
  %1626 = vmatpush1.msra.mxu0 %v44
  %1627 = vmatprep.subr.mxu0 0.0
  %1628 = vmatpush1.msra.mxu0 %v45
  %1629 = vmatprep.subr.mxu0 0.0
  %1630 = vmatpush1.msra.mxu0 0.0
  %1631 = vmatprep.subr.mxu0 0.0
  %1632 = vmatpush1.msra.mxu0 0.0
  %1633 = vmatprep.subr.mxu0 0.0
  %1634 = vmatpush1.msra.mxu0 0.0
  %1635 = vmatprep.subr.mxu0 0.0
  %1636 = vmatpush1.msra.mxu0 0.0
  %1637 = vmatprep.subr.mxu0 0.0
  %1638 = vmatpush1.msra.mxu0 0.0
  %1639 = vmatprep.subr.mxu0 0.0
  %1640 = vmatpush1.msra.mxu0 0.0
  %1641 = vmatprep.subr.mxu0 0.0
  %1642 = vmatpush1.msra.mxu0 0.0
  %1643 = vmatprep.subr.mxu0 0.0
  %1644 = vmatpush1.msra.mxu0 0.0
  %1645 = vmatprep.subr.mxu0 0.0
  %1646 = vmatpush1.msra.mxu0 0.0
  %1647 = vmatprep.subr.mxu0 0.0
  %1648 = vmatpush1.msra.mxu0 0.0
  %1649 = vmatprep.subr.mxu0 0.0
  %1650 = vmatpush1.msra.mxu0 0.0
  %1651 = vmatprep.subr.mxu0 0.0
  %1652 = vmatpush1.msra.mxu0 0.0
  %1653 = vmatprep.subr.mxu0 0.0
  %1654 = vmatpush1.msra.mxu0 0.0
  %1655 = vmatprep.subr.mxu0 0.0
  %1656 = vmatpush1.msra.mxu0 0.0
  %1657 = vmatprep.subr.mxu0 0.0
  %1658 = vmatpush1.msra.mxu0 0.0
  %1659 = vmatprep.subr.mxu0 0.0
  %1660 = vmatpush1.msra.mxu0 0.0
  %1661 = vmatprep.subr.mxu0 0.0
  %1662 = vmatpush1.msra.mxu0 0.0
  %1663 = vmatprep.subr.mxu0 0.0
  %1664 = vmatpush1.msra.mxu0 0.0
  %1665 = vmatprep.subr.mxu0 0.0
  %1666 = vmatpush1.msra.mxu0 0.0
  %1667 = vmatprep.subr.mxu0 0.0
  %1668 = vmatpush1.msra.mxu0 0.0
  %1669 = vmatprep.subr.mxu0 0.0
  %1670 = vmatpush1.msra.mxu0 0.0
  %1671 = vmatprep.subr.mxu0 0.0
  %1672 = vmatpush1.msra.mxu0 0.0
  %1673 = vmatprep.subr.mxu0 0.0
  %1674 = vmatpush1.msra.mxu0 0.0
  %1675 = vmatprep.subr.mxu0 0.0
  %1676 = vmatpush1.msra.mxu0 0.0
  %1677 = vmatprep.subr.mxu0 0.0
  %1678 = vmatpush1.msra.mxu0 0.0
  %1679 = vmatprep.subr.mxu0 0.0
  %1680 = vmatpush1.msra.mxu0 0.0
  %1681 = vmatprep.subr.mxu0 0.0
  %1682 = vmatpush1.msra.mxu0 0.0
  %1683 = vmatprep.subr.mxu0 0.0
  %1684 = vmatpush1.msra.mxu0 0.0
  %1685 = vmatprep.mubr.f32.mxu0 0.0
  %1686 = vmatmul.mubr.f32.gmra.mrb[0].mxu0 %v1619
  %v1687 = vpop.f32.mrb[0].mxu0
  %v1688 = vadd.f32 %v1613, %v1687
  %v1689 = vpop.f32.mrb[0].mxu0
  %1690 = vdwg.mxu0
  %v1691 = vadd.f32 %v1688, %v311
  %v1692 = vxor.u32 %v1691, 2147483648
  %v1693 = vmul.f32 %v1692, 1.442695
  %v1694 = vpow.pop %v1693
  %v1695 = vadd.f32 %v1694, 1.0
  %v1696 = vrcp.pop %v1695
  %v1697 = vmul.f32 1.0, %v1696
  %v1698 = vtanh.pop %v1691
  %v1699 = vmul.f32 %v1697, %v1434
  %1701 = vrot.lane.b32.xlu0 %v1698, 64
  %v1702 = vpop.permute.xlu0 %1701
  %v1704 = vmul.f32 %v1697, %v1702
  %1706 = vrot.lane.b32.xlu0 %v1704, 32
  %v1707 = vpop.permute.xlu0 %1706
  %v1709 = vadd.f32 %v1699, %v1707
  %v1710 = vtanh.pop %v1709
  %1712 = vrot.lane.b32.xlu0 %v1710, 64
  %v1713 = vpop.permute.xlu0 %1712
  %v1715 = vmul.f32 %v1697, %v1713
  %1717 = vrot.lane.b32.xlu0 %v1715, 32
  %v1718 = vpop.permute.xlu0 %1717
  %s1720 = scalar_lea.vmem %s7, 40
  %1721 = vst.msk [vmem:[%s1720] sm:$0xff] %vm56, %v1718
  %s1722 = scalar_lea.vmem %s0, 48
  %v1723 = vld [vmem:[%s1722] sm:$0xff]
  %1724 = vmatprep.subr.mxu0 0.0
  %1725 = vmatpush1.msra.mxu0 %v38
  %1726 = vmatprep.subr.mxu0 0.0
  %1727 = vmatpush1.msra.mxu0 %v39
  %1728 = vmatprep.subr.mxu0 0.0
  %1729 = vmatpush1.msra.mxu0 %v40
  %1730 = vmatprep.subr.mxu0 0.0
  %1731 = vmatpush1.msra.mxu0 %v41
  %1732 = vmatprep.subr.mxu0 0.0
  %1733 = vmatpush1.msra.mxu0 0.0
  %1734 = vmatprep.subr.mxu0 0.0
  %1735 = vmatpush1.msra.mxu0 0.0
  %1736 = vmatprep.subr.mxu0 0.0
  %1737 = vmatpush1.msra.mxu0 0.0
  %1738 = vmatprep.subr.mxu0 0.0
  %1739 = vmatpush1.msra.mxu0 0.0
  %1740 = vmatprep.subr.mxu0 0.0
  %1741 = vmatpush1.msra.mxu0 0.0
  %1742 = vmatprep.subr.mxu0 0.0
  %1743 = vmatpush1.msra.mxu0 0.0
  %1744 = vmatprep.subr.mxu0 0.0
  %1745 = vmatpush1.msra.mxu0 0.0
  %1746 = vmatprep.subr.mxu0 0.0
  %1747 = vmatpush1.msra.mxu0 0.0
  %1748 = vmatprep.subr.mxu0 0.0
  %1749 = vmatpush1.msra.mxu0 0.0
  %1750 = vmatprep.subr.mxu0 0.0
  %1751 = vmatpush1.msra.mxu0 0.0
  %1752 = vmatprep.subr.mxu0 0.0
  %1753 = vmatpush1.msra.mxu0 0.0
  %1754 = vmatprep.subr.mxu0 0.0
  %1755 = vmatpush1.msra.mxu0 0.0
  %1756 = vmatprep.subr.mxu0 0.0
  %1757 = vmatpush1.msra.mxu0 0.0
  %1758 = vmatprep.subr.mxu0 0.0
  %1759 = vmatpush1.msra.mxu0 0.0
  %1760 = vmatprep.subr.mxu0 0.0
  %1761 = vmatpush1.msra.mxu0 0.0
  %1762 = vmatprep.subr.mxu0 0.0
  %1763 = vmatpush1.msra.mxu0 0.0
  %1764 = vmatprep.subr.mxu0 0.0
  %1765 = vmatpush1.msra.mxu0 0.0
  %1766 = vmatprep.subr.mxu0 0.0
  %1767 = vmatpush1.msra.mxu0 0.0
  %1768 = vmatprep.subr.mxu0 0.0
  %1769 = vmatpush1.msra.mxu0 0.0
  %1770 = vmatprep.subr.mxu0 0.0
  %1771 = vmatpush1.msra.mxu0 0.0
  %1772 = vmatprep.subr.mxu0 0.0
  %1773 = vmatpush1.msra.mxu0 0.0
  %1774 = vmatprep.subr.mxu0 0.0
  %1775 = vmatpush1.msra.mxu0 0.0
  %1776 = vmatprep.subr.mxu0 0.0
  %1777 = vmatpush1.msra.mxu0 0.0
  %1778 = vmatprep.subr.mxu0 0.0
  %1779 = vmatpush1.msra.mxu0 0.0
  %1780 = vmatprep.subr.mxu0 0.0
  %1781 = vmatpush1.msra.mxu0 0.0
  %1782 = vmatprep.subr.mxu0 0.0
  %1783 = vmatpush1.msra.mxu0 0.0
  %1784 = vmatprep.subr.mxu0 0.0
  %1785 = vmatpush1.msra.mxu0 0.0
  %1786 = vmatprep.subr.mxu0 0.0
  %1787 = vmatpush1.msra.mxu0 0.0
  %1788 = vmatprep.mubr.f32.mxu0 0.0
  %1789 = vmatmul.mubr.f32.gmra.mrb[0].mxu0 %v1619
  %v1790 = vpop.f32.mrb[0].mxu0
  %v1791 = vadd.f32 0.0, %v1790
  %v1792 = vpop.f32.mrb[0].mxu0
  %1793 = vdwg.mxu0
  %v1794 = vadd.f32 %v1723, %v1791
  %v1795 = vxor.u32 %v1794, 2147483648
  %v1796 = vmul.f32 %v1795, 1.442695
  %v1797 = vpow.pop %v1796
  %v1798 = vadd.f32 %v1797, 1.0
  %v1799 = vrcp.pop %v1798
  %v1800 = vmul.f32 1.0, %v1799
  %v1801 = vtanh.pop %v1794
  %v1802 = vmul.f32 %v1800, %v1537
  %1804 = vrot.lane.b32.xlu0 %v1801, 64
  %v1805 = vpop.permute.xlu0 %1804
  %v1807 = vmul.f32 %v1800, %v1805
  %1809 = vrot.lane.b32.xlu0 %v1807, 32
  %v1810 = vpop.permute.xlu0 %1809
  %v1812 = vadd.f32 %v1802, %v1810
  %v1813 = vtanh.pop %v1812
  %1815 = vrot.lane.b32.xlu0 %v1813, 64
  %v1816 = vpop.permute.xlu0 %1815
  %v1818 = vmul.f32 %v1800, %v1816
  %v1819 = vsel %vm56, %v1718, 0
  %1821 = vmatprep.subr.mxu0 0.0
  %1822 = vmatpush1.msra.mxu0 %v46
  %1823 = vmatprep.subr.mxu0 0.0
  %1824 = vmatpush1.msra.mxu0 %v47
  %1825 = vmatprep.subr.mxu0 0.0
  %1826 = vmatpush1.msra.mxu0 %v48
  %1827 = vmatprep.subr.mxu0 0.0
  %1828 = vmatpush1.msra.mxu0 %v49
  %1829 = vmatprep.subr.mxu0 0.0
  %1830 = vmatpush1.msra.mxu0 0.0
  %1831 = vmatprep.subr.mxu0 0.0
  %1832 = vmatpush1.msra.mxu0 0.0
  %1833 = vmatprep.subr.mxu0 0.0
  %1834 = vmatpush1.msra.mxu0 0.0
  %1835 = vmatprep.subr.mxu0 0.0
  %1836 = vmatpush1.msra.mxu0 0.0
  %1837 = vmatprep.subr.mxu0 0.0
  %1838 = vmatpush1.msra.mxu0 0.0
  %1839 = vmatprep.subr.mxu0 0.0
  %1840 = vmatpush1.msra.mxu0 0.0
  %1841 = vmatprep.subr.mxu0 0.0
  %1842 = vmatpush1.msra.mxu0 0.0
  %1843 = vmatprep.subr.mxu0 0.0
  %1844 = vmatpush1.msra.mxu0 0.0
  %1845 = vmatprep.subr.mxu0 0.0
  %1846 = vmatpush1.msra.mxu0 0.0
  %1847 = vmatprep.subr.mxu0 0.0
  %1848 = vmatpush1.msra.mxu0 0.0
  %1849 = vmatprep.subr.mxu0 0.0
  %1850 = vmatpush1.msra.mxu0 0.0
  %1851 = vmatprep.subr.mxu0 0.0
  %1852 = vmatpush1.msra.mxu0 0.0
  %1853 = vmatprep.subr.mxu0 0.0
  %1854 = vmatpush1.msra.mxu0 0.0
  %1855 = vmatprep.subr.mxu0 0.0
  %1856 = vmatpush1.msra.mxu0 0.0
  %1857 = vmatprep.subr.mxu0 0.0
  %1858 = vmatpush1.msra.mxu0 0.0
  %1859 = vmatprep.subr.mxu0 0.0
  %1860 = vmatpush1.msra.mxu0 0.0
  %1861 = vmatprep.subr.mxu0 0.0
  %1862 = vmatpush1.msra.mxu0 0.0
  %1863 = vmatprep.subr.mxu0 0.0
  %1864 = vmatpush1.msra.mxu0 0.0
  %1865 = vmatprep.subr.mxu0 0.0
  %1866 = vmatpush1.msra.mxu0 0.0
  %1867 = vmatprep.subr.mxu0 0.0
  %1868 = vmatpush1.msra.mxu0 0.0
  %1869 = vmatprep.subr.mxu0 0.0
  %1870 = vmatpush1.msra.mxu0 0.0
  %1871 = vmatprep.subr.mxu0 0.0
  %1872 = vmatpush1.msra.mxu0 0.0
  %1873 = vmatprep.subr.mxu0 0.0
  %1874 = vmatpush1.msra.mxu0 0.0
  %1875 = vmatprep.subr.mxu0 0.0
  %1876 = vmatpush1.msra.mxu0 0.0
  %1877 = vmatprep.subr.mxu0 0.0
  %1878 = vmatpush1.msra.mxu0 0.0
  %1879 = vmatprep.subr.mxu0 0.0
  %1880 = vmatpush1.msra.mxu0 0.0
  %1881 = vmatprep.subr.mxu0 0.0
  %1882 = vmatpush1.msra.mxu0 0.0
  %1883 = vmatprep.subr.mxu0 0.0
  %1884 = vmatpush1.msra.mxu0 0.0
  %1885 = vmatprep.mubr.f32.mxu0 0.0
  %1886 = vmatmul.mubr.f32.gmra.mrb[0].mxu0 %v1819
  %v1887 = vpop.f32.mrb[0].mxu0
  %v1888 = vadd.f32 0.0, %v1887
  %v1889 = vpop.f32.mrb[0].mxu0
  %1890 = vdwg.mxu0
  %1892 = vrot.lane.b32.xlu0 %v1818, 32
  %v1893 = vpop.permute.xlu0 %1892
  %v1894 = vsel %vm56, %v1893, 0
  %1896 = vmatprep.subr.mxu0 0.0
  %1897 = vmatpush1.msra.mxu0 %v42
  %1898 = vmatprep.subr.mxu0 0.0
  %1899 = vmatpush1.msra.mxu0 %v43
  %1900 = vmatprep.subr.mxu0 0.0
  %1901 = vmatpush1.msra.mxu0 %v44
  %1902 = vmatprep.subr.mxu0 0.0
  %1903 = vmatpush1.msra.mxu0 %v45
  %1904 = vmatprep.subr.mxu0 0.0
  %1905 = vmatpush1.msra.mxu0 0.0
  %1906 = vmatprep.subr.mxu0 0.0
  %1907 = vmatpush1.msra.mxu0 0.0
  %1908 = vmatprep.subr.mxu0 0.0
  %1909 = vmatpush1.msra.mxu0 0.0
  %1910 = vmatprep.subr.mxu0 0.0
  %1911 = vmatpush1.msra.mxu0 0.0
  %1912 = vmatprep.subr.mxu0 0.0
  %1913 = vmatpush1.msra.mxu0 0.0
  %1914 = vmatprep.subr.mxu0 0.0
  %1915 = vmatpush1.msra.mxu0 0.0
  %1916 = vmatprep.subr.mxu0 0.0
  %1917 = vmatpush1.msra.mxu0 0.0
  %1918 = vmatprep.subr.mxu0 0.0
  %1919 = vmatpush1.msra.mxu0 0.0
  %1920 = vmatprep.subr.mxu0 0.0
  %1921 = vmatpush1.msra.mxu0 0.0
  %1922 = vmatprep.subr.mxu0 0.0
  %1923 = vmatpush1.msra.mxu0 0.0
  %1924 = vmatprep.subr.mxu0 0.0
  %1925 = vmatpush1.msra.mxu0 0.0
  %1926 = vmatprep.subr.mxu0 0.0
  %1927 = vmatpush1.msra.mxu0 0.0
  %1928 = vmatprep.subr.mxu0 0.0
  %1929 = vmatpush1.msra.mxu0 0.0
  %1930 = vmatprep.subr.mxu0 0.0
  %1931 = vmatpush1.msra.mxu0 0.0
  %1932 = vmatprep.subr.mxu0 0.0
  %1933 = vmatpush1.msra.mxu0 0.0
  %1934 = vmatprep.subr.mxu0 0.0
  %1935 = vmatpush1.msra.mxu0 0.0
  %1936 = vmatprep.subr.mxu0 0.0
  %1937 = vmatpush1.msra.mxu0 0.0
  %1938 = vmatprep.subr.mxu0 0.0
  %1939 = vmatpush1.msra.mxu0 0.0
  %1940 = vmatprep.subr.mxu0 0.0
  %1941 = vmatpush1.msra.mxu0 0.0
  %1942 = vmatprep.subr.mxu0 0.0
  %1943 = vmatpush1.msra.mxu0 0.0
  %1944 = vmatprep.subr.mxu0 0.0
  %1945 = vmatpush1.msra.mxu0 0.0
  %1946 = vmatprep.subr.mxu0 0.0
  %1947 = vmatpush1.msra.mxu0 0.0
  %1948 = vmatprep.subr.mxu0 0.0
  %1949 = vmatpush1.msra.mxu0 0.0
  %1950 = vmatprep.subr.mxu0 0.0
  %1951 = vmatpush1.msra.mxu0 0.0
  %1952 = vmatprep.subr.mxu0 0.0
  %1953 = vmatpush1.msra.mxu0 0.0
  %1954 = vmatprep.subr.mxu0 0.0
  %1955 = vmatpush1.msra.mxu0 0.0
  %1956 = vmatprep.subr.mxu0 0.0
  %1957 = vmatpush1.msra.mxu0 0.0
  %1958 = vmatprep.subr.mxu0 0.0
  %1959 = vmatpush1.msra.mxu0 0.0
  %1960 = vmatprep.mubr.f32.mxu0 0.0
  %1961 = vmatmul.mubr.f32.gmra.mrb[0].mxu0 %v1894
  %v1962 = vpop.f32.mrb[0].mxu0
  %v1963 = vadd.f32 %v1888, %v1962
  %v1964 = vpop.f32.mrb[0].mxu0
  %1965 = vdwg.mxu0
  %v1966 = vadd.f32 %v1963, %v311
  %v1967 = vxor.u32 %v1966, 2147483648
  %v1968 = vmul.f32 %v1967, 1.442695
  %v1969 = vpow.pop %v1968
  %v1970 = vadd.f32 %v1969, 1.0
  %v1971 = vrcp.pop %v1970
  %v1972 = vmul.f32 1.0, %v1971
  %v1973 = vtanh.pop %v1966
  %v1974 = vmul.f32 %v1972, %v1709
  %1976 = vrot.lane.b32.xlu0 %v1973, 64
  %v1977 = vpop.permute.xlu0 %1976
  %v1979 = vmul.f32 %v1972, %v1977
  %1981 = vrot.lane.b32.xlu0 %v1979, 32
  %v1982 = vpop.permute.xlu0 %1981
  %v1984 = vadd.f32 %v1974, %v1982
  %v1985 = vtanh.pop %v1984
  %1987 = vrot.lane.b32.xlu0 %v1985, 64
  %v1988 = vpop.permute.xlu0 %1987
  %v1990 = vmul.f32 %v1972, %v1988
  %1992 = vrot.lane.b32.xlu0 %v1990, 32
  %v1993 = vpop.permute.xlu0 %1992
  %s1995 = scalar_lea.vmem %s7, 48
  %1996 = vst.msk [vmem:[%s1995] sm:$0xff] %vm56, %v1993
  %s1997 = scalar_lea.vmem %s0, 56
  %v1998 = vld [vmem:[%s1997] sm:$0xff]
  %1999 = vmatprep.subr.mxu0 0.0
  %2000 = vmatpush1.msra.mxu0 %v38
  %2001 = vmatprep.subr.mxu0 0.0
  %2002 = vmatpush1.msra.mxu0 %v39
  %2003 = vmatprep.subr.mxu0 0.0
  %2004 = vmatpush1.msra.mxu0 %v40
  %2005 = vmatprep.subr.mxu0 0.0
  %2006 = vmatpush1.msra.mxu0 %v41
  %2007 = vmatprep.subr.mxu0 0.0
  %2008 = vmatpush1.msra.mxu0 0.0
  %2009 = vmatprep.subr.mxu0 0.0
  %2010 = vmatpush1.msra.mxu0 0.0
  %2011 = vmatprep.subr.mxu0 0.0
  %2012 = vmatpush1.msra.mxu0 0.0
  %2013 = vmatprep.subr.mxu0 0.0
  %2014 = vmatpush1.msra.mxu0 0.0
  %2015 = vmatprep.subr.mxu0 0.0
  %2016 = vmatpush1.msra.mxu0 0.0
  %2017 = vmatprep.subr.mxu0 0.0
  %2018 = vmatpush1.msra.mxu0 0.0
  %2019 = vmatprep.subr.mxu0 0.0
  %2020 = vmatpush1.msra.mxu0 0.0
  %2021 = vmatprep.subr.mxu0 0.0
  %2022 = vmatpush1.msra.mxu0 0.0
  %2023 = vmatprep.subr.mxu0 0.0
  %2024 = vmatpush1.msra.mxu0 0.0
  %2025 = vmatprep.subr.mxu0 0.0
  %2026 = vmatpush1.msra.mxu0 0.0
  %2027 = vmatprep.subr.mxu0 0.0
  %2028 = vmatpush1.msra.mxu0 0.0
  %2029 = vmatprep.subr.mxu0 0.0
  %2030 = vmatpush1.msra.mxu0 0.0
  %2031 = vmatprep.subr.mxu0 0.0
  %2032 = vmatpush1.msra.mxu0 0.0
  %2033 = vmatprep.subr.mxu0 0.0
  %2034 = vmatpush1.msra.mxu0 0.0
  %2035 = vmatprep.subr.mxu0 0.0
  %2036 = vmatpush1.msra.mxu0 0.0
  %2037 = vmatprep.subr.mxu0 0.0
  %2038 = vmatpush1.msra.mxu0 0.0
  %2039 = vmatprep.subr.mxu0 0.0
  %2040 = vmatpush1.msra.mxu0 0.0
  %2041 = vmatprep.subr.mxu0 0.0
  %2042 = vmatpush1.msra.mxu0 0.0
  %2043 = vmatprep.subr.mxu0 0.0
  %2044 = vmatpush1.msra.mxu0 0.0
  %2045 = vmatprep.subr.mxu0 0.0
  %2046 = vmatpush1.msra.mxu0 0.0
  %2047 = vmatprep.subr.mxu0 0.0
  %2048 = vmatpush1.msra.mxu0 0.0
  %2049 = vmatprep.subr.mxu0 0.0
  %2050 = vmatpush1.msra.mxu0 0.0
  %2051 = vmatprep.subr.mxu0 0.0
  %2052 = vmatpush1.msra.mxu0 0.0
  %2053 = vmatprep.subr.mxu0 0.0
  %2054 = vmatpush1.msra.mxu0 0.0
  %2055 = vmatprep.subr.mxu0 0.0
  %2056 = vmatpush1.msra.mxu0 0.0
  %2057 = vmatprep.subr.mxu0 0.0
  %2058 = vmatpush1.msra.mxu0 0.0
  %2059 = vmatprep.subr.mxu0 0.0
  %2060 = vmatpush1.msra.mxu0 0.0
  %2061 = vmatprep.subr.mxu0 0.0
  %2062 = vmatpush1.msra.mxu0 0.0
  %2063 = vmatprep.mubr.f32.mxu0 0.0
  %2064 = vmatmul.mubr.f32.gmra.mrb[0].mxu0 %v1894
  %v2065 = vpop.f32.mrb[0].mxu0
  %v2066 = vadd.f32 0.0, %v2065
  %v2067 = vpop.f32.mrb[0].mxu0
  %2068 = vdwg.mxu0
  %v2069 = vadd.f32 %v1998, %v2066
  %v2070 = vxor.u32 %v2069, 2147483648
  %v2071 = vmul.f32 %v2070, 1.442695
  %v2072 = vpow.pop %v2071
  %v2073 = vadd.f32 %v2072, 1.0
  %v2074 = vrcp.pop %v2073
  %v2075 = vmul.f32 1.0, %v2074
  %v2076 = vtanh.pop %v2069
  %v2077 = vmul.f32 %v2075, %v1812
  %2079 = vrot.lane.b32.xlu0 %v2076, 64
  %v2080 = vpop.permute.xlu0 %2079
  %v2082 = vmul.f32 %v2075, %v2080
  %2084 = vrot.lane.b32.xlu0 %v2082, 32
  %v2085 = vpop.permute.xlu0 %2084
  %v2087 = vadd.f32 %v2077, %v2085
  %v2088 = vtanh.pop %v2087
  %2090 = vrot.lane.b32.xlu0 %v2088, 64
  %v2091 = vpop.permute.xlu0 %2090
  %v2093 = vmul.f32 %v2075, %v2091
  %v2094 = vsel %vm56, %v1993, 0
  %2096 = vmatprep.subr.mxu0 0.0
  %2097 = vmatpush1.msra.mxu0 %v46
  %2098 = vmatprep.subr.mxu0 0.0
  %2099 = vmatpush1.msra.mxu0 %v47
  %2100 = vmatprep.subr.mxu0 0.0
  %2101 = vmatpush1.msra.mxu0 %v48
  %2102 = vmatprep.subr.mxu0 0.0
  %2103 = vmatpush1.msra.mxu0 %v49
  %2104 = vmatprep.subr.mxu0 0.0
  %2105 = vmatpush1.msra.mxu0 0.0
  %2106 = vmatprep.subr.mxu0 0.0
  %2107 = vmatpush1.msra.mxu0 0.0
  %2108 = vmatprep.subr.mxu0 0.0
  %2109 = vmatpush1.msra.mxu0 0.0
  %2110 = vmatprep.subr.mxu0 0.0
  %2111 = vmatpush1.msra.mxu0 0.0
  %2112 = vmatprep.subr.mxu0 0.0
  %2113 = vmatpush1.msra.mxu0 0.0
  %2114 = vmatprep.subr.mxu0 0.0
  %2115 = vmatpush1.msra.mxu0 0.0
  %2116 = vmatprep.subr.mxu0 0.0
  %2117 = vmatpush1.msra.mxu0 0.0
  %2118 = vmatprep.subr.mxu0 0.0
  %2119 = vmatpush1.msra.mxu0 0.0
  %2120 = vmatprep.subr.mxu0 0.0
  %2121 = vmatpush1.msra.mxu0 0.0
  %2122 = vmatprep.subr.mxu0 0.0
  %2123 = vmatpush1.msra.mxu0 0.0
  %2124 = vmatprep.subr.mxu0 0.0
  %2125 = vmatpush1.msra.mxu0 0.0
  %2126 = vmatprep.subr.mxu0 0.0
  %2127 = vmatpush1.msra.mxu0 0.0
  %2128 = vmatprep.subr.mxu0 0.0
  %2129 = vmatpush1.msra.mxu0 0.0
  %2130 = vmatprep.subr.mxu0 0.0
  %2131 = vmatpush1.msra.mxu0 0.0
  %2132 = vmatprep.subr.mxu0 0.0
  %2133 = vmatpush1.msra.mxu0 0.0
  %2134 = vmatprep.subr.mxu0 0.0
  %2135 = vmatpush1.msra.mxu0 0.0
  %2136 = vmatprep.subr.mxu0 0.0
  %2137 = vmatpush1.msra.mxu0 0.0
  %2138 = vmatprep.subr.mxu0 0.0
  %2139 = vmatpush1.msra.mxu0 0.0
  %2140 = vmatprep.subr.mxu0 0.0
  %2141 = vmatpush1.msra.mxu0 0.0
  %2142 = vmatprep.subr.mxu0 0.0
  %2143 = vmatpush1.msra.mxu0 0.0
  %2144 = vmatprep.subr.mxu0 0.0
  %2145 = vmatpush1.msra.mxu0 0.0
  %2146 = vmatprep.subr.mxu0 0.0
  %2147 = vmatpush1.msra.mxu0 0.0
  %2148 = vmatprep.subr.mxu0 0.0
  %2149 = vmatpush1.msra.mxu0 0.0
  %2150 = vmatprep.subr.mxu0 0.0
  %2151 = vmatpush1.msra.mxu0 0.0
  %2152 = vmatprep.subr.mxu0 0.0
  %2153 = vmatpush1.msra.mxu0 0.0
  %2154 = vmatprep.subr.mxu0 0.0
  %2155 = vmatpush1.msra.mxu0 0.0
  %2156 = vmatprep.subr.mxu0 0.0
  %2157 = vmatpush1.msra.mxu0 0.0
  %2158 = vmatprep.subr.mxu0 0.0
  %2159 = vmatpush1.msra.mxu0 0.0
  %2160 = vmatprep.mubr.f32.mxu0 0.0
  %2161 = vmatmul.mubr.f32.gmra.mrb[0].mxu0 %v2094
  %v2162 = vpop.f32.mrb[0].mxu0
  %v2163 = vadd.f32 0.0, %v2162
  %v2164 = vpop.f32.mrb[0].mxu0
  %2165 = vdwg.mxu0
  %2167 = vrot.lane.b32.xlu0 %v2093, 32
  %v2168 = vpop.permute.xlu0 %2167
  %v2169 = vsel %vm56, %v2168, 0
  %2171 = vmatprep.subr.mxu0 0.0
  %2172 = vmatpush1.msra.mxu0 %v42
  %2173 = vmatprep.subr.mxu0 0.0
  %2174 = vmatpush1.msra.mxu0 %v43
  %2175 = vmatprep.subr.mxu0 0.0
  %2176 = vmatpush1.msra.mxu0 %v44
  %2177 = vmatprep.subr.mxu0 0.0
  %2178 = vmatpush1.msra.mxu0 %v45
  %2179 = vmatprep.subr.mxu0 0.0
  %2180 = vmatpush1.msra.mxu0 0.0
  %2181 = vmatprep.subr.mxu0 0.0
  %2182 = vmatpush1.msra.mxu0 0.0
  %2183 = vmatprep.subr.mxu0 0.0
  %2184 = vmatpush1.msra.mxu0 0.0
  %2185 = vmatprep.subr.mxu0 0.0
  %2186 = vmatpush1.msra.mxu0 0.0
  %2187 = vmatprep.subr.mxu0 0.0
  %2188 = vmatpush1.msra.mxu0 0.0
  %2189 = vmatprep.subr.mxu0 0.0
  %2190 = vmatpush1.msra.mxu0 0.0
  %2191 = vmatprep.subr.mxu0 0.0
  %2192 = vmatpush1.msra.mxu0 0.0
  %2193 = vmatprep.subr.mxu0 0.0
  %2194 = vmatpush1.msra.mxu0 0.0
  %2195 = vmatprep.subr.mxu0 0.0
  %2196 = vmatpush1.msra.mxu0 0.0
  %2197 = vmatprep.subr.mxu0 0.0
  %2198 = vmatpush1.msra.mxu0 0.0
  %2199 = vmatprep.subr.mxu0 0.0
  %2200 = vmatpush1.msra.mxu0 0.0
  %2201 = vmatprep.subr.mxu0 0.0
  %2202 = vmatpush1.msra.mxu0 0.0
  %2203 = vmatprep.subr.mxu0 0.0
  %2204 = vmatpush1.msra.mxu0 0.0
  %2205 = vmatprep.subr.mxu0 0.0
  %2206 = vmatpush1.msra.mxu0 0.0
  %2207 = vmatprep.subr.mxu0 0.0
  %2208 = vmatpush1.msra.mxu0 0.0
  %2209 = vmatprep.subr.mxu0 0.0
  %2210 = vmatpush1.msra.mxu0 0.0
  %2211 = vmatprep.subr.mxu0 0.0
  %2212 = vmatpush1.msra.mxu0 0.0
  %2213 = vmatprep.subr.mxu0 0.0
  %2214 = vmatpush1.msra.mxu0 0.0
  %2215 = vmatprep.subr.mxu0 0.0
  %2216 = vmatpush1.msra.mxu0 0.0
  %2217 = vmatprep.subr.mxu0 0.0
  %2218 = vmatpush1.msra.mxu0 0.0
  %2219 = vmatprep.subr.mxu0 0.0
  %2220 = vmatpush1.msra.mxu0 0.0
  %2221 = vmatprep.subr.mxu0 0.0
  %2222 = vmatpush1.msra.mxu0 0.0
  %2223 = vmatprep.subr.mxu0 0.0
  %2224 = vmatpush1.msra.mxu0 0.0
  %2225 = vmatprep.subr.mxu0 0.0
  %2226 = vmatpush1.msra.mxu0 0.0
  %2227 = vmatprep.subr.mxu0 0.0
  %2228 = vmatpush1.msra.mxu0 0.0
  %2229 = vmatprep.subr.mxu0 0.0
  %2230 = vmatpush1.msra.mxu0 0.0
  %2231 = vmatprep.subr.mxu0 0.0
  %2232 = vmatpush1.msra.mxu0 0.0
  %2233 = vmatprep.subr.mxu0 0.0
  %2234 = vmatpush1.msra.mxu0 0.0
  %2235 = vmatprep.mubr.f32.mxu0 0.0
  %2236 = vmatmul.mubr.f32.gmra.mrb[0].mxu0 %v2169
  %v2237 = vpop.f32.mrb[0].mxu0
  %v2238 = vadd.f32 %v2163, %v2237
  %v2239 = vpop.f32.mrb[0].mxu0
  %2240 = vdwg.mxu0
  %v2241 = vadd.f32 %v2238, %v311
  %v2242 = vxor.u32 %v2241, 2147483648
  %v2243 = vmul.f32 %v2242, 1.442695
  %v2244 = vpow.pop %v2243
  %v2245 = vadd.f32 %v2244, 1.0
  %v2246 = vrcp.pop %v2245
  %v2247 = vmul.f32 1.0, %v2246
  %v2248 = vtanh.pop %v2241
  %v2249 = vmul.f32 %v2247, %v1984
  %2251 = vrot.lane.b32.xlu0 %v2248, 64
  %v2252 = vpop.permute.xlu0 %2251
  %v2254 = vmul.f32 %v2247, %v2252
  %2256 = vrot.lane.b32.xlu0 %v2254, 32
  %v2257 = vpop.permute.xlu0 %2256
  %v2259 = vadd.f32 %v2249, %v2257
  %v2260 = vtanh.pop %v2259
  %2262 = vrot.lane.b32.xlu0 %v2260, 64
  %v2263 = vpop.permute.xlu0 %2262
  %v2265 = vmul.f32 %v2247, %v2263
  %2267 = vrot.lane.b32.xlu0 %v2265, 32
  %v2268 = vpop.permute.xlu0 %2267
  %s2270 = scalar_lea.vmem %s7, 56
  %2271 = vst.msk [vmem:[%s2270] sm:$0xff] %vm56, %v2268
  %2273 = vst.msk [vmem:[#allocation2] sm:$0xff] %vm56, %v2168
  %2275 = vrot.lane.b32.xlu0 %v2087, 96
  %v2276 = vpop.permute.xlu0 %2275
  %2278 = vst.msk [vmem:[#allocation3] sm:$0xff] %vm56, %v2276
  %2279 = vst.msk [vmem:[#allocation4] sm:$0xff] %vm56, %v2268
  %2281 = vrot.lane.b32.xlu0 %v2259, 96
  %v2282 = vpop.permute.xlu0 %2281
  %2284 = vst.msk [vmem:[#allocation5] sm:$0xff] %vm56, %v2282
  // Predicated region
  $region34: #{lstm_model_forward.1} parent=0 // pred_check
    %p2285 = pneg %p29
  $region35: #{lstm_model_forward.1} parent=0 // pred_check_branch
    %2287 = sbr.rel (%p2285) target = $region37
  $region36: #{lstm_model_forward.1} parent=0 // pred_region
    %v2288 = vld [vmem:[%s5] sm:$0xff]
    %v2289 = vld [vmem:[%s5 + $0x8] sm:$0xff]
    %v2290 = vld [vmem:[%s5 + $0x10] sm:$0xff]
    %v2291 = vld [vmem:[%s5 + $0x18] sm:$0xff]
    %v2292 = vld [vmem:[%s6] sm:$0x1]
    %v2294 = vlaneseq
    %v2295 = vshrl.u32 %v2294, 7
    %v2296 = vsub.s32 0, %v2295
    %v2297 = vrot.slane %v2292, %v2296
    %v2299 = vsel %vm56, %v2268, 0
    %2301 = vmatprep.subr.mxu0 0.0
    %2302 = vmatpush1.msra.mxu0 %v2288
    %2303 = vmatprep.subr.mxu0 0.0
    %2304 = vmatpush1.msra.mxu0 %v2289
    %2305 = vmatprep.subr.mxu0 0.0
    %2306 = vmatpush1.msra.mxu0 %v2290
    %2307 = vmatprep.subr.mxu0 0.0
    %2308 = vmatpush1.msra.mxu0 %v2291
    %2309 = vmatprep.subr.mxu0 0.0
    %2310 = vmatpush1.msra.mxu0 0.0
    %2311 = vmatprep.subr.mxu0 0.0
    %2312 = vmatpush1.msra.mxu0 0.0
    %2313 = vmatprep.subr.mxu0 0.0
    %2314 = vmatpush1.msra.mxu0 0.0
    %2315 = vmatprep.subr.mxu0 0.0
    %2316 = vmatpush1.msra.mxu0 0.0
    %2317 = vmatprep.subr.mxu0 0.0
    %2318 = vmatpush1.msra.mxu0 0.0
    %2319 = vmatprep.subr.mxu0 0.0
    %2320 = vmatpush1.msra.mxu0 0.0
    %2321 = vmatprep.subr.mxu0 0.0
    %2322 = vmatpush1.msra.mxu0 0.0
    %2323 = vmatprep.subr.mxu0 0.0
    %2324 = vmatpush1.msra.mxu0 0.0
    %2325 = vmatprep.subr.mxu0 0.0
    %2326 = vmatpush1.msra.mxu0 0.0
    %2327 = vmatprep.subr.mxu0 0.0
    %2328 = vmatpush1.msra.mxu0 0.0
    %2329 = vmatprep.subr.mxu0 0.0
    %2330 = vmatpush1.msra.mxu0 0.0
    %2331 = vmatprep.subr.mxu0 0.0
    %2332 = vmatpush1.msra.mxu0 0.0
    %2333 = vmatprep.subr.mxu0 0.0
    %2334 = vmatpush1.msra.mxu0 0.0
    %2335 = vmatprep.subr.mxu0 0.0
    %2336 = vmatpush1.msra.mxu0 0.0
    %2337 = vmatprep.subr.mxu0 0.0
    %2338 = vmatpush1.msra.mxu0 0.0
    %2339 = vmatprep.subr.mxu0 0.0
    %2340 = vmatpush1.msra.mxu0 0.0
    %2341 = vmatprep.subr.mxu0 0.0
    %2342 = vmatpush1.msra.mxu0 0.0
    %2343 = vmatprep.subr.mxu0 0.0
    %2344 = vmatpush1.msra.mxu0 0.0
    %2345 = vmatprep.subr.mxu0 0.0
    %2346 = vmatpush1.msra.mxu0 0.0
    %2347 = vmatprep.subr.mxu0 0.0
    %2348 = vmatpush1.msra.mxu0 0.0
    %2349 = vmatprep.subr.mxu0 0.0
    %2350 = vmatpush1.msra.mxu0 0.0
    %2351 = vmatprep.subr.mxu0 0.0
    %2352 = vmatpush1.msra.mxu0 0.0
    %2353 = vmatprep.subr.mxu0 0.0
    %2354 = vmatpush1.msra.mxu0 0.0
    %2355 = vmatprep.subr.mxu0 0.0
    %2356 = vmatpush1.msra.mxu0 0.0
    %2357 = vmatprep.subr.mxu0 0.0
    %2358 = vmatpush1.msra.mxu0 0.0
    %2359 = vmatprep.subr.mxu0 0.0
    %2360 = vmatpush1.msra.mxu0 0.0
    %2361 = vmatprep.subr.mxu0 0.0
    %2362 = vmatpush1.msra.mxu0 0.0
    %2363 = vmatprep.subr.mxu0 0.0
    %2364 = vmatpush1.msra.mxu0 0.0
    %2365 = vmatprep.mubr.f32.mxu0 0.0
    %2366 = vmatmul.mubr.f32.gmra.mrb[0].mxu0 %v2299
    %v2367 = vpop.f32.mrb[0].mxu0
    %v2368 = vadd.f32 %v2297, %v2367
    %v2369 = vpop.f32.mrb[0].mxu0
    %2370 = vdwg.mxu0
    %vm2371 = vcmask 39936
    %2372 = vst.msk [vmem:[%s8] sm:$0xff] %vm2371, %v2368
    %v2373 = vsel %vm2371, %v2368, -inf
    %2374 = vmax.xlane.f32.xlu0 %v2373
    %v2375 = vpop.xlane.xlu0 %2374
    %v2376 = vsub.f32 %v2368, %v2375
    %v2377 = vmul.f32 %v2376, 1.442695
    %v2378 = vpow.pop %v2377
    %v2379 = vsel %vm2371, %v2378, 0.0
    %2380 = vadd.xlane.f32.xlu0 %v2379
    %v2381 = vpop.xlane.xlu0 %2380
    %v2382 = vlog2.pop %v2381
    %v2383 = vmul.f32 %v2382, 0.6931472
    %v2384 = vsub.f32 %v2376, %v2383
    %2385 = vst.msk [vmem:[%s9] sm:$0xff] %vm2371, %v2384
  $region37: #{lstm_model_forward.1} parent=0 // pred_fallthru
    _
  // Predicated region
  $region38: #{lstm_model_forward.1} parent=0 // pred_check
    _
  $region39: #{lstm_model_forward.1} parent=0 // pred_check_branch
    %2387 = sbr.rel (0) target = $region41
  $region40: #{lstm_model_forward.1} parent=0 // pred_region
    _
  $region41: #{lstm_model_forward.1} parent=0 // pred_fallthru
    _
  // Predicated region
  $region42: #{lstm_model_forward.1} parent=0 // pred_check
    _
  $region43: #{lstm_model_forward.1} parent=0 // pred_check_branch
    %2389 = sbr.rel (0) target = $region45
  $region44: #{lstm_model_forward.1} parent=0 // pred_region
    _
  $region45: #{lstm_model_forward.1} parent=0 // pred_fallthru
    _
  // Predicated region
  $region46: #{lstm_model_forward.1} parent=0 // pred_check
    _
  $region47: #{lstm_model_forward.1} parent=0 // pred_check_branch
    %2391 = sbr.rel (0) target = $region49
  $region48: #{lstm_model_forward.1} parent=0 // pred_region
    _
  $region49: #{lstm_model_forward.1} parent=0 // pred_fallthru
    _
  // Predicated region
  $region50: #{lstm_model_forward.1} parent=0 // pred_check
    _
  $region51: #{lstm_model_forward.1} parent=0 // pred_check_branch
    %2393 = sbr.rel (0) target = $region53
  $region52: #{lstm_model_forward.1} parent=0 // pred_region
    _
  $region53: #{lstm_model_forward.1} parent=0 // pred_fallthru
    _
  // Predicated region
  $region54: #{lstm_model_forward.1} parent=0 // pred_check
    _
  $region55: #{lstm_model_forward.1} parent=0 // pred_check_branch
    %2395 = sbr.rel (0) target = $region57
  $region56: #{lstm_model_forward.1} parent=0 // pred_region
    _
  $region57: #{lstm_model_forward.1} parent=0 // pred_fallthru
    _
  // Predicated region
  $region58: #{lstm_model_forward.1} parent=0 // pred_check
    _
  $region59: #{lstm_model_forward.1} parent=0 // pred_check_branch
    %2397 = sbr.rel (0) target = $region61
  $region60: #{lstm_model_forward.1} parent=0 // pred_region
    _
  $region61: #{lstm_model_forward.1} parent=0 // pred_fallthru
    _

</llo_original>
